<compile_context>
chip_gen: v7x
topology: tpu7x:2x2x1
jax: 0.10.0
libtpu: 0.0.40
codegen_flags: <defaults>
</compile_context>

<pallas_src>
import math

import numpy as np
import jax
import jax.numpy as jnp
from jax.experimental import pallas as pl
from jax.experimental.pallas import tpu as pltpu


# --------------------------------------------------------------------------- helpers

def _get_kernel_size(sigma: float) -> int:
    ksize = int(2.0 * 3.0 * sigma + 1.0)
    if ksize % 2 == 0:
        ksize += 1
    return ksize


def _gaussian_taps(ksize: int, sigma: float):
    # kornia get_gaussian_kernel1d: x = arange(k) - k//2, exp(-x^2/(2 sigma^2)), normalized.
    x = np.arange(ksize, dtype=np.float64) - ksize // 2
    g = np.exp(-(x * x) / (2.0 * sigma * sigma))
    g = g / g.sum()
    return tuple(float(v) for v in g)


def _chip_info():
    """(physical VMEM bytes, # TensorCores per chip) — generation aware."""
    kind = ""
    try:
        kind = jax.devices()[0].device_kind.lower()
    except Exception:
        pass
    is_v7 = "v7" in kind
    vmem_cap = (64 << 20) if is_v7 else (128 << 20)
    try:
        vmem_cap = int(getattr(pltpu.get_tpu_info(), "vmem_capacity_bytes", vmem_cap))
    except Exception:
        pass
    num_tc = 2 if is_v7 else 1
    return vmem_cap, num_tc


def _pick_channel_block(c_total, b_total, h, w, n_levels, vmem_limit, num_tc):
    """Channels per grid step: biggest block inside the VMEM budget.  The block
    is only shrunk for megacore splitting when the chip actually has >= 2 TCs
    (on v5e/v6e smaller blocks just add per-step overhead)."""
    # f32 working set per channel: double-buffered in/out/pool blocks, the two
    # padded scratches, and a few live temporaries.
    per_ch = 4 * h * w * (2 * (n_levels + 1) + 10)
    budget = max(per_ch, vmem_limit // 2)
    cb = max(1, min(c_total, budget // per_ch))
    if num_tc > 1:
        while cb > 1 and b_total * (c_total // cb) < num_tc:
            cb -= 1
    while c_total % cb:
        cb -= 1
    return cb


# --------------------------------------------------------------------------- fused octave kernel

def _make_octave_kernel(blur_taps, ksize, h, w, n_levels, first_is_input, emit_pool):
    p = ksize // 2
    ho, wo = h // 2, w // 2

    def sep_blur(x, taps, padh, padw):
        k = len(taps)
        # ---- vertical pass: reflect-pad along H into a VMEM scratch ref, then
        #      K sublane-offset ref loads feeding VPU FMAs (no value concats).
        padh[:, p:p + h, :] = x
        for i in range(1, p + 1):
            padh[:, p - i:p - i + 1, :] = x[:, i:i + 1, :]                   # top mirror
            padh[:, p + h - 1 + i:p + h + i, :] = x[:, h - 1 - i:h - i, :]   # bottom mirror
        acc = taps[0] * padh[:, 0:h, :]
        for t in range(1, k):
            acc = acc + taps[t] * padh[:, t:t + h, :]

        # ---- horizontal pass: reflect-pad along W into a VMEM scratch ref,
        #      then K lane-offset ref loads feeding VPU FMAs.
        padw[:, :, p:p + w] = acc
        for i in range(1, p + 1):
            padw[:, :, p - i:p - i + 1] = acc[:, :, i:i + 1]                 # left mirror
            padw[:, :, p + w - 1 + i:p + w + i] = acc[:, :, w - 1 - i:w - i] # right mirror
        out = taps[0] * padw[:, :, 0:w]
        for t in range(1, k):
            out = out + taps[t] * padw[:, :, t:t + w]
        return out

    def kernel(x_ref, out_ref, *rest):
        if emit_pool:
            pool_ref, padh, padw = rest
        else:
            padh, padw = rest

        cur = x_ref[0].astype(jnp.float32)                       # (CB, H, W)
        lvl = 0
        if first_is_input:                                       # octaves > 0: level 0 = pooled input
            out_ref[0, 0] = cur.astype(out_ref.dtype)
            lvl = 1
        for taps in blur_taps:                                   # chained in VMEM — no HBM in between
            cur = sep_blur(cur, taps, padh, padw)
            out_ref[0, lvl] = cur.astype(out_ref.dtype)
            lvl += 1

        if emit_pool:
            # fused 2x2 / stride-2 average pool of the last level (pure VPU).
            hsum = jnp.concatenate(
                [cur[:, 2 * i:2 * i + 1, :] + cur[:, 2 * i + 1:2 * i + 2, :]
                 for i in range(ho)], axis=1)                    # (CB, ho, W)
            pooled = jnp.concatenate(
                [hsum[:, :, 2 * j:2 * j + 1] + hsum[:, :, 2 * j + 1:2 * j + 2]
                 for j in range(wo)], axis=2)                    # (CB, ho, wo)
            pool_ref[0] = (0.25 * pooled).astype(pool_ref.dtype)

    return kernel


def _octave(x, blur_taps, ksize, n_levels, first_is_input, emit_pool, vmem_limit, num_tc):
    """One fused octave: all blurs (+ optional 2x2 pool) in a single pallas_call.

    x: (B, C, H, W)
    returns (levels (B, n_levels, C, H, W), pooled (B, C, H//2, W//2) or None)
    """
    b, c, h, w = x.shape
    p = ksize // 2
    assert min(h, w) > p, "reflect padding requires pad < dim (as in torch)"
    cb = _pick_channel_block(c, b, h, w, n_levels, vmem_limit, num_tc)

    out_shape = [jax.ShapeDtypeStruct((b, n_levels, c, h, w), x.dtype)]
    out_specs = [pl.BlockSpec((1, n_levels, cb, h, w), lambda i, j: (i, 0, j, 0, 0))]
    if emit_pool:
        out_shape.append(jax.ShapeDtypeStruct((b, c, h // 2, w // 2), x.dtype))
        out_specs.append(pl.BlockSpec((1, cb, h // 2, w // 2), lambda i, j: (i, j, 0, 0)))

    res = pl.pallas_call(
        _make_octave_kernel(blur_taps, ksize, h, w, n_levels, first_is_input, emit_pool),
        out_shape=tuple(out_shape),
        grid_spec=pltpu.PrefetchScalarGridSpec(
            num_scalar_prefetch=0,
            grid=(b, c // cb),
            in_specs=[pl.BlockSpec((1, cb, h, w), lambda i, j: (i, j, 0, 0))],
            out_specs=tuple(out_specs),
            scratch_shapes=[pltpu.VMEM((cb, h + 2 * p, w), jnp.float32),
                            pltpu.VMEM((cb, h, w + 2 * p), jnp.float32)]),
        compiler_params=pltpu.CompilerParams(
            dimension_semantics=("parallel", "parallel"),
            vmem_limit_bytes=int(vmem_limit)),
    )(x)
    if emit_pool:
        return res[0], res[1]
    return res[0], None


# --------------------------------------------------------------------------- ScalePyramid forward

def scale_pyramid(x, n_levels=3, init_sigma=1.6, min_size=5):
    """JAX/Pallas port of kornia ScalePyramid.forward.

    x: (B, C, H, W)
    returns (pyr, sigmas, pixel_dists):
      pyr:         list of (B, n_levels, C, H_o, W_o)
      sigmas:      list of (B, n_levels)
      pixel_dists: list of (B, n_levels)
    """
    b, c, h, w = x.shape
    sigma_step = 2.0 ** (1.0 / float(n_levels))
    vmem_cap, num_tc = _chip_info()
    vmem_limit = int(min(vmem_cap // 2, 64 << 20))    # explicit, generation-aware scoped VMEM

    pixel_distance = 1.0
    cur_sigma = 0.5
    assert init_sigma > cur_sigma, "init_sigma must be > 0.5 (as in the torch module)"
    sigma0 = math.sqrt(init_sigma ** 2 - cur_sigma ** 2)
    ksize = _get_kernel_size(sigma0)                  # fixed for ALL blurs, as in the torch code

    pyr, sigmas, pixel_dists = [], [], []
    cur_input = x
    oh, ow = h, w
    first_octave = True
    while True:
        cur_sigma = init_sigma
        sig = np.full((n_levels,), cur_sigma, np.float32)
        pd = np.full((n_levels,), pixel_distance, np.float32)
        taps_list = [_gaussian_taps(ksize, sigma0)] if first_octave else []
        for level_idx in range(1, n_levels):
            s = cur_sigma * math.sqrt(sigma_step ** 2 - 1.0)
            taps_list.append(_gaussian_taps(ksize, s))
            cur_sigma *= sigma_step
            sig[level_idx] = cur_sigma
            pd[level_idx] = pixel_distance

        last_octave = min(oh // 2, ow // 2) <= min_size   # pooled size would be too small
        levels, pooled = _octave(cur_input, taps_list, ksize, n_levels,
                                 first_is_input=not first_octave,
                                 emit_pool=not last_octave,
                                 vmem_limit=vmem_limit, num_tc=num_tc)
        pyr.append(levels)
        sigmas.append(sig)
        pixel_dists.append(pd)

        pixel_distance *= 2.0
        if last_octave:
            break
        cur_input = pooled
        oh, ow = oh // 2, ow // 2
        first_octave = False

    out_sig = [jnp.broadcast_to(jnp.asarray(s), (b, n_levels)) for s in sigmas]
    out_pd = [jnp.broadcast_to(jnp.asarray(p), (b, n_levels)) for p in pixel_dists]
    return pyr, out_sig, out_pd


# --------------------------------------------------------------------------- pure-JAX reference

def _ref_gaussian_blur2d(x, ksize, sigma):
    t = np.asarray(_gaussian_taps(ksize, sigma), np.float64)
    k2 = np.outer(t, t).astype(np.float32)          # dense 2-D kernel (independent path)
    p = ksize // 2
    _, _, h, w = x.shape
    xp = jnp.pad(x.astype(jnp.float32), ((0, 0), (0, 0), (p, p), (p, p)), mode="reflect")
    out = jnp.zeros(x.shape, jnp.float32)
    for dy in range(ksize):
        for dx in range(ksize):
            out = out + float(k2[dy, dx]) * xp[:, :, dy:dy + h, dx:dx + w]
    return out.astype(x.dtype)


def _ref_avg_pool_2x2(x):
    b, c, h, w = x.shape
    ho, wo = h // 2, w // 2
    xc = x[:, :, :2 * ho, :2 * wo].astype(jnp.float32)
    return xc.reshape(b, c, ho, 2, wo, 2).mean(axis=(3, 5)).astype(x.dtype)


def _ref_scale_pyramid(x, n_levels=3, init_sigma=1.6, min_size=5):
    b = x.shape[0]
    sigma_step = 2.0 ** (1.0 / float(n_levels))
    pixel_distance = 1.0
    cur_sigma = 0.5
    sigma0 = math.sqrt(init_sigma ** 2 - cur_sigma ** 2)
    ksize = _get_kernel_size(sigma0)
    cur_level = _ref_gaussian_blur2d(x, ksize, sigma0)
    cur_sigma = init_sigma

    pyr = [[cur_level]]
    sigmas = [np.full((n_levels,), cur_sigma, np.float32)]
    pixel_dists = [np.full((n_levels,), pixel_distance, np.float32)]
    while True:
        cur = pyr[-1][0]
        for level_idx in range(1, n_levels):
            sigma = cur_sigma * math.sqrt(sigma_step ** 2 - 1.0)
            cur = _ref_gaussian_blur2d(cur, ksize, sigma)
            cur_sigma *= sigma_step
            pyr[-1].append(cur)
            sigmas[-1][level_idx] = cur_sigma
            pixel_dists[-1][level_idx] = pixel_distance
        pixel_distance *= 2.0
        cur_sigma = init_sigma
        hh, ww = cur.shape[2] // 2, cur.shape[3] // 2
        if min(hh, ww) <= min_size:
            break
        pyr.append([_ref_avg_pool_2x2(cur)])
        sigmas.append(np.full((n_levels,), cur_sigma, np.float32))
        pixel_dists.append(np.full((n_levels,), pixel_distance, np.float32))

    out_pyr = [jnp.stack(levels, axis=1) for levels in pyr]    # (B, NL, C, h, w)
    out_sig = [jnp.broadcast_to(jnp.asarray(s), (b, n_levels)) for s in sigmas]
    out_pd = [jnp.broadcast_to(jnp.asarray(p), (b, n_levels)) for p in pixel_dists]
    return out_pyr, out_sig, out_pd


# --------------------------------------------------------------------------- main

if __name__ == "__main__":
    key = jax.random.PRNGKey(0)
    x = jax.random.uniform(key, (2, 4, 16, 16), dtype=jnp.float32)

    pyr, sigmas, pixel_dists = scale_pyramid(x, n_levels=3, init_sigma=1.6, min_size=5)
    for leaf in jax.tree_util.tree_leaves((pyr, sigmas, pixel_dists)):
        jax.block_until_ready(leaf)

    # Shape checks: a 16x16 input yields two octaves (16x16 and 8x8).
    assert len(pyr) == len(sigmas) == len(pixel_dists) == 2
    assert pyr[0].shape == (2, 3, 4, 16, 16), pyr[0].shape
    assert pyr[1].shape == (2, 3, 4, 8, 8), pyr[1].shape
    assert sigmas[0].shape == (2, 3) and pixel_dists[0].shape == (2, 3)

    # Numerical check against an independent dense-2D-kernel / jnp.pad reference.
    rpyr, rsig, rpd = _ref_scale_pyramid(x, n_levels=3, init_sigma=1.6, min_size=5)
    for a, r in zip(pyr, rpyr):
        assert a.shape == r.shape, (a.shape, r.shape)
        assert jnp.allclose(a, r, atol=3e-5, rtol=1e-5), float(jnp.max(jnp.abs(a - r)))
    for a, r in zip(sigmas, rsig):
        assert jnp.allclose(a, r, atol=1e-6)
    for a, r in zip(pixel_dists, rpd):
        assert jnp.allclose(a, r, atol=1e-6)

    print("KERNEL_OK")
</pallas_src>

<mosaic_0001>
module attributes {stable_mosaic.version = 11 : i64} {
  func.func @kernel(%arg0: i32, %arg1: i32, %arg2: memref<1x4x16x16xf32, #tpu.memory_space<vmem>>, %arg3: memref<1x3x4x16x16xf32, #tpu.memory_space<vmem>>, %arg4: memref<1x4x8x8xf32, #tpu.memory_space<vmem>>, %arg5: memref<4x26x16xf32, #tpu.memory_space<vmem>>, %arg6: memref<4x16x26xf32, #tpu.memory_space<vmem>>) attributes {dimension_semantics = [#tpu.dimension_semantics<parallel>, #tpu.dimension_semantics<parallel>], iteration_bounds = array<i64: 2, 1>, scalar_prefetch = 0 : i64, scratch_operands = 2 : i64, tpu.core_type = #tpu.core_type<tc>, window_params = [{transform_indices = @transform_0, window_bounds = array<i64: 1, 4, 16, 16>}, {transform_indices = @transform_1, window_bounds = array<i64: 1, 3, 4, 16, 16>}, {transform_indices = @transform_2, window_bounds = array<i64: 1, 4, 8, 8>}]} {
    %c0 = arith.constant 0 : index
    %c0_0 = arith.constant 0 : index
    %c0_1 = arith.constant 0 : index
    %c0_2 = arith.constant 0 : index
    %0 = vector.load %arg2[%c0, %c0_0, %c0_1, %c0_2] : memref<1x4x16x16xf32, #tpu.memory_space<vmem>>, vector<1x4x16x16xf32>
    %1 = vector.shape_cast %0 : vector<1x4x16x16xf32> to vector<4x16x16xf32>
    %c0_3 = arith.constant 0 : index
    %c5 = arith.constant 5 : index
    %c0_4 = arith.constant 0 : index
    %2 = vector.load %arg5[%c0_3, %c5, %c0_4] : memref<4x26x16xf32, #tpu.memory_space<vmem>>, vector<4x16x16xf32>
    tpu.vector_store %arg5[%c0_3, %c5, %c0_4], %1 {strides = array<i32>} : memref<4x26x16xf32, #tpu.memory_space<vmem>>, vector<4x16x16xf32>,
    %3 = vector.extract_strided_slice %1 {offsets = [0, 1, 0], sizes = [4, 1, 16], strides = [1, 1, 1]} : vector<4x16x16xf32> to vector<4x1x16xf32>
    %c0_5 = arith.constant 0 : index
    %c4 = arith.constant 4 : index
    %c0_6 = arith.constant 0 : index
    %4 = vector.load %arg5[%c0_5, %c4, %c0_6] : memref<4x26x16xf32, #tpu.memory_space<vmem>>, vector<4x1x16xf32>
    tpu.vector_store %arg5[%c0_5, %c4, %c0_6], %3 {strides = array<i32>} : memref<4x26x16xf32, #tpu.memory_space<vmem>>, vector<4x1x16xf32>,
    %5 = vector.extract_strided_slice %1 {offsets = [0, 14, 0], sizes = [4, 1, 16], strides = [1, 1, 1]} : vector<4x16x16xf32> to vector<4x1x16xf32>
    %c0_7 = arith.constant 0 : index
    %c21 = arith.constant 21 : index
    %c0_8 = arith.constant 0 : index
    %6 = vector.load %arg5[%c0_7, %c21, %c0_8] : memref<4x26x16xf32, #tpu.memory_space<vmem>>, vector<4x1x16xf32>
    tpu.vector_store %arg5[%c0_7, %c21, %c0_8], %5 {strides = array<i32>} : memref<4x26x16xf32, #tpu.memory_space<vmem>>, vector<4x1x16xf32>,
    %7 = vector.extract_strided_slice %1 {offsets = [0, 2, 0], sizes = [4, 1, 16], strides = [1, 1, 1]} : vector<4x16x16xf32> to vector<4x1x16xf32>
    %c0_9 = arith.constant 0 : index
    %c3 = arith.constant 3 : index
    %c0_10 = arith.constant 0 : index
    %8 = vector.load %arg5[%c0_9, %c3, %c0_10] : memref<4x26x16xf32, #tpu.memory_space<vmem>>, vector<4x1x16xf32>
    tpu.vector_store %arg5[%c0_9, %c3, %c0_10], %7 {strides = array<i32>} : memref<4x26x16xf32, #tpu.memory_space<vmem>>, vector<4x1x16xf32>,
    %9 = vector.extract_strided_slice %1 {offsets = [0, 13, 0], sizes = [4, 1, 16], strides = [1, 1, 1]} : vector<4x16x16xf32> to vector<4x1x16xf32>
    %c0_11 = arith.constant 0 : index
    %c22 = arith.constant 22 : index
    %c0_12 = arith.constant 0 : index
    %10 = vector.load %arg5[%c0_11, %c22, %c0_12] : memref<4x26x16xf32, #tpu.memory_space<vmem>>, vector<4x1x16xf32>
    tpu.vector_store %arg5[%c0_11, %c22, %c0_12], %9 {strides = array<i32>} : memref<4x26x16xf32, #tpu.memory_space<vmem>>, vector<4x1x16xf32>,
    %11 = vector.extract_strided_slice %1 {offsets = [0, 3, 0], sizes = [4, 1, 16], strides = [1, 1, 1]} : vector<4x16x16xf32> to vector<4x1x16xf32>
    %c0_13 = arith.constant 0 : index
    %c2 = arith.constant 2 : index
    %c0_14 = arith.constant 0 : index
    %12 = vector.load %arg5[%c0_13, %c2, %c0_14] : memref<4x26x16xf32, #tpu.memory_space<vmem>>, vector<4x1x16xf32>
    tpu.vector_store %arg5[%c0_13, %c2, %c0_14], %11 {strides = array<i32>} : memref<4x26x16xf32, #tpu.memory_space<vmem>>, vector<4x1x16xf32>,
    %13 = vector.extract_strided_slice %1 {offsets = [0, 12, 0], sizes = [4, 1, 16], strides = [1, 1, 1]} : vector<4x16x16xf32> to vector<4x1x16xf32>
    %c0_15 = arith.constant 0 : index
    %c23 = arith.constant 23 : index
    %c0_16 = arith.constant 0 : index
    %14 = vector.load %arg5[%c0_15, %c23, %c0_16] : memref<4x26x16xf32, #tpu.memory_space<vmem>>, vector<4x1x16xf32>
    tpu.vector_store %arg5[%c0_15, %c23, %c0_16], %13 {strides = array<i32>} : memref<4x26x16xf32, #tpu.memory_space<vmem>>, vector<4x1x16xf32>,
    %15 = vector.extract_strided_slice %1 {offsets = [0, 4, 0], sizes = [4, 1, 16], strides = [1, 1, 1]} : vector<4x16x16xf32> to vector<4x1x16xf32>
    %c0_17 = arith.constant 0 : index
    %c1 = arith.constant 1 : index
    %c0_18 = arith.constant 0 : index
    %16 = vector.load %arg5[%c0_17, %c1, %c0_18] : memref<4x26x16xf32, #tpu.memory_space<vmem>>, vector<4x1x16xf32>
    tpu.vector_store %arg5[%c0_17, %c1, %c0_18], %15 {strides = array<i32>} : memref<4x26x16xf32, #tpu.memory_space<vmem>>, vector<4x1x16xf32>,
    %17 = vector.extract_strided_slice %1 {offsets = [0, 11, 0], sizes = [4, 1, 16], strides = [1, 1, 1]} : vector<4x16x16xf32> to vector<4x1x16xf32>
    %c0_19 = arith.constant 0 : index
    %c24 = arith.constant 24 : index
    %c0_20 = arith.constant 0 : index
    %18 = vector.load %arg5[%c0_19, %c24, %c0_20] : memref<4x26x16xf32, #tpu.memory_space<vmem>>, vector<4x1x16xf32>
    tpu.vector_store %arg5[%c0_19, %c24, %c0_20], %17 {strides = array<i32>} : memref<4x26x16xf32, #tpu.memory_space<vmem>>, vector<4x1x16xf32>,
    %19 = vector.extract_strided_slice %1 {offsets = [0, 5, 0], sizes = [4, 1, 16], strides = [1, 1, 1]} : vector<4x16x16xf32> to vector<4x1x16xf32>
    %c0_21 = arith.constant 0 : index
    %c0_22 = arith.constant 0 : index
    %c0_23 = arith.constant 0 : index
    %20 = vector.load %arg5[%c0_21, %c0_22, %c0_23] : memref<4x26x16xf32, #tpu.memory_space<vmem>>, vector<4x1x16xf32>
    tpu.vector_store %arg5[%c0_21, %c0_22, %c0_23], %19 {strides = array<i32>} : memref<4x26x16xf32, #tpu.memory_space<vmem>>, vector<4x1x16xf32>,
    %21 = vector.extract_strided_slice %1 {offsets = [0, 10, 0], sizes = [4, 1, 16], strides = [1, 1, 1]} : vector<4x16x16xf32> to vector<4x1x16xf32>
    %c0_24 = arith.constant 0 : index
    %c25 = arith.constant 25 : index
    %c0_25 = arith.constant 0 : index
    %22 = vector.load %arg5[%c0_24, %c25, %c0_25] : memref<4x26x16xf32, #tpu.memory_space<vmem>>, vector<4x1x16xf32>
    tpu.vector_store %arg5[%c0_24, %c25, %c0_25], %21 {strides = array<i32>} : memref<4x26x16xf32, #tpu.memory_space<vmem>>, vector<4x1x16xf32>,
    %c0_26 = arith.constant 0 : index
    %c0_27 = arith.constant 0 : index
    %c0_28 = arith.constant 0 : index
    %23 = vector.load %arg5[%c0_26, %c0_27, %c0_28] : memref<4x26x16xf32, #tpu.memory_space<vmem>>, vector<4x16x16xf32>
    %cst = arith.constant 0.00117253477 : f32
    %24 = vector.broadcast %cst : f32 to vector<4x16x16xf32>
    %25 = arith.mulf %24, %23 : vector<4x16x16xf32>
    %c0_29 = arith.constant 0 : index
    %c1_30 = arith.constant 1 : index
    %c0_31 = arith.constant 0 : index
    %26 = vector.load %arg5[%c0_29, %c1_30, %c0_31] : memref<4x26x16xf32, #tpu.memory_space<vmem>>, vector<4x16x16xf32>
    %cst_32 = arith.constant 0.00822534133 : f32
    %27 = vector.broadcast %cst_32 : f32 to vector<4x16x16xf32>
    %28 = arith.mulf %27, %26 : vector<4x16x16xf32>
    %29 = arith.addf %25, %28 : vector<4x16x16xf32>
    %c0_33 = arith.constant 0 : index
    %c2_34 = arith.constant 2 : index
    %c0_35 = arith.constant 0 : index
    %30 = vector.load %arg5[%c0_33, %c2_34, %c0_35] : memref<4x26x16xf32, #tpu.memory_space<vmem>>, vector<4x16x16xf32>
    %cst_36 = arith.constant 0.0374262147 : f32
    %31 = vector.broadcast %cst_36 : f32 to vector<4x16x16xf32>
    %32 = arith.mulf %31, %30 : vector<4x16x16xf32>
    %33 = arith.addf %29, %32 : vector<4x16x16xf32>
    %c0_37 = arith.constant 0 : index
    %c3_38 = arith.constant 3 : index
    %c0_39 = arith.constant 0 : index
    %34 = vector.load %arg5[%c0_37, %c3_38, %c0_39] : memref<4x26x16xf32, #tpu.memory_space<vmem>>, vector<4x16x16xf32>
    %cst_40 = arith.constant 0.110456571 : f32
    %35 = vector.broadcast %cst_40 : f32 to vector<4x16x16xf32>
    %36 = arith.mulf %35, %34 : vector<4x16x16xf32>
    %37 = arith.addf %33, %36 : vector<4x16x16xf32>
    %c0_41 = arith.constant 0 : index
    %c4_42 = arith.constant 4 : index
    %c0_43 = arith.constant 0 : index
    %38 = vector.load %arg5[%c0_41, %c4_42, %c0_43] : memref<4x26x16xf32, #tpu.memory_space<vmem>>, vector<4x16x16xf32>
    %cst_44 = arith.constant 0.211446732 : f32
    %39 = vector.broadcast %cst_44 : f32 to vector<4x16x16xf32>
    %40 = arith.mulf %39, %38 : vector<4x16x16xf32>
    %41 = arith.addf %37, %40 : vector<4x16x16xf32>
    %c0_45 = arith.constant 0 : index
    %c5_46 = arith.constant 5 : index
    %c0_47 = arith.constant 0 : index
    %42 = vector.load %arg5[%c0_45, %c5_46, %c0_47] : memref<4x26x16xf32, #tpu.memory_space<vmem>>, vector<4x16x16xf32>
    %cst_48 = arith.constant 0.262545228 : f32
    %43 = vector.broadcast %cst_48 : f32 to vector<4x16x16xf32>
    %44 = arith.mulf %43, %42 : vector<4x16x16xf32>
    %45 = arith.addf %41, %44 : vector<4x16x16xf32>
    %c0_49 = arith.constant 0 : index
    %c6 = arith.constant 6 : index
    %c0_50 = arith.constant 0 : index
    %46 = vector.load %arg5[%c0_49, %c6, %c0_50] : memref<4x26x16xf32, #tpu.memory_space<vmem>>, vector<4x16x16xf32>
    %cst_51 = arith.constant 0.211446732 : f32
    %47 = vector.broadcast %cst_51 : f32 to vector<4x16x16xf32>
    %48 = arith.mulf %47, %46 : vector<4x16x16xf32>
    %49 = arith.addf %45, %48 : vector<4x16x16xf32>
    %c0_52 = arith.constant 0 : index
    %c7 = arith.constant 7 : index
    %c0_53 = arith.constant 0 : index
    %50 = vector.load %arg5[%c0_52, %c7, %c0_53] : memref<4x26x16xf32, #tpu.memory_space<vmem>>, vector<4x16x16xf32>
    %cst_54 = arith.constant 0.110456571 : f32
    %51 = vector.broadcast %cst_54 : f32 to vector<4x16x16xf32>
    %52 = arith.mulf %51, %50 : vector<4x16x16xf32>
    %53 = arith.addf %49, %52 : vector<4x16x16xf32>
    %c0_55 = arith.constant 0 : index
    %c8 = arith.constant 8 : index
    %c0_56 = arith.constant 0 : index
    %54 = vector.load %arg5[%c0_55, %c8, %c0_56] : memref<4x26x16xf32, #tpu.memory_space<vmem>>, vector<4x16x16xf32>
    %cst_57 = arith.constant 0.0374262147 : f32
    %55 = vector.broadcast %cst_57 : f32 to vector<4x16x16xf32>
    %56 = arith.mulf %55, %54 : vector<4x16x16xf32>
    %57 = arith.addf %53, %56 : vector<4x16x16xf32>
    %c0_58 = arith.constant 0 : index
    %c9 = arith.constant 9 : index
    %c0_59 = arith.constant 0 : index
    %58 = vector.load %arg5[%c0_58, %c9, %c0_59] : memref<4x26x16xf32, #tpu.memory_space<vmem>>, vector<4x16x16xf32>
    %cst_60 = arith.constant 0.00822534133 : f32
    %59 = vector.broadcast %cst_60 : f32 to vector<4x16x16xf32>
    %60 = arith.mulf %59, %58 : vector<4x16x16xf32>
    %61 = arith.addf %57, %60 : vector<4x16x16xf32>
    %c0_61 = arith.constant 0 : index
    %c10 = arith.constant 10 : index
    %c0_62 = arith.constant 0 : index
    %62 = vector.load %arg5[%c0_61, %c10, %c0_62] : memref<4x26x16xf32, #tpu.memory_space<vmem>>, vector<4x16x16xf32>
    %cst_63 = arith.constant 0.00117253477 : f32
    %63 = vector.broadcast %cst_63 : f32 to vector<4x16x16xf32>
    %64 = arith.mulf %63, %62 : vector<4x16x16xf32>
    %65 = arith.addf %61, %64 : vector<4x16x16xf32>
    %c0_64 = arith.constant 0 : index
    %c0_65 = arith.constant 0 : index
    %c5_66 = arith.constant 5 : index
    %66 = vector.load %arg6[%c0_64, %c0_65, %c5_66] : memref<4x16x26xf32, #tpu.memory_space<vmem>>, vector<4x16x16xf32>
    tpu.vector_store %arg6[%c0_64, %c0_65, %c5_66], %65 {strides = array<i32>} : memref<4x16x26xf32, #tpu.memory_space<vmem>>, vector<4x16x16xf32>,
    %67 = vector.extract_strided_slice %65 {offsets = [0, 0, 1], sizes = [4, 16, 1], strides = [1, 1, 1]} : vector<4x16x16xf32> to vector<4x16x1xf32>
    %c0_67 = arith.constant 0 : index
    %c0_68 = arith.constant 0 : index
    %c4_69 = arith.constant 4 : index
    %68 = vector.load %arg6[%c0_67, %c0_68, %c4_69] : memref<4x16x26xf32, #tpu.memory_space<vmem>>, vector<4x16x1xf32>
    tpu.vector_store %arg6[%c0_67, %c0_68, %c4_69], %67 {strides = array<i32>} : memref<4x16x26xf32, #tpu.memory_space<vmem>>, vector<4x16x1xf32>,
    %69 = vector.extract_strided_slice %65 {offsets = [0, 0, 14], sizes = [4, 16, 1], strides = [1, 1, 1]} : vector<4x16x16xf32> to vector<4x16x1xf32>
    %c0_70 = arith.constant 0 : index
    %c0_71 = arith.constant 0 : index
    %c21_72 = arith.constant 21 : index
    %70 = vector.load %arg6[%c0_70, %c0_71, %c21_72] : memref<4x16x26xf32, #tpu.memory_space<vmem>>, vector<4x16x1xf32>
    tpu.vector_store %arg6[%c0_70, %c0_71, %c21_72], %69 {strides = array<i32>} : memref<4x16x26xf32, #tpu.memory_space<vmem>>, vector<4x16x1xf32>,
    %71 = vector.extract_strided_slice %65 {offsets = [0, 0, 2], sizes = [4, 16, 1], strides = [1, 1, 1]} : vector<4x16x16xf32> to vector<4x16x1xf32>
    %c0_73 = arith.constant 0 : index
    %c0_74 = arith.constant 0 : index
    %c3_75 = arith.constant 3 : index
    %72 = vector.load %arg6[%c0_73, %c0_74, %c3_75] : memref<4x16x26xf32, #tpu.memory_space<vmem>>, vector<4x16x1xf32>
    tpu.vector_store %arg6[%c0_73, %c0_74, %c3_75], %71 {strides = array<i32>} : memref<4x16x26xf32, #tpu.memory_space<vmem>>, vector<4x16x1xf32>,
    %73 = vector.extract_strided_slice %65 {offsets = [0, 0, 13], sizes = [4, 16, 1], strides = [1, 1, 1]} : vector<4x16x16xf32> to vector<4x16x1xf32>
    %c0_76 = arith.constant 0 : index
    %c0_77 = arith.constant 0 : index
    %c22_78 = arith.constant 22 : index
    %74 = vector.load %arg6[%c0_76, %c0_77, %c22_78] : memref<4x16x26xf32, #tpu.memory_space<vmem>>, vector<4x16x1xf32>
    tpu.vector_store %arg6[%c0_76, %c0_77, %c22_78], %73 {strides = array<i32>} : memref<4x16x26xf32, #tpu.memory_space<vmem>>, vector<4x16x1xf32>,
    %75 = vector.extract_strided_slice %65 {offsets = [0, 0, 3], sizes = [4, 16, 1], strides = [1, 1, 1]} : vector<4x16x16xf32> to vector<4x16x1xf32>
    %c0_79 = arith.constant 0 : index
    %c0_80 = arith.constant 0 : index
    %c2_81 = arith.constant 2 : index
    %76 = vector.load %arg6[%c0_79, %c0_80, %c2_81] : memref<4x16x26xf32, #tpu.memory_space<vmem>>, vector<4x16x1xf32>
    tpu.vector_store %arg6[%c0_79, %c0_80, %c2_81], %75 {strides = array<i32>} : memref<4x16x26xf32, #tpu.memory_space<vmem>>, vector<4x16x1xf32>,
    %77 = vector.extract_strided_slice %65 {offsets = [0, 0, 12], sizes = [4, 16, 1], strides = [1, 1, 1]} : vector<4x16x16xf32> to vector<4x16x1xf32>
    %c0_82 = arith.constant 0 : index
    %c0_83 = arith.constant 0 : index
    %c23_84 = arith.constant 23 : index
    %78 = vector.load %arg6[%c0_82, %c0_83, %c23_84] : memref<4x16x26xf32, #tpu.memory_space<vmem>>, vector<4x16x1xf32>
    tpu.vector_store %arg6[%c0_82, %c0_83, %c23_84], %77 {strides = array<i32>} : memref<4x16x26xf32, #tpu.memory_space<vmem>>, vector<4x16x1xf32>,
    %79 = vector.extract_strided_slice %65 {offsets = [0, 0, 4], sizes = [4, 16, 1], strides = [1, 1, 1]} : vector<4x16x16xf32> to vector<4x16x1xf32>
    %c0_85 = arith.constant 0 : index
    %c0_86 = arith.constant 0 : index
    %c1_87 = arith.constant 1 : index
    %80 = vector.load %arg6[%c0_85, %c0_86, %c1_87] : memref<4x16x26xf32, #tpu.memory_space<vmem>>, vector<4x16x1xf32>
    tpu.vector_store %arg6[%c0_85, %c0_86, %c1_87], %79 {strides = array<i32>} : memref<4x16x26xf32, #tpu.memory_space<vmem>>, vector<4x16x1xf32>,
    %81 = vector.extract_strided_slice %65 {offsets = [0, 0, 11], sizes = [4, 16, 1], strides = [1, 1, 1]} : vector<4x16x16xf32> to vector<4x16x1xf32>
    %c0_88 = arith.constant 0 : index
    %c0_89 = arith.constant 0 : index
    %c24_90 = arith.constant 24 : index
    %82 = vector.load %arg6[%c0_88, %c0_89, %c24_90] : memref<4x16x26xf32, #tpu.memory_space<vmem>>, vector<4x16x1xf32>
    tpu.vector_store %arg6[%c0_88, %c0_89, %c24_90], %81 {strides = array<i32>} : memref<4x16x26xf32, #tpu.memory_space<vmem>>, vector<4x16x1xf32>,
    %83 = vector.extract_strided_slice %65 {offsets = [0, 0, 5], sizes = [4, 16, 1], strides = [1, 1, 1]} : vector<4x16x16xf32> to vector<4x16x1xf32>
    %c0_91 = arith.constant 0 : index
    %c0_92 = arith.constant 0 : index
    %c0_93 = arith.constant 0 : index
    %84 = vector.load %arg6[%c0_91, %c0_92, %c0_93] : memref<4x16x26xf32, #tpu.memory_space<vmem>>, vector<4x16x1xf32>
    tpu.vector_store %arg6[%c0_91, %c0_92, %c0_93], %83 {strides = array<i32>} : memref<4x16x26xf32, #tpu.memory_space<vmem>>, vector<4x16x1xf32>,
    %85 = vector.extract_strided_slice %65 {offsets = [0, 0, 10], sizes = [4, 16, 1], strides = [1, 1, 1]} : vector<4x16x16xf32> to vector<4x16x1xf32>
    %c0_94 = arith.constant 0 : index
    %c0_95 = arith.constant 0 : index
    %c25_96 = arith.constant 25 : index
    %86 = vector.load %arg6[%c0_94, %c0_95, %c25_96] : memref<4x16x26xf32, #tpu.memory_space<vmem>>, vector<4x16x1xf32>
    tpu.vector_store %arg6[%c0_94, %c0_95, %c25_96], %85 {strides = array<i32>} : memref<4x16x26xf32, #tpu.memory_space<vmem>>, vector<4x16x1xf32>,
    %c0_97 = arith.constant 0 : index
    %c0_98 = arith.constant 0 : index
    %c0_99 = arith.constant 0 : index
    %87 = vector.load %arg6[%c0_97, %c0_98, %c0_99] : memref<4x16x26xf32, #tpu.memory_space<vmem>>, vector<4x16x16xf32>
    %cst_100 = arith.constant 0.00117253477 : f32
    %88 = vector.broadcast %cst_100 : f32 to vector<4x16x16xf32>
    %89 = arith.mulf %88, %87 : vector<4x16x16xf32>
    %c0_101 = arith.constant 0 : index
    %c0_102 = arith.constant 0 : index
    %c1_103 = arith.constant 1 : index
    %90 = vector.load %arg6[%c0_101, %c0_102, %c1_103] : memref<4x16x26xf32, #tpu.memory_space<vmem>>, vector<4x16x16xf32>
    %cst_104 = arith.constant 0.00822534133 : f32
    %91 = vector.broadcast %cst_104 : f32 to vector<4x16x16xf32>
    %92 = arith.mulf %91, %90 : vector<4x16x16xf32>
    %93 = arith.addf %89, %92 : vector<4x16x16xf32>
    %c0_105 = arith.constant 0 : index
    %c0_106 = arith.constant 0 : index
    %c2_107 = arith.constant 2 : index
    %94 = vector.load %arg6[%c0_105, %c0_106, %c2_107] : memref<4x16x26xf32, #tpu.memory_space<vmem>>, vector<4x16x16xf32>
    %cst_108 = arith.constant 0.0374262147 : f32
    %95 = vector.broadcast %cst_108 : f32 to vector<4x16x16xf32>
    %96 = arith.mulf %95, %94 : vector<4x16x16xf32>
    %97 = arith.addf %93, %96 : vector<4x16x16xf32>
    %c0_109 = arith.constant 0 : index
    %c0_110 = arith.constant 0 : index
    %c3_111 = arith.constant 3 : index
    %98 = vector.load %arg6[%c0_109, %c0_110, %c3_111] : memref<4x16x26xf32, #tpu.memory_space<vmem>>, vector<4x16x16xf32>
    %cst_112 = arith.constant 0.110456571 : f32
    %99 = vector.broadcast %cst_112 : f32 to vector<4x16x16xf32>
    %100 = arith.mulf %99, %98 : vector<4x16x16xf32>
    %101 = arith.addf %97, %100 : vector<4x16x16xf32>
    %c0_113 = arith.constant 0 : index
    %c0_114 = arith.constant 0 : index
    %c4_115 = arith.constant 4 : index
    %102 = vector.load %arg6[%c0_113, %c0_114, %c4_115] : memref<4x16x26xf32, #tpu.memory_space<vmem>>, vector<4x16x16xf32>
    %cst_116 = arith.constant 0.211446732 : f32
    %103 = vector.broadcast %cst_116 : f32 to vector<4x16x16xf32>
    %104 = arith.mulf %103, %102 : vector<4x16x16xf32>
    %105 = arith.addf %101, %104 : vector<4x16x16xf32>
    %c0_117 = arith.constant 0 : index
    %c0_118 = arith.constant 0 : index
    %c5_119 = arith.constant 5 : index
    %106 = vector.load %arg6[%c0_117, %c0_118, %c5_119] : memref<4x16x26xf32, #tpu.memory_space<vmem>>, vector<4x16x16xf32>
    %cst_120 = arith.constant 0.262545228 : f32
    %107 = vector.broadcast %cst_120 : f32 to vector<4x16x16xf32>
    %108 = arith.mulf %107, %106 : vector<4x16x16xf32>
    %109 = arith.addf %105, %108 : vector<4x16x16xf32>
    %c0_121 = arith.constant 0 : index
    %c0_122 = arith.constant 0 : index
    %c6_123 = arith.constant 6 : index
    %110 = vector.load %arg6[%c0_121, %c0_122, %c6_123] : memref<4x16x26xf32, #tpu.memory_space<vmem>>, vector<4x16x16xf32>
    %cst_124 = arith.constant 0.211446732 : f32
    %111 = vector.broadcast %cst_124 : f32 to vector<4x16x16xf32>
    %112 = arith.mulf %111, %110 : vector<4x16x16xf32>
    %113 = arith.addf %109, %112 : vector<4x16x16xf32>
    %c0_125 = arith.constant 0 : index
    %c0_126 = arith.constant 0 : index
    %c7_127 = arith.constant 7 : index
    %114 = vector.load %arg6[%c0_125, %c0_126, %c7_127] : memref<4x16x26xf32, #tpu.memory_space<vmem>>, vector<4x16x16xf32>
    %cst_128 = arith.constant 0.110456571 : f32
    %115 = vector.broadcast %cst_128 : f32 to vector<4x16x16xf32>
    %116 = arith.mulf %115, %114 : vector<4x16x16xf32>
    %117 = arith.addf %113, %116 : vector<4x16x16xf32>
    %c0_129 = arith.constant 0 : index
    %c0_130 = arith.constant 0 : index
    %c8_131 = arith.constant 8 : index
    %118 = vector.load %arg6[%c0_129, %c0_130, %c8_131] : memref<4x16x26xf32, #tpu.memory_space<vmem>>, vector<4x16x16xf32>
    %cst_132 = arith.constant 0.0374262147 : f32
    %119 = vector.broadcast %cst_132 : f32 to vector<4x16x16xf32>
    %120 = arith.mulf %119, %118 : vector<4x16x16xf32>
    %121 = arith.addf %117, %120 : vector<4x16x16xf32>
    %c0_133 = arith.constant 0 : index
    %c0_134 = arith.constant 0 : index
    %c9_135 = arith.constant 9 : index
    %122 = vector.load %arg6[%c0_133, %c0_134, %c9_135] : memref<4x16x26xf32, #tpu.memory_space<vmem>>, vector<4x16x16xf32>
    %cst_136 = arith.constant 0.00822534133 : f32
    %123 = vector.broadcast %cst_136 : f32 to vector<4x16x16xf32>
    %124 = arith.mulf %123, %122 : vector<4x16x16xf32>
    %125 = arith.addf %121, %124 : vector<4x16x16xf32>
    %c0_137 = arith.constant 0 : index
    %c0_138 = arith.constant 0 : index
    %c10_139 = arith.constant 10 : index
    %126 = vector.load %arg6[%c0_137, %c0_138, %c10_139] : memref<4x16x26xf32, #tpu.memory_space<vmem>>, vector<4x16x16xf32>
    %cst_140 = arith.constant 0.00117253477 : f32
    %127 = vector.broadcast %cst_140 : f32 to vector<4x16x16xf32>
    %128 = arith.mulf %127, %126 : vector<4x16x16xf32>
    %129 = arith.addf %125, %128 : vector<4x16x16xf32>
    %c0_141 = arith.constant 0 : index
    %c0_142 = arith.constant 0 : index
    %c0_143 = arith.constant 0 : index
    %c0_144 = arith.constant 0 : index
    %c0_145 = arith.constant 0 : index
    %130 = vector.load %arg3[%c0_141, %c0_142, %c0_143, %c0_144, %c0_145] : memref<1x3x4x16x16xf32, #tpu.memory_space<vmem>>, vector<1x1x4x16x16xf32>
    %131 = vector.shape_cast %130 : vector<1x1x4x16x16xf32> to vector<4x16x16xf32>
    %132 = vector.shape_cast %129 : vector<4x16x16xf32> to vector<1x1x4x16x16xf32>
    tpu.vector_store %arg3[%c0_141, %c0_142, %c0_143, %c0_144, %c0_145], %132 {strides = array<i32>} : memref<1x3x4x16x16xf32, #tpu.memory_space<vmem>>, vector<1x1x4x16x16xf32>,
    %c0_146 = arith.constant 0 : index
    %c5_147 = arith.constant 5 : index
    %c0_148 = arith.constant 0 : index
    %133 = vector.load %arg5[%c0_146, %c5_147, %c0_148] : memref<4x26x16xf32, #tpu.memory_space<vmem>>, vector<4x16x16xf32>
    tpu.vector_store %arg5[%c0_146, %c5_147, %c0_148], %129 {strides = array<i32>} : memref<4x26x16xf32, #tpu.memory_space<vmem>>, vector<4x16x16xf32>,
    %134 = vector.extract_strided_slice %129 {offsets = [0, 1, 0], sizes = [4, 1, 16], strides = [1, 1, 1]} : vector<4x16x16xf32> to vector<4x1x16xf32>
    %c0_149 = arith.constant 0 : index
    %c4_150 = arith.constant 4 : index
    %c0_151 = arith.constant 0 : index
    %135 = vector.load %arg5[%c0_149, %c4_150, %c0_151] : memref<4x26x16xf32, #tpu.memory_space<vmem>>, vector<4x1x16xf32>
    tpu.vector_store %arg5[%c0_149, %c4_150, %c0_151], %134 {strides = array<i32>} : memref<4x26x16xf32, #tpu.memory_space<vmem>>, vector<4x1x16xf32>,
    %136 = vector.extract_strided_slice %129 {offsets = [0, 14, 0], sizes = [4, 1, 16], strides = [1, 1, 1]} : vector<4x16x16xf32> to vector<4x1x16xf32>
    %c0_152 = arith.constant 0 : index
    %c21_153 = arith.constant 21 : index
    %c0_154 = arith.constant 0 : index
    %137 = vector.load %arg5[%c0_152, %c21_153, %c0_154] : memref<4x26x16xf32, #tpu.memory_space<vmem>>, vector<4x1x16xf32>
    tpu.vector_store %arg5[%c0_152, %c21_153, %c0_154], %136 {strides = array<i32>} : memref<4x26x16xf32, #tpu.memory_space<vmem>>, vector<4x1x16xf32>,
    %138 = vector.extract_strided_slice %129 {offsets = [0, 2, 0], sizes = [4, 1, 16], strides = [1, 1, 1]} : vector<4x16x16xf32> to vector<4x1x16xf32>
    %c0_155 = arith.constant 0 : index
    %c3_156 = arith.constant 3 : index
    %c0_157 = arith.constant 0 : index
    %139 = vector.load %arg5[%c0_155, %c3_156, %c0_157] : memref<4x26x16xf32, #tpu.memory_space<vmem>>, vector<4x1x16xf32>
    tpu.vector_store %arg5[%c0_155, %c3_156, %c0_157], %138 {strides = array<i32>} : memref<4x26x16xf32, #tpu.memory_space<vmem>>, vector<4x1x16xf32>,
    %140 = vector.extract_strided_slice %129 {offsets = [0, 13, 0], sizes = [4, 1, 16], strides = [1, 1, 1]} : vector<4x16x16xf32> to vector<4x1x16xf32>
    %c0_158 = arith.constant 0 : index
    %c22_159 = arith.constant 22 : index
    %c0_160 = arith.constant 0 : index
    %141 = vector.load %arg5[%c0_158, %c22_159, %c0_160] : memref<4x26x16xf32, #tpu.memory_space<vmem>>, vector<4x1x16xf32>
    tpu.vector_store %arg5[%c0_158, %c22_159, %c0_160], %140 {strides = array<i32>} : memref<4x26x16xf32, #tpu.memory_space<vmem>>, vector<4x1x16xf32>,
    %142 = vector.extract_strided_slice %129 {offsets = [0, 3, 0], sizes = [4, 1, 16], strides = [1, 1, 1]} : vector<4x16x16xf32> to vector<4x1x16xf32>
    %c0_161 = arith.constant 0 : index
    %c2_162 = arith.constant 2 : index
    %c0_163 = arith.constant 0 : index
    %143 = vector.load %arg5[%c0_161, %c2_162, %c0_163] : memref<4x26x16xf32, #tpu.memory_space<vmem>>, vector<4x1x16xf32>
    tpu.vector_store %arg5[%c0_161, %c2_162, %c0_163], %142 {strides = array<i32>} : memref<4x26x16xf32, #tpu.memory_space<vmem>>, vector<4x1x16xf32>,
    %144 = vector.extract_strided_slice %129 {offsets = [0, 12, 0], sizes = [4, 1, 16], strides = [1, 1, 1]} : vector<4x16x16xf32> to vector<4x1x16xf32>
    %c0_164 = arith.constant 0 : index
    %c23_165 = arith.constant 23 : index
    %c0_166 = arith.constant 0 : index
    %145 = vector.load %arg5[%c0_164, %c23_165, %c0_166] : memref<4x26x16xf32, #tpu.memory_space<vmem>>, vector<4x1x16xf32>
    tpu.vector_store %arg5[%c0_164, %c23_165, %c0_166], %144 {strides = array<i32>} : memref<4x26x16xf32, #tpu.memory_space<vmem>>, vector<4x1x16xf32>,
    %146 = vector.extract_strided_slice %129 {offsets = [0, 4, 0], sizes = [4, 1, 16], strides = [1, 1, 1]} : vector<4x16x16xf32> to vector<4x1x16xf32>
    %c0_167 = arith.constant 0 : index
    %c1_168 = arith.constant 1 : index
    %c0_169 = arith.constant 0 : index
    %147 = vector.load %arg5[%c0_167, %c1_168, %c0_169] : memref<4x26x16xf32, #tpu.memory_space<vmem>>, vector<4x1x16xf32>
    tpu.vector_store %arg5[%c0_167, %c1_168, %c0_169], %146 {strides = array<i32>} : memref<4x26x16xf32, #tpu.memory_space<vmem>>, vector<4x1x16xf32>,
    %148 = vector.extract_strided_slice %129 {offsets = [0, 11, 0], sizes = [4, 1, 16], strides = [1, 1, 1]} : vector<4x16x16xf32> to vector<4x1x16xf32>
    %c0_170 = arith.constant 0 : index
    %c24_171 = arith.constant 24 : index
    %c0_172 = arith.constant 0 : index
    %149 = vector.load %arg5[%c0_170, %c24_171, %c0_172] : memref<4x26x16xf32, #tpu.memory_space<vmem>>, vector<4x1x16xf32>
    tpu.vector_store %arg5[%c0_170, %c24_171, %c0_172], %148 {strides = array<i32>} : memref<4x26x16xf32, #tpu.memory_space<vmem>>, vector<4x1x16xf32>,
    %150 = vector.extract_strided_slice %129 {offsets = [0, 5, 0], sizes = [4, 1, 16], strides = [1, 1, 1]} : vector<4x16x16xf32> to vector<4x1x16xf32>
    %c0_173 = arith.constant 0 : index
    %c0_174 = arith.constant 0 : index
    %c0_175 = arith.constant 0 : index
    %151 = vector.load %arg5[%c0_173, %c0_174, %c0_175] : memref<4x26x16xf32, #tpu.memory_space<vmem>>, vector<4x1x16xf32>
    tpu.vector_store %arg5[%c0_173, %c0_174, %c0_175], %150 {strides = array<i32>} : memref<4x26x16xf32, #tpu.memory_space<vmem>>, vector<4x1x16xf32>,
    %152 = vector.extract_strided_slice %129 {offsets = [0, 10, 0], sizes = [4, 1, 16], strides = [1, 1, 1]} : vector<4x16x16xf32> to vector<4x1x16xf32>
    %c0_176 = arith.constant 0 : index
    %c25_177 = arith.constant 25 : index
    %c0_178 = arith.constant 0 : index
    %153 = vector.load %arg5[%c0_176, %c25_177, %c0_178] : memref<4x26x16xf32, #tpu.memory_space<vmem>>, vector<4x1x16xf32>
    tpu.vector_store %arg5[%c0_176, %c25_177, %c0_178], %152 {strides = array<i32>} : memref<4x26x16xf32, #tpu.memory_space<vmem>>, vector<4x1x16xf32>,
    %c0_179 = arith.constant 0 : index
    %c0_180 = arith.constant 0 : index
    %c0_181 = arith.constant 0 : index
    %154 = vector.load %arg5[%c0_179, %c0_180, %c0_181] : memref<4x26x16xf32, #tpu.memory_space<vmem>>, vector<4x16x16xf32>
    %cst_182 = arith.constant 7.98401161E-5 : f32
    %155 = vector.broadcast %cst_182 : f32 to vector<4x16x16xf32>
    %156 = arith.mulf %155, %154 : vector<4x16x16xf32>
    %c0_183 = arith.constant 0 : index
    %c1_184 = arith.constant 1 : index
    %c0_185 = arith.constant 0 : index
    %157 = vector.load %arg5[%c0_183, %c1_184, %c0_185] : memref<4x26x16xf32, #tpu.memory_space<vmem>>, vector<4x16x16xf32>
    %cst_186 = arith.constant 0.00159168954 : f32
    %158 = vector.broadcast %cst_186 : f32 to vector<4x16x16xf32>
    %159 = arith.mulf %158, %157 : vector<4x16x16xf32>
    %160 = arith.addf %156, %159 : vector<4x16x16xf32>
    %c0_187 = arith.constant 0 : index
    %c2_188 = arith.constant 2 : index
    %c0_189 = arith.constant 0 : index
    %161 = vector.load %arg5[%c0_187, %c2_188, %c0_189] : memref<4x26x16xf32, #tpu.memory_space<vmem>>, vector<4x16x16xf32>
    %cst_190 = arith.constant 0.0163187664 : f32
    %162 = vector.broadcast %cst_190 : f32 to vector<4x16x16xf32>
    %163 = arith.mulf %162, %161 : vector<4x16x16xf32>
    %164 = arith.addf %160, %163 : vector<4x16x16xf32>
    %c0_191 = arith.constant 0 : index
    %c3_192 = arith.constant 3 : index
    %c0_193 = arith.constant 0 : index
    %165 = vector.load %arg5[%c0_191, %c3_192, %c0_193] : memref<4x26x16xf32, #tpu.memory_space<vmem>>, vector<4x16x16xf32>
    %cst_194 = arith.constant 8.604150e-02 : f32
    %166 = vector.broadcast %cst_194 : f32 to vector<4x16x16xf32>
    %167 = arith.mulf %166, %165 : vector<4x16x16xf32>
    %168 = arith.addf %164, %167 : vector<4x16x16xf32>
    %c0_195 = arith.constant 0 : index
    %c4_196 = arith.constant 4 : index
    %c0_197 = arith.constant 0 : index
    %169 = vector.load %arg5[%c0_195, %c4_196, %c0_197] : memref<4x26x16xf32, #tpu.memory_space<vmem>>, vector<4x16x16xf32>
    %cst_198 = arith.constant 0.23330304 : f32
    %170 = vector.broadcast %cst_198 : f32 to vector<4x16x16xf32>
    %171 = arith.mulf %170, %169 : vector<4x16x16xf32>
    %172 = arith.addf %168, %171 : vector<4x16x16xf32>
    %c0_199 = arith.constant 0 : index
    %c5_200 = arith.constant 5 : index
    %c0_201 = arith.constant 0 : index
    %173 = vector.load %arg5[%c0_199, %c5_200, %c0_201] : memref<4x26x16xf32, #tpu.memory_space<vmem>>, vector<4x16x16xf32>
    %cst_202 = arith.constant 0.325330317 : f32
    %174 = vector.broadcast %cst_202 : f32 to vector<4x16x16xf32>
    %175 = arith.mulf %174, %173 : vector<4x16x16xf32>
    %176 = arith.addf %172, %175 : vector<4x16x16xf32>
    %c0_203 = arith.constant 0 : index
    %c6_204 = arith.constant 6 : index
    %c0_205 = arith.constant 0 : index
    %177 = vector.load %arg5[%c0_203, %c6_204, %c0_205] : memref<4x26x16xf32, #tpu.memory_space<vmem>>, vector<4x16x16xf32>
    %cst_206 = arith.constant 0.23330304 : f32
    %178 = vector.broadcast %cst_206 : f32 to vector<4x16x16xf32>
    %179 = arith.mulf %178, %177 : vector<4x16x16xf32>
    %180 = arith.addf %176, %179 : vector<4x16x16xf32>
    %c0_207 = arith.constant 0 : index
    %c7_208 = arith.constant 7 : index
    %c0_209 = arith.constant 0 : index
    %181 = vector.load %arg5[%c0_207, %c7_208, %c0_209] : memref<4x26x16xf32, #tpu.memory_space<vmem>>, vector<4x16x16xf32>
    %cst_210 = arith.constant 8.604150e-02 : f32
    %182 = vector.broadcast %cst_210 : f32 to vector<4x16x16xf32>
    %183 = arith.mulf %182, %181 : vector<4x16x16xf32>
    %184 = arith.addf %180, %183 : vector<4x16x16xf32>
    %c0_211 = arith.constant 0 : index
    %c8_212 = arith.constant 8 : index
    %c0_213 = arith.constant 0 : index
    %185 = vector.load %arg5[%c0_211, %c8_212, %c0_213] : memref<4x26x16xf32, #tpu.memory_space<vmem>>, vector<4x16x16xf32>
    %cst_214 = arith.constant 0.0163187664 : f32
    %186 = vector.broadcast %cst_214 : f32 to vector<4x16x16xf32>
    %187 = arith.mulf %186, %185 : vector<4x16x16xf32>
    %188 = arith.addf %184, %187 : vector<4x16x16xf32>
    %c0_215 = arith.constant 0 : index
    %c9_216 = arith.constant 9 : index
    %c0_217 = arith.constant 0 : index
    %189 = vector.load %arg5[%c0_215, %c9_216, %c0_217] : memref<4x26x16xf32, #tpu.memory_space<vmem>>, vector<4x16x16xf32>
    %cst_218 = arith.constant 0.00159168954 : f32
    %190 = vector.broadcast %cst_218 : f32 to vector<4x16x16xf32>
    %191 = arith.mulf %190, %189 : vector<4x16x16xf32>
    %192 = arith.addf %188, %191 : vector<4x16x16xf32>
    %c0_219 = arith.constant 0 : index
    %c10_220 = arith.constant 10 : index
    %c0_221 = arith.constant 0 : index
    %193 = vector.load %arg5[%c0_219, %c10_220, %c0_221] : memref<4x26x16xf32, #tpu.memory_space<vmem>>, vector<4x16x16xf32>
    %cst_222 = arith.constant 7.98401161E-5 : f32
    %194 = vector.broadcast %cst_222 : f32 to vector<4x16x16xf32>
    %195 = arith.mulf %194, %193 : vector<4x16x16xf32>
    %196 = arith.addf %192, %195 : vector<4x16x16xf32>
    %c0_223 = arith.constant 0 : index
    %c0_224 = arith.constant 0 : index
    %c5_225 = arith.constant 5 : index
    %197 = vector.load %arg6[%c0_223, %c0_224, %c5_225] : memref<4x16x26xf32, #tpu.memory_space<vmem>>, vector<4x16x16xf32>
    tpu.vector_store %arg6[%c0_223, %c0_224, %c5_225], %196 {strides = array<i32>} : memref<4x16x26xf32, #tpu.memory_space<vmem>>, vector<4x16x16xf32>,
    %198 = vector.extract_strided_slice %196 {offsets = [0, 0, 1], sizes = [4, 16, 1], strides = [1, 1, 1]} : vector<4x16x16xf32> to vector<4x16x1xf32>
    %c0_226 = arith.constant 0 : index
    %c0_227 = arith.constant 0 : index
    %c4_228 = arith.constant 4 : index
    %199 = vector.load %arg6[%c0_226, %c0_227, %c4_228] : memref<4x16x26xf32, #tpu.memory_space<vmem>>, vector<4x16x1xf32>
    tpu.vector_store %arg6[%c0_226, %c0_227, %c4_228], %198 {strides = array<i32>} : memref<4x16x26xf32, #tpu.memory_space<vmem>>, vector<4x16x1xf32>,
    %200 = vector.extract_strided_slice %196 {offsets = [0, 0, 14], sizes = [4, 16, 1], strides = [1, 1, 1]} : vector<4x16x16xf32> to vector<4x16x1xf32>
    %c0_229 = arith.constant 0 : index
    %c0_230 = arith.constant 0 : index
    %c21_231 = arith.constant 21 : index
    %201 = vector.load %arg6[%c0_229, %c0_230, %c21_231] : memref<4x16x26xf32, #tpu.memory_space<vmem>>, vector<4x16x1xf32>
    tpu.vector_store %arg6[%c0_229, %c0_230, %c21_231], %200 {strides = array<i32>} : memref<4x16x26xf32, #tpu.memory_space<vmem>>, vector<4x16x1xf32>,
    %202 = vector.extract_strided_slice %196 {offsets = [0, 0, 2], sizes = [4, 16, 1], strides = [1, 1, 1]} : vector<4x16x16xf32> to vector<4x16x1xf32>
    %c0_232 = arith.constant 0 : index
    %c0_233 = arith.constant 0 : index
    %c3_234 = arith.constant 3 : index
    %203 = vector.load %arg6[%c0_232, %c0_233, %c3_234] : memref<4x16x26xf32, #tpu.memory_space<vmem>>, vector<4x16x1xf32>
    tpu.vector_store %arg6[%c0_232, %c0_233, %c3_234], %202 {strides = array<i32>} : memref<4x16x26xf32, #tpu.memory_space<vmem>>, vector<4x16x1xf32>,
    %204 = vector.extract_strided_slice %196 {offsets = [0, 0, 13], sizes = [4, 16, 1], strides = [1, 1, 1]} : vector<4x16x16xf32> to vector<4x16x1xf32>
    %c0_235 = arith.constant 0 : index
    %c0_236 = arith.constant 0 : index
    %c22_237 = arith.constant 22 : index
    %205 = vector.load %arg6[%c0_235, %c0_236, %c22_237] : memref<4x16x26xf32, #tpu.memory_space<vmem>>, vector<4x16x1xf32>
    tpu.vector_store %arg6[%c0_235, %c0_236, %c22_237], %204 {strides = array<i32>} : memref<4x16x26xf32, #tpu.memory_space<vmem>>, vector<4x16x1xf32>,
    %206 = vector.extract_strided_slice %196 {offsets = [0, 0, 3], sizes = [4, 16, 1], strides = [1, 1, 1]} : vector<4x16x16xf32> to vector<4x16x1xf32>
    %c0_238 = arith.constant 0 : index
    %c0_239 = arith.constant 0 : index
    %c2_240 = arith.constant 2 : index
    %207 = vector.load %arg6[%c0_238, %c0_239, %c2_240] : memref<4x16x26xf32, #tpu.memory_space<vmem>>, vector<4x16x1xf32>
    tpu.vector_store %arg6[%c0_238, %c0_239, %c2_240], %206 {strides = array<i32>} : memref<4x16x26xf32, #tpu.memory_space<vmem>>, vector<4x16x1xf32>,
    %208 = vector.extract_strided_slice %196 {offsets = [0, 0, 12], sizes = [4, 16, 1], strides = [1, 1, 1]} : vector<4x16x16xf32> to vector<4x16x1xf32>
    %c0_241 = arith.constant 0 : index
    %c0_242 = arith.constant 0 : index
    %c23_243 = arith.constant 23 : index
    %209 = vector.load %arg6[%c0_241, %c0_242, %c23_243] : memref<4x16x26xf32, #tpu.memory_space<vmem>>, vector<4x16x1xf32>
    tpu.vector_store %arg6[%c0_241, %c0_242, %c23_243], %208 {strides = array<i32>} : memref<4x16x26xf32, #tpu.memory_space<vmem>>, vector<4x16x1xf32>,
    %210 = vector.extract_strided_slice %196 {offsets = [0, 0, 4], sizes = [4, 16, 1], strides = [1, 1, 1]} : vector<4x16x16xf32> to vector<4x16x1xf32>
    %c0_244 = arith.constant 0 : index
    %c0_245 = arith.constant 0 : index
    %c1_246 = arith.constant 1 : index
    %211 = vector.load %arg6[%c0_244, %c0_245, %c1_246] : memref<4x16x26xf32, #tpu.memory_space<vmem>>, vector<4x16x1xf32>
    tpu.vector_store %arg6[%c0_244, %c0_245, %c1_246], %210 {strides = array<i32>} : memref<4x16x26xf32, #tpu.memory_space<vmem>>, vector<4x16x1xf32>,
    %212 = vector.extract_strided_slice %196 {offsets = [0, 0, 11], sizes = [4, 16, 1], strides = [1, 1, 1]} : vector<4x16x16xf32> to vector<4x16x1xf32>
    %c0_247 = arith.constant 0 : index
    %c0_248 = arith.constant 0 : index
    %c24_249 = arith.constant 24 : index
    %213 = vector.load %arg6[%c0_247, %c0_248, %c24_249] : memref<4x16x26xf32, #tpu.memory_space<vmem>>, vector<4x16x1xf32>
    tpu.vector_store %arg6[%c0_247, %c0_248, %c24_249], %212 {strides = array<i32>} : memref<4x16x26xf32, #tpu.memory_space<vmem>>, vector<4x16x1xf32>,
    %214 = vector.extract_strided_slice %196 {offsets = [0, 0, 5], sizes = [4, 16, 1], strides = [1, 1, 1]} : vector<4x16x16xf32> to vector<4x16x1xf32>
    %c0_250 = arith.constant 0 : index
    %c0_251 = arith.constant 0 : index
    %c0_252 = arith.constant 0 : index
    %215 = vector.load %arg6[%c0_250, %c0_251, %c0_252] : memref<4x16x26xf32, #tpu.memory_space<vmem>>, vector<4x16x1xf32>
    tpu.vector_store %arg6[%c0_250, %c0_251, %c0_252], %214 {strides = array<i32>} : memref<4x16x26xf32, #tpu.memory_space<vmem>>, vector<4x16x1xf32>,
    %216 = vector.extract_strided_slice %196 {offsets = [0, 0, 10], sizes = [4, 16, 1], strides = [1, 1, 1]} : vector<4x16x16xf32> to vector<4x16x1xf32>
    %c0_253 = arith.constant 0 : index
    %c0_254 = arith.constant 0 : index
    %c25_255 = arith.constant 25 : index
    %217 = vector.load %arg6[%c0_253, %c0_254, %c25_255] : memref<4x16x26xf32, #tpu.memory_space<vmem>>, vector<4x16x1xf32>
    tpu.vector_store %arg6[%c0_253, %c0_254, %c25_255], %216 {strides = array<i32>} : memref<4x16x26xf32, #tpu.memory_space<vmem>>, vector<4x16x1xf32>,
    %c0_256 = arith.constant 0 : index
    %c0_257 = arith.constant 0 : index
    %c0_258 = arith.constant 0 : index
    %218 = vector.load %arg6[%c0_256, %c0_257, %c0_258] : memref<4x16x26xf32, #tpu.memory_space<vmem>>, vector<4x16x16xf32>
    %cst_259 = arith.constant 7.98401161E-5 : f32
    %219 = vector.broadcast %cst_259 : f32 to vector<4x16x16xf32>
    %220 = arith.mulf %219, %218 : vector<4x16x16xf32>
    %c0_260 = arith.constant 0 : index
    %c0_261 = arith.constant 0 : index
    %c1_262 = arith.constant 1 : index
    %221 = vector.load %arg6[%c0_260, %c0_261, %c1_262] : memref<4x16x26xf32, #tpu.memory_space<vmem>>, vector<4x16x16xf32>
    %cst_263 = arith.constant 0.00159168954 : f32
    %222 = vector.broadcast %cst_263 : f32 to vector<4x16x16xf32>
    %223 = arith.mulf %222, %221 : vector<4x16x16xf32>
    %224 = arith.addf %220, %223 : vector<4x16x16xf32>
    %c0_264 = arith.constant 0 : index
    %c0_265 = arith.constant 0 : index
    %c2_266 = arith.constant 2 : index
    %225 = vector.load %arg6[%c0_264, %c0_265, %c2_266] : memref<4x16x26xf32, #tpu.memory_space<vmem>>, vector<4x16x16xf32>
    %cst_267 = arith.constant 0.0163187664 : f32
    %226 = vector.broadcast %cst_267 : f32 to vector<4x16x16xf32>
    %227 = arith.mulf %226, %225 : vector<4x16x16xf32>
    %228 = arith.addf %224, %227 : vector<4x16x16xf32>
    %c0_268 = arith.constant 0 : index
    %c0_269 = arith.constant 0 : index
    %c3_270 = arith.constant 3 : index
    %229 = vector.load %arg6[%c0_268, %c0_269, %c3_270] : memref<4x16x26xf32, #tpu.memory_space<vmem>>, vector<4x16x16xf32>
    %cst_271 = arith.constant 8.604150e-02 : f32
    %230 = vector.broadcast %cst_271 : f32 to vector<4x16x16xf32>
    %231 = arith.mulf %230, %229 : vector<4x16x16xf32>
    %232 = arith.addf %228, %231 : vector<4x16x16xf32>
    %c0_272 = arith.constant 0 : index
    %c0_273 = arith.constant 0 : index
    %c4_274 = arith.constant 4 : index
    %233 = vector.load %arg6[%c0_272, %c0_273, %c4_274] : memref<4x16x26xf32, #tpu.memory_space<vmem>>, vector<4x16x16xf32>
    %cst_275 = arith.constant 0.23330304 : f32
    %234 = vector.broadcast %cst_275 : f32 to vector<4x16x16xf32>
    %235 = arith.mulf %234, %233 : vector<4x16x16xf32>
    %236 = arith.addf %232, %235 : vector<4x16x16xf32>
    %c0_276 = arith.constant 0 : index
    %c0_277 = arith.constant 0 : index
    %c5_278 = arith.constant 5 : index
    %237 = vector.load %arg6[%c0_276, %c0_277, %c5_278] : memref<4x16x26xf32, #tpu.memory_space<vmem>>, vector<4x16x16xf32>
    %cst_279 = arith.constant 0.325330317 : f32
    %238 = vector.broadcast %cst_279 : f32 to vector<4x16x16xf32>
    %239 = arith.mulf %238, %237 : vector<4x16x16xf32>
    %240 = arith.addf %236, %239 : vector<4x16x16xf32>
    %c0_280 = arith.constant 0 : index
    %c0_281 = arith.constant 0 : index
    %c6_282 = arith.constant 6 : index
    %241 = vector.load %arg6[%c0_280, %c0_281, %c6_282] : memref<4x16x26xf32, #tpu.memory_space<vmem>>, vector<4x16x16xf32>
    %cst_283 = arith.constant 0.23330304 : f32
    %242 = vector.broadcast %cst_283 : f32 to vector<4x16x16xf32>
    %243 = arith.mulf %242, %241 : vector<4x16x16xf32>
    %244 = arith.addf %240, %243 : vector<4x16x16xf32>
    %c0_284 = arith.constant 0 : index
    %c0_285 = arith.constant 0 : index
    %c7_286 = arith.constant 7 : index
    %245 = vector.load %arg6[%c0_284, %c0_285, %c7_286] : memref<4x16x26xf32, #tpu.memory_space<vmem>>, vector<4x16x16xf32>
    %cst_287 = arith.constant 8.604150e-02 : f32
    %246 = vector.broadcast %cst_287 : f32 to vector<4x16x16xf32>
    %247 = arith.mulf %246, %245 : vector<4x16x16xf32>
    %248 = arith.addf %244, %247 : vector<4x16x16xf32>
    %c0_288 = arith.constant 0 : index
    %c0_289 = arith.constant 0 : index
    %c8_290 = arith.constant 8 : index
    %249 = vector.load %arg6[%c0_288, %c0_289, %c8_290] : memref<4x16x26xf32, #tpu.memory_space<vmem>>, vector<4x16x16xf32>
    %cst_291 = arith.constant 0.0163187664 : f32
    %250 = vector.broadcast %cst_291 : f32 to vector<4x16x16xf32>
    %251 = arith.mulf %250, %249 : vector<4x16x16xf32>
    %252 = arith.addf %248, %251 : vector<4x16x16xf32>
    %c0_292 = arith.constant 0 : index
    %c0_293 = arith.constant 0 : index
    %c9_294 = arith.constant 9 : index
    %253 = vector.load %arg6[%c0_292, %c0_293, %c9_294] : memref<4x16x26xf32, #tpu.memory_space<vmem>>, vector<4x16x16xf32>
    %cst_295 = arith.constant 0.00159168954 : f32
    %254 = vector.broadcast %cst_295 : f32 to vector<4x16x16xf32>
    %255 = arith.mulf %254, %253 : vector<4x16x16xf32>
    %256 = arith.addf %252, %255 : vector<4x16x16xf32>
    %c0_296 = arith.constant 0 : index
    %c0_297 = arith.constant 0 : index
    %c10_298 = arith.constant 10 : index
    %257 = vector.load %arg6[%c0_296, %c0_297, %c10_298] : memref<4x16x26xf32, #tpu.memory_space<vmem>>, vector<4x16x16xf32>
    %cst_299 = arith.constant 7.98401161E-5 : f32
    %258 = vector.broadcast %cst_299 : f32 to vector<4x16x16xf32>
    %259 = arith.mulf %258, %257 : vector<4x16x16xf32>
    %260 = arith.addf %256, %259 : vector<4x16x16xf32>
    %c0_300 = arith.constant 0 : index
    %c1_301 = arith.constant 1 : index
    %c0_302 = arith.constant 0 : index
    %c0_303 = arith.constant 0 : index
    %c0_304 = arith.constant 0 : index
    %261 = vector.load %arg3[%c0_300, %c1_301, %c0_302, %c0_303, %c0_304] : memref<1x3x4x16x16xf32, #tpu.memory_space<vmem>>, vector<1x1x4x16x16xf32>
    %262 = vector.shape_cast %261 : vector<1x1x4x16x16xf32> to vector<4x16x16xf32>
    %263 = vector.shape_cast %260 : vector<4x16x16xf32> to vector<1x1x4x16x16xf32>
    tpu.vector_store %arg3[%c0_300, %c1_301, %c0_302, %c0_303, %c0_304], %263 {strides = array<i32>} : memref<1x3x4x16x16xf32, #tpu.memory_space<vmem>>, vector<1x1x4x16x16xf32>,
    %c0_305 = arith.constant 0 : index
    %c5_306 = arith.constant 5 : index
    %c0_307 = arith.constant 0 : index
    %264 = vector.load %arg5[%c0_305, %c5_306, %c0_307] : memref<4x26x16xf32, #tpu.memory_space<vmem>>, vector<4x16x16xf32>
    tpu.vector_store %arg5[%c0_305, %c5_306, %c0_307], %260 {strides = array<i32>} : memref<4x26x16xf32, #tpu.memory_space<vmem>>, vector<4x16x16xf32>,
    %265 = vector.extract_strided_slice %260 {offsets = [0, 1, 0], sizes = [4, 1, 16], strides = [1, 1, 1]} : vector<4x16x16xf32> to vector<4x1x16xf32>
    %c0_308 = arith.constant 0 : index
    %c4_309 = arith.constant 4 : index
    %c0_310 = arith.constant 0 : index
    %266 = vector.load %arg5[%c0_308, %c4_309, %c0_310] : memref<4x26x16xf32, #tpu.memory_space<vmem>>, vector<4x1x16xf32>
    tpu.vector_store %arg5[%c0_308, %c4_309, %c0_310], %265 {strides = array<i32>} : memref<4x26x16xf32, #tpu.memory_space<vmem>>, vector<4x1x16xf32>,
    %267 = vector.extract_strided_slice %260 {offsets = [0, 14, 0], sizes = [4, 1, 16], strides = [1, 1, 1]} : vector<4x16x16xf32> to vector<4x1x16xf32>
    %c0_311 = arith.constant 0 : index
    %c21_312 = arith.constant 21 : index
    %c0_313 = arith.constant 0 : index
    %268 = vector.load %arg5[%c0_311, %c21_312, %c0_313] : memref<4x26x16xf32, #tpu.memory_space<vmem>>, vector<4x1x16xf32>
    tpu.vector_store %arg5[%c0_311, %c21_312, %c0_313], %267 {strides = array<i32>} : memref<4x26x16xf32, #tpu.memory_space<vmem>>, vector<4x1x16xf32>,
    %269 = vector.extract_strided_slice %260 {offsets = [0, 2, 0], sizes = [4, 1, 16], strides = [1, 1, 1]} : vector<4x16x16xf32> to vector<4x1x16xf32>
    %c0_314 = arith.constant 0 : index
    %c3_315 = arith.constant 3 : index
    %c0_316 = arith.constant 0 : index
    %270 = vector.load %arg5[%c0_314, %c3_315, %c0_316] : memref<4x26x16xf32, #tpu.memory_space<vmem>>, vector<4x1x16xf32>
    tpu.vector_store %arg5[%c0_314, %c3_315, %c0_316], %269 {strides = array<i32>} : memref<4x26x16xf32, #tpu.memory_space<vmem>>, vector<4x1x16xf32>,
    %271 = vector.extract_strided_slice %260 {offsets = [0, 13, 0], sizes = [4, 1, 16], strides = [1, 1, 1]} : vector<4x16x16xf32> to vector<4x1x16xf32>
    %c0_317 = arith.constant 0 : index
    %c22_318 = arith.constant 22 : index
    %c0_319 = arith.constant 0 : index
    %272 = vector.load %arg5[%c0_317, %c22_318, %c0_319] : memref<4x26x16xf32, #tpu.memory_space<vmem>>, vector<4x1x16xf32>
    tpu.vector_store %arg5[%c0_317, %c22_318, %c0_319], %271 {strides = array<i32>} : memref<4x26x16xf32, #tpu.memory_space<vmem>>, vector<4x1x16xf32>,
    %273 = vector.extract_strided_slice %260 {offsets = [0, 3, 0], sizes = [4, 1, 16], strides = [1, 1, 1]} : vector<4x16x16xf32> to vector<4x1x16xf32>
    %c0_320 = arith.constant 0 : index
    %c2_321 = arith.constant 2 : index
    %c0_322 = arith.constant 0 : index
    %274 = vector.load %arg5[%c0_320, %c2_321, %c0_322] : memref<4x26x16xf32, #tpu.memory_space<vmem>>, vector<4x1x16xf32>
    tpu.vector_store %arg5[%c0_320, %c2_321, %c0_322], %273 {strides = array<i32>} : memref<4x26x16xf32, #tpu.memory_space<vmem>>, vector<4x1x16xf32>,
    %275 = vector.extract_strided_slice %260 {offsets = [0, 12, 0], sizes = [4, 1, 16], strides = [1, 1, 1]} : vector<4x16x16xf32> to vector<4x1x16xf32>
    %c0_323 = arith.constant 0 : index
    %c23_324 = arith.constant 23 : index
    %c0_325 = arith.constant 0 : index
    %276 = vector.load %arg5[%c0_323, %c23_324, %c0_325] : memref<4x26x16xf32, #tpu.memory_space<vmem>>, vector<4x1x16xf32>
    tpu.vector_store %arg5[%c0_323, %c23_324, %c0_325], %275 {strides = array<i32>} : memref<4x26x16xf32, #tpu.memory_space<vmem>>, vector<4x1x16xf32>,
    %277 = vector.extract_strided_slice %260 {offsets = [0, 4, 0], sizes = [4, 1, 16], strides = [1, 1, 1]} : vector<4x16x16xf32> to vector<4x1x16xf32>
    %c0_326 = arith.constant 0 : index
    %c1_327 = arith.constant 1 : index
    %c0_328 = arith.constant 0 : index
    %278 = vector.load %arg5[%c0_326, %c1_327, %c0_328] : memref<4x26x16xf32, #tpu.memory_space<vmem>>, vector<4x1x16xf32>
    tpu.vector_store %arg5[%c0_326, %c1_327, %c0_328], %277 {strides = array<i32>} : memref<4x26x16xf32, #tpu.memory_space<vmem>>, vector<4x1x16xf32>,
    %279 = vector.extract_strided_slice %260 {offsets = [0, 11, 0], sizes = [4, 1, 16], strides = [1, 1, 1]} : vector<4x16x16xf32> to vector<4x1x16xf32>
    %c0_329 = arith.constant 0 : index
    %c24_330 = arith.constant 24 : index
    %c0_331 = arith.constant 0 : index
    %280 = vector.load %arg5[%c0_329, %c24_330, %c0_331] : memref<4x26x16xf32, #tpu.memory_space<vmem>>, vector<4x1x16xf32>
    tpu.vector_store %arg5[%c0_329, %c24_330, %c0_331], %279 {strides = array<i32>} : memref<4x26x16xf32, #tpu.memory_space<vmem>>, vector<4x1x16xf32>,
    %281 = vector.extract_strided_slice %260 {offsets = [0, 5, 0], sizes = [4, 1, 16], strides = [1, 1, 1]} : vector<4x16x16xf32> to vector<4x1x16xf32>
    %c0_332 = arith.constant 0 : index
    %c0_333 = arith.constant 0 : index
    %c0_334 = arith.constant 0 : index
    %282 = vector.load %arg5[%c0_332, %c0_333, %c0_334] : memref<4x26x16xf32, #tpu.memory_space<vmem>>, vector<4x1x16xf32>
    tpu.vector_store %arg5[%c0_332, %c0_333, %c0_334], %281 {strides = array<i32>} : memref<4x26x16xf32, #tpu.memory_space<vmem>>, vector<4x1x16xf32>,
    %283 = vector.extract_strided_slice %260 {offsets = [0, 10, 0], sizes = [4, 1, 16], strides = [1, 1, 1]} : vector<4x16x16xf32> to vector<4x1x16xf32>
    %c0_335 = arith.constant 0 : index
    %c25_336 = arith.constant 25 : index
    %c0_337 = arith.constant 0 : index
    %284 = vector.load %arg5[%c0_335, %c25_336, %c0_337] : memref<4x26x16xf32, #tpu.memory_space<vmem>>, vector<4x1x16xf32>
    tpu.vector_store %arg5[%c0_335, %c25_336, %c0_337], %283 {strides = array<i32>} : memref<4x26x16xf32, #tpu.memory_space<vmem>>, vector<4x1x16xf32>,
    %c0_338 = arith.constant 0 : index
    %c0_339 = arith.constant 0 : index
    %c0_340 = arith.constant 0 : index
    %285 = vector.load %arg5[%c0_338, %c0_339, %c0_340] : memref<4x26x16xf32, #tpu.memory_space<vmem>>, vector<4x16x16xf32>
    %cst_341 = arith.constant 0.00137367519 : f32
    %286 = vector.broadcast %cst_341 : f32 to vector<4x16x16xf32>
    %287 = arith.mulf %286, %285 : vector<4x16x16xf32>
    %c0_342 = arith.constant 0 : index
    %c1_343 = arith.constant 1 : index
    %c0_344 = arith.constant 0 : index
    %288 = vector.load %arg5[%c0_342, %c1_343, %c0_344] : memref<4x26x16xf32, #tpu.memory_space<vmem>>, vector<4x16x16xf32>
    %cst_345 = arith.constant 0.00904907566 : f32
    %289 = vector.broadcast %cst_345 : f32 to vector<4x16x16xf32>
    %290 = arith.mulf %289, %288 : vector<4x16x16xf32>
    %291 = arith.addf %287, %290 : vector<4x16x16xf32>
    %c0_346 = arith.constant 0 : index
    %c2_347 = arith.constant 2 : index
    %c0_348 = arith.constant 0 : index
    %292 = vector.load %arg5[%c0_346, %c2_347, %c0_348] : memref<4x26x16xf32, #tpu.memory_space<vmem>>, vector<4x16x16xf32>
    %cst_349 = arith.constant 0.0392090678 : f32
    %293 = vector.broadcast %cst_349 : f32 to vector<4x16x16xf32>
    %294 = arith.mulf %293, %292 : vector<4x16x16xf32>
    %295 = arith.addf %291, %294 : vector<4x16x16xf32>
    %c0_350 = arith.constant 0 : index
    %c3_351 = arith.constant 3 : index
    %c0_352 = arith.constant 0 : index
    %296 = vector.load %arg5[%c0_350, %c3_351, %c0_352] : memref<4x26x16xf32, #tpu.memory_space<vmem>>, vector<4x16x16xf32>
    %cst_353 = arith.constant 0.11174576 : f32
    %297 = vector.broadcast %cst_353 : f32 to vector<4x16x16xf32>
    %298 = arith.mulf %297, %296 : vector<4x16x16xf32>
    %299 = arith.addf %295, %298 : vector<4x16x16xf32>
    %c0_354 = arith.constant 0 : index
    %c4_355 = arith.constant 4 : index
    %c0_356 = arith.constant 0 : index
    %300 = vector.load %arg5[%c0_354, %c4_355, %c0_356] : memref<4x26x16xf32, #tpu.memory_space<vmem>>, vector<4x16x16xf32>
    %cst_357 = arith.constant 0.209477693 : f32
    %301 = vector.broadcast %cst_357 : f32 to vector<4x16x16xf32>
    %302 = arith.mulf %301, %300 : vector<4x16x16xf32>
    %303 = arith.addf %299, %302 : vector<4x16x16xf32>
    %c0_358 = arith.constant 0 : index
    %c5_359 = arith.constant 5 : index
    %c0_360 = arith.constant 0 : index
    %304 = vector.load %arg5[%c0_358, %c5_359, %c0_360] : memref<4x26x16xf32, #tpu.memory_space<vmem>>, vector<4x16x16xf32>
    %cst_361 = arith.constant 0.258289456 : f32
    %305 = vector.broadcast %cst_361 : f32 to vector<4x16x16xf32>
    %306 = arith.mulf %305, %304 : vector<4x16x16xf32>
    %307 = arith.addf %303, %306 : vector<4x16x16xf32>
    %c0_362 = arith.constant 0 : index
    %c6_363 = arith.constant 6 : index
    %c0_364 = arith.constant 0 : index
    %308 = vector.load %arg5[%c0_362, %c6_363, %c0_364] : memref<4x26x16xf32, #tpu.memory_space<vmem>>, vector<4x16x16xf32>
    %cst_365 = arith.constant 0.209477693 : f32
    %309 = vector.broadcast %cst_365 : f32 to vector<4x16x16xf32>
    %310 = arith.mulf %309, %308 : vector<4x16x16xf32>
    %311 = arith.addf %307, %310 : vector<4x16x16xf32>
    %c0_366 = arith.constant 0 : index
    %c7_367 = arith.constant 7 : index
    %c0_368 = arith.constant 0 : index
    %312 = vector.load %arg5[%c0_366, %c7_367, %c0_368] : memref<4x26x16xf32, #tpu.memory_space<vmem>>, vector<4x16x16xf32>
    %cst_369 = arith.constant 0.11174576 : f32
    %313 = vector.broadcast %cst_369 : f32 to vector<4x16x16xf32>
    %314 = arith.mulf %313, %312 : vector<4x16x16xf32>
    %315 = arith.addf %311, %314 : vector<4x16x16xf32>
    %c0_370 = arith.constant 0 : index
    %c8_371 = arith.constant 8 : index
    %c0_372 = arith.constant 0 : index
    %316 = vector.load %arg5[%c0_370, %c8_371, %c0_372] : memref<4x26x16xf32, #tpu.memory_space<vmem>>, vector<4x16x16xf32>
    %cst_373 = arith.constant 0.0392090678 : f32
    %317 = vector.broadcast %cst_373 : f32 to vector<4x16x16xf32>
    %318 = arith.mulf %317, %316 : vector<4x16x16xf32>
    %319 = arith.addf %315, %318 : vector<4x16x16xf32>
    %c0_374 = arith.constant 0 : index
    %c9_375 = arith.constant 9 : index
    %c0_376 = arith.constant 0 : index
    %320 = vector.load %arg5[%c0_374, %c9_375, %c0_376] : memref<4x26x16xf32, #tpu.memory_space<vmem>>, vector<4x16x16xf32>
    %cst_377 = arith.constant 0.00904907566 : f32
    %321 = vector.broadcast %cst_377 : f32 to vector<4x16x16xf32>
    %322 = arith.mulf %321, %320 : vector<4x16x16xf32>
    %323 = arith.addf %319, %322 : vector<4x16x16xf32>
    %c0_378 = arith.constant 0 : index
    %c10_379 = arith.constant 10 : index
    %c0_380 = arith.constant 0 : index
    %324 = vector.load %arg5[%c0_378, %c10_379, %c0_380] : memref<4x26x16xf32, #tpu.memory_space<vmem>>, vector<4x16x16xf32>
    %cst_381 = arith.constant 0.00137367519 : f32
    %325 = vector.broadcast %cst_381 : f32 to vector<4x16x16xf32>
    %326 = arith.mulf %325, %324 : vector<4x16x16xf32>
    %327 = arith.addf %323, %326 : vector<4x16x16xf32>
    %c0_382 = arith.constant 0 : index
    %c0_383 = arith.constant 0 : index
    %c5_384 = arith.constant 5 : index
    %328 = vector.load %arg6[%c0_382, %c0_383, %c5_384] : memref<4x16x26xf32, #tpu.memory_space<vmem>>, vector<4x16x16xf32>
    tpu.vector_store %arg6[%c0_382, %c0_383, %c5_384], %327 {strides = array<i32>} : memref<4x16x26xf32, #tpu.memory_space<vmem>>, vector<4x16x16xf32>,
    %329 = vector.extract_strided_slice %327 {offsets = [0, 0, 1], sizes = [4, 16, 1], strides = [1, 1, 1]} : vector<4x16x16xf32> to vector<4x16x1xf32>
    %c0_385 = arith.constant 0 : index
    %c0_386 = arith.constant 0 : index
    %c4_387 = arith.constant 4 : index
    %330 = vector.load %arg6[%c0_385, %c0_386, %c4_387] : memref<4x16x26xf32, #tpu.memory_space<vmem>>, vector<4x16x1xf32>
    tpu.vector_store %arg6[%c0_385, %c0_386, %c4_387], %329 {strides = array<i32>} : memref<4x16x26xf32, #tpu.memory_space<vmem>>, vector<4x16x1xf32>,
    %331 = vector.extract_strided_slice %327 {offsets = [0, 0, 14], sizes = [4, 16, 1], strides = [1, 1, 1]} : vector<4x16x16xf32> to vector<4x16x1xf32>
    %c0_388 = arith.constant 0 : index
    %c0_389 = arith.constant 0 : index
    %c21_390 = arith.constant 21 : index
    %332 = vector.load %arg6[%c0_388, %c0_389, %c21_390] : memref<4x16x26xf32, #tpu.memory_space<vmem>>, vector<4x16x1xf32>
    tpu.vector_store %arg6[%c0_388, %c0_389, %c21_390], %331 {strides = array<i32>} : memref<4x16x26xf32, #tpu.memory_space<vmem>>, vector<4x16x1xf32>,
    %333 = vector.extract_strided_slice %327 {offsets = [0, 0, 2], sizes = [4, 16, 1], strides = [1, 1, 1]} : vector<4x16x16xf32> to vector<4x16x1xf32>
    %c0_391 = arith.constant 0 : index
    %c0_392 = arith.constant 0 : index
    %c3_393 = arith.constant 3 : index
    %334 = vector.load %arg6[%c0_391, %c0_392, %c3_393] : memref<4x16x26xf32, #tpu.memory_space<vmem>>, vector<4x16x1xf32>
    tpu.vector_store %arg6[%c0_391, %c0_392, %c3_393], %333 {strides = array<i32>} : memref<4x16x26xf32, #tpu.memory_space<vmem>>, vector<4x16x1xf32>,
    %335 = vector.extract_strided_slice %327 {offsets = [0, 0, 13], sizes = [4, 16, 1], strides = [1, 1, 1]} : vector<4x16x16xf32> to vector<4x16x1xf32>
    %c0_394 = arith.constant 0 : index
    %c0_395 = arith.constant 0 : index
    %c22_396 = arith.constant 22 : index
    %336 = vector.load %arg6[%c0_394, %c0_395, %c22_396] : memref<4x16x26xf32, #tpu.memory_space<vmem>>, vector<4x16x1xf32>
    tpu.vector_store %arg6[%c0_394, %c0_395, %c22_396], %335 {strides = array<i32>} : memref<4x16x26xf32, #tpu.memory_space<vmem>>, vector<4x16x1xf32>,
    %337 = vector.extract_strided_slice %327 {offsets = [0, 0, 3], sizes = [4, 16, 1], strides = [1, 1, 1]} : vector<4x16x16xf32> to vector<4x16x1xf32>
    %c0_397 = arith.constant 0 : index
    %c0_398 = arith.constant 0 : index
    %c2_399 = arith.constant 2 : index
    %338 = vector.load %arg6[%c0_397, %c0_398, %c2_399] : memref<4x16x26xf32, #tpu.memory_space<vmem>>, vector<4x16x1xf32>
    tpu.vector_store %arg6[%c0_397, %c0_398, %c2_399], %337 {strides = array<i32>} : memref<4x16x26xf32, #tpu.memory_space<vmem>>, vector<4x16x1xf32>,
    %339 = vector.extract_strided_slice %327 {offsets = [0, 0, 12], sizes = [4, 16, 1], strides = [1, 1, 1]} : vector<4x16x16xf32> to vector<4x16x1xf32>
    %c0_400 = arith.constant 0 : index
    %c0_401 = arith.constant 0 : index
    %c23_402 = arith.constant 23 : index
    %340 = vector.load %arg6[%c0_400, %c0_401, %c23_402] : memref<4x16x26xf32, #tpu.memory_space<vmem>>, vector<4x16x1xf32>
    tpu.vector_store %arg6[%c0_400, %c0_401, %c23_402], %339 {strides = array<i32>} : memref<4x16x26xf32, #tpu.memory_space<vmem>>, vector<4x16x1xf32>,
    %341 = vector.extract_strided_slice %327 {offsets = [0, 0, 4], sizes = [4, 16, 1], strides = [1, 1, 1]} : vector<4x16x16xf32> to vector<4x16x1xf32>
    %c0_403 = arith.constant 0 : index
    %c0_404 = arith.constant 0 : index
    %c1_405 = arith.constant 1 : index
    %342 = vector.load %arg6[%c0_403, %c0_404, %c1_405] : memref<4x16x26xf32, #tpu.memory_space<vmem>>, vector<4x16x1xf32>
    tpu.vector_store %arg6[%c0_403, %c0_404, %c1_405], %341 {strides = array<i32>} : memref<4x16x26xf32, #tpu.memory_space<vmem>>, vector<4x16x1xf32>,
    %343 = vector.extract_strided_slice %327 {offsets = [0, 0, 11], sizes = [4, 16, 1], strides = [1, 1, 1]} : vector<4x16x16xf32> to vector<4x16x1xf32>
    %c0_406 = arith.constant 0 : index
    %c0_407 = arith.constant 0 : index
    %c24_408 = arith.constant 24 : index
    %344 = vector.load %arg6[%c0_406, %c0_407, %c24_408] : memref<4x16x26xf32, #tpu.memory_space<vmem>>, vector<4x16x1xf32>
    tpu.vector_store %arg6[%c0_406, %c0_407, %c24_408], %343 {strides = array<i32>} : memref<4x16x26xf32, #tpu.memory_space<vmem>>, vector<4x16x1xf32>,
    %345 = vector.extract_strided_slice %327 {offsets = [0, 0, 5], sizes = [4, 16, 1], strides = [1, 1, 1]} : vector<4x16x16xf32> to vector<4x16x1xf32>
    %c0_409 = arith.constant 0 : index
    %c0_410 = arith.constant 0 : index
    %c0_411 = arith.constant 0 : index
    %346 = vector.load %arg6[%c0_409, %c0_410, %c0_411] : memref<4x16x26xf32, #tpu.memory_space<vmem>>, vector<4x16x1xf32>
    tpu.vector_store %arg6[%c0_409, %c0_410, %c0_411], %345 {strides = array<i32>} : memref<4x16x26xf32, #tpu.memory_space<vmem>>, vector<4x16x1xf32>,
    %347 = vector.extract_strided_slice %327 {offsets = [0, 0, 10], sizes = [4, 16, 1], strides = [1, 1, 1]} : vector<4x16x16xf32> to vector<4x16x1xf32>
    %c0_412 = arith.constant 0 : index
    %c0_413 = arith.constant 0 : index
    %c25_414 = arith.constant 25 : index
    %348 = vector.load %arg6[%c0_412, %c0_413, %c25_414] : memref<4x16x26xf32, #tpu.memory_space<vmem>>, vector<4x16x1xf32>
    tpu.vector_store %arg6[%c0_412, %c0_413, %c25_414], %347 {strides = array<i32>} : memref<4x16x26xf32, #tpu.memory_space<vmem>>, vector<4x16x1xf32>,
    %c0_415 = arith.constant 0 : index
    %c0_416 = arith.constant 0 : index
    %c0_417 = arith.constant 0 : index
    %349 = vector.load %arg6[%c0_415, %c0_416, %c0_417] : memref<4x16x26xf32, #tpu.memory_space<vmem>>, vector<4x16x16xf32>
    %cst_418 = arith.constant 0.00137367519 : f32
    %350 = vector.broadcast %cst_418 : f32 to vector<4x16x16xf32>
    %351 = arith.mulf %350, %349 : vector<4x16x16xf32>
    %c0_419 = arith.constant 0 : index
    %c0_420 = arith.constant 0 : index
    %c1_421 = arith.constant 1 : index
    %352 = vector.load %arg6[%c0_419, %c0_420, %c1_421] : memref<4x16x26xf32, #tpu.memory_space<vmem>>, vector<4x16x16xf32>
    %cst_422 = arith.constant 0.00904907566 : f32
    %353 = vector.broadcast %cst_422 : f32 to vector<4x16x16xf32>
    %354 = arith.mulf %353, %352 : vector<4x16x16xf32>
    %355 = arith.addf %351, %354 : vector<4x16x16xf32>
    %c0_423 = arith.constant 0 : index
    %c0_424 = arith.constant 0 : index
    %c2_425 = arith.constant 2 : index
    %356 = vector.load %arg6[%c0_423, %c0_424, %c2_425] : memref<4x16x26xf32, #tpu.memory_space<vmem>>, vector<4x16x16xf32>
    %cst_426 = arith.constant 0.0392090678 : f32
    %357 = vector.broadcast %cst_426 : f32 to vector<4x16x16xf32>
    %358 = arith.mulf %357, %356 : vector<4x16x16xf32>
    %359 = arith.addf %355, %358 : vector<4x16x16xf32>
    %c0_427 = arith.constant 0 : index
    %c0_428 = arith.constant 0 : index
    %c3_429 = arith.constant 3 : index
    %360 = vector.load %arg6[%c0_427, %c0_428, %c3_429] : memref<4x16x26xf32, #tpu.memory_space<vmem>>, vector<4x16x16xf32>
    %cst_430 = arith.constant 0.11174576 : f32
    %361 = vector.broadcast %cst_430 : f32 to vector<4x16x16xf32>
    %362 = arith.mulf %361, %360 : vector<4x16x16xf32>
    %363 = arith.addf %359, %362 : vector<4x16x16xf32>
    %c0_431 = arith.constant 0 : index
    %c0_432 = arith.constant 0 : index
    %c4_433 = arith.constant 4 : index
    %364 = vector.load %arg6[%c0_431, %c0_432, %c4_433] : memref<4x16x26xf32, #tpu.memory_space<vmem>>, vector<4x16x16xf32>
    %cst_434 = arith.constant 0.209477693 : f32
    %365 = vector.broadcast %cst_434 : f32 to vector<4x16x16xf32>
    %366 = arith.mulf %365, %364 : vector<4x16x16xf32>
    %367 = arith.addf %363, %366 : vector<4x16x16xf32>
    %c0_435 = arith.constant 0 : index
    %c0_436 = arith.constant 0 : index
    %c5_437 = arith.constant 5 : index
    %368 = vector.load %arg6[%c0_435, %c0_436, %c5_437] : memref<4x16x26xf32, #tpu.memory_space<vmem>>, vector<4x16x16xf32>
    %cst_438 = arith.constant 0.258289456 : f32
    %369 = vector.broadcast %cst_438 : f32 to vector<4x16x16xf32>
    %370 = arith.mulf %369, %368 : vector<4x16x16xf32>
    %371 = arith.addf %367, %370 : vector<4x16x16xf32>
    %c0_439 = arith.constant 0 : index
    %c0_440 = arith.constant 0 : index
    %c6_441 = arith.constant 6 : index
    %372 = vector.load %arg6[%c0_439, %c0_440, %c6_441] : memref<4x16x26xf32, #tpu.memory_space<vmem>>, vector<4x16x16xf32>
    %cst_442 = arith.constant 0.209477693 : f32
    %373 = vector.broadcast %cst_442 : f32 to vector<4x16x16xf32>
    %374 = arith.mulf %373, %372 : vector<4x16x16xf32>
    %375 = arith.addf %371, %374 : vector<4x16x16xf32>
    %c0_443 = arith.constant 0 : index
    %c0_444 = arith.constant 0 : index
    %c7_445 = arith.constant 7 : index
    %376 = vector.load %arg6[%c0_443, %c0_444, %c7_445] : memref<4x16x26xf32, #tpu.memory_space<vmem>>, vector<4x16x16xf32>
    %cst_446 = arith.constant 0.11174576 : f32
    %377 = vector.broadcast %cst_446 : f32 to vector<4x16x16xf32>
    %378 = arith.mulf %377, %376 : vector<4x16x16xf32>
    %379 = arith.addf %375, %378 : vector<4x16x16xf32>
    %c0_447 = arith.constant 0 : index
    %c0_448 = arith.constant 0 : index
    %c8_449 = arith.constant 8 : index
    %380 = vector.load %arg6[%c0_447, %c0_448, %c8_449] : memref<4x16x26xf32, #tpu.memory_space<vmem>>, vector<4x16x16xf32>
    %cst_450 = arith.constant 0.0392090678 : f32
    %381 = vector.broadcast %cst_450 : f32 to vector<4x16x16xf32>
    %382 = arith.mulf %381, %380 : vector<4x16x16xf32>
    %383 = arith.addf %379, %382 : vector<4x16x16xf32>
    %c0_451 = arith.constant 0 : index
    %c0_452 = arith.constant 0 : index
    %c9_453 = arith.constant 9 : index
    %384 = vector.load %arg6[%c0_451, %c0_452, %c9_453] : memref<4x16x26xf32, #tpu.memory_space<vmem>>, vector<4x16x16xf32>
    %cst_454 = arith.constant 0.00904907566 : f32
    %385 = vector.broadcast %cst_454 : f32 to vector<4x16x16xf32>
    %386 = arith.mulf %385, %384 : vector<4x16x16xf32>
    %387 = arith.addf %383, %386 : vector<4x16x16xf32>
    %c0_455 = arith.constant 0 : index
    %c0_456 = arith.constant 0 : index
    %c10_457 = arith.constant 10 : index
    %388 = vector.load %arg6[%c0_455, %c0_456, %c10_457] : memref<4x16x26xf32, #tpu.memory_space<vmem>>, vector<4x16x16xf32>
    %cst_458 = arith.constant 0.00137367519 : f32
    %389 = vector.broadcast %cst_458 : f32 to vector<4x16x16xf32>
    %390 = arith.mulf %389, %388 : vector<4x16x16xf32>
    %391 = arith.addf %387, %390 : vector<4x16x16xf32>
    %c0_459 = arith.constant 0 : index
    %c2_460 = arith.constant 2 : index
    %c0_461 = arith.constant 0 : index
    %c0_462 = arith.constant 0 : index
    %c0_463 = arith.constant 0 : index
    %392 = vector.load %arg3[%c0_459, %c2_460, %c0_461, %c0_462, %c0_463] : memref<1x3x4x16x16xf32, #tpu.memory_space<vmem>>, vector<1x1x4x16x16xf32>
    %393 = vector.shape_cast %392 : vector<1x1x4x16x16xf32> to vector<4x16x16xf32>
    %394 = vector.shape_cast %391 : vector<4x16x16xf32> to vector<1x1x4x16x16xf32>
    tpu.vector_store %arg3[%c0_459, %c2_460, %c0_461, %c0_462, %c0_463], %394 {strides = array<i32>} : memref<1x3x4x16x16xf32, #tpu.memory_space<vmem>>, vector<1x1x4x16x16xf32>,
    %395 = vector.extract_strided_slice %391 {offsets = [0, 0, 0], sizes = [4, 1, 16], strides = [1, 1, 1]} : vector<4x16x16xf32> to vector<4x1x16xf32>
    %396 = vector.extract_strided_slice %391 {offsets = [0, 1, 0], sizes = [4, 1, 16], strides = [1, 1, 1]} : vector<4x16x16xf32> to vector<4x1x16xf32>
    %397 = arith.addf %395, %396 : vector<4x1x16xf32>
    %398 = vector.extract_strided_slice %391 {offsets = [0, 2, 0], sizes = [4, 1, 16], strides = [1, 1, 1]} : vector<4x16x16xf32> to vector<4x1x16xf32>
    %399 = vector.extract_strided_slice %391 {offsets = [0, 3, 0], sizes = [4, 1, 16], strides = [1, 1, 1]} : vector<4x16x16xf32> to vector<4x1x16xf32>
    %400 = arith.addf %398, %399 : vector<4x1x16xf32>
    %401 = vector.extract_strided_slice %391 {offsets = [0, 4, 0], sizes = [4, 1, 16], strides = [1, 1, 1]} : vector<4x16x16xf32> to vector<4x1x16xf32>
    %402 = vector.extract_strided_slice %391 {offsets = [0, 5, 0], sizes = [4, 1, 16], strides = [1, 1, 1]} : vector<4x16x16xf32> to vector<4x1x16xf32>
    %403 = arith.addf %401, %402 : vector<4x1x16xf32>
    %404 = vector.extract_strided_slice %391 {offsets = [0, 6, 0], sizes = [4, 1, 16], strides = [1, 1, 1]} : vector<4x16x16xf32> to vector<4x1x16xf32>
    %405 = vector.extract_strided_slice %391 {offsets = [0, 7, 0], sizes = [4, 1, 16], strides = [1, 1, 1]} : vector<4x16x16xf32> to vector<4x1x16xf32>
    %406 = arith.addf %404, %405 : vector<4x1x16xf32>
    %407 = vector.extract_strided_slice %391 {offsets = [0, 8, 0], sizes = [4, 1, 16], strides = [1, 1, 1]} : vector<4x16x16xf32> to vector<4x1x16xf32>
    %408 = vector.extract_strided_slice %391 {offsets = [0, 9, 0], sizes = [4, 1, 16], strides = [1, 1, 1]} : vector<4x16x16xf32> to vector<4x1x16xf32>
    %409 = arith.addf %407, %408 : vector<4x1x16xf32>
    %410 = vector.extract_strided_slice %391 {offsets = [0, 10, 0], sizes = [4, 1, 16], strides = [1, 1, 1]} : vector<4x16x16xf32> to vector<4x1x16xf32>
    %411 = vector.extract_strided_slice %391 {offsets = [0, 11, 0], sizes = [4, 1, 16], strides = [1, 1, 1]} : vector<4x16x16xf32> to vector<4x1x16xf32>
    %412 = arith.addf %410, %411 : vector<4x1x16xf32>
    %413 = vector.extract_strided_slice %391 {offsets = [0, 12, 0], sizes = [4, 1, 16], strides = [1, 1, 1]} : vector<4x16x16xf32> to vector<4x1x16xf32>
    %414 = vector.extract_strided_slice %391 {offsets = [0, 13, 0], sizes = [4, 1, 16], strides = [1, 1, 1]} : vector<4x16x16xf32> to vector<4x1x16xf32>
    %415 = arith.addf %413, %414 : vector<4x1x16xf32>
    %416 = vector.extract_strided_slice %391 {offsets = [0, 14, 0], sizes = [4, 1, 16], strides = [1, 1, 1]} : vector<4x16x16xf32> to vector<4x1x16xf32>
    %417 = vector.extract_strided_slice %391 {offsets = [0, 15, 0], sizes = [4, 1, 16], strides = [1, 1, 1]} : vector<4x16x16xf32> to vector<4x1x16xf32>
    %418 = arith.addf %416, %417 : vector<4x1x16xf32>
    %419 = tpu.concatenate %397, %400, %403, %406, %409, %412, %415, %418 in 1 : vector<4x1x16xf32>, vector<4x1x16xf32>, vector<4x1x16xf32>, vector<4x1x16xf32>, vector<4x1x16xf32>, vector<4x1x16xf32>, vector<4x1x16xf32>, vector<4x1x16xf32> -> vector<4x8x16xf32>
    %420 = vector.extract_strided_slice %419 {offsets = [0, 0, 0], sizes = [4, 8, 1], strides = [1, 1, 1]} : vector<4x8x16xf32> to vector<4x8x1xf32>
    %421 = vector.extract_strided_slice %419 {offsets = [0, 0, 1], sizes = [4, 8, 1], strides = [1, 1, 1]} : vector<4x8x16xf32> to vector<4x8x1xf32>
    %422 = arith.addf %420, %421 : vector<4x8x1xf32>
    %423 = vector.extract_strided_slice %419 {offsets = [0, 0, 2], sizes = [4, 8, 1], strides = [1, 1, 1]} : vector<4x8x16xf32> to vector<4x8x1xf32>
    %424 = vector.extract_strided_slice %419 {offsets = [0, 0, 3], sizes = [4, 8, 1], strides = [1, 1, 1]} : vector<4x8x16xf32> to vector<4x8x1xf32>
    %425 = arith.addf %423, %424 : vector<4x8x1xf32>
    %426 = vector.extract_strided_slice %419 {offsets = [0, 0, 4], sizes = [4, 8, 1], strides = [1, 1, 1]} : vector<4x8x16xf32> to vector<4x8x1xf32>
    %427 = vector.extract_strided_slice %419 {offsets = [0, 0, 5], sizes = [4, 8, 1], strides = [1, 1, 1]} : vector<4x8x16xf32> to vector<4x8x1xf32>
    %428 = arith.addf %426, %427 : vector<4x8x1xf32>
    %429 = vector.extract_strided_slice %419 {offsets = [0, 0, 6], sizes = [4, 8, 1], strides = [1, 1, 1]} : vector<4x8x16xf32> to vector<4x8x1xf32>
    %430 = vector.extract_strided_slice %419 {offsets = [0, 0, 7], sizes = [4, 8, 1], strides = [1, 1, 1]} : vector<4x8x16xf32> to vector<4x8x1xf32>
    %431 = arith.addf %429, %430 : vector<4x8x1xf32>
    %432 = vector.extract_strided_slice %419 {offsets = [0, 0, 8], sizes = [4, 8, 1], strides = [1, 1, 1]} : vector<4x8x16xf32> to vector<4x8x1xf32>
    %433 = vector.extract_strided_slice %419 {offsets = [0, 0, 9], sizes = [4, 8, 1], strides = [1, 1, 1]} : vector<4x8x16xf32> to vector<4x8x1xf32>
    %434 = arith.addf %432, %433 : vector<4x8x1xf32>
    %435 = vector.extract_strided_slice %419 {offsets = [0, 0, 10], sizes = [4, 8, 1], strides = [1, 1, 1]} : vector<4x8x16xf32> to vector<4x8x1xf32>
    %436 = vector.extract_strided_slice %419 {offsets = [0, 0, 11], sizes = [4, 8, 1], strides = [1, 1, 1]} : vector<4x8x16xf32> to vector<4x8x1xf32>
    %437 = arith.addf %435, %436 : vector<4x8x1xf32>
    %438 = vector.extract_strided_slice %419 {offsets = [0, 0, 12], sizes = [4, 8, 1], strides = [1, 1, 1]} : vector<4x8x16xf32> to vector<4x8x1xf32>
    %439 = vector.extract_strided_slice %419 {offsets = [0, 0, 13], sizes = [4, 8, 1], strides = [1, 1, 1]} : vector<4x8x16xf32> to vector<4x8x1xf32>
    %440 = arith.addf %438, %439 : vector<4x8x1xf32>
    %441 = vector.extract_strided_slice %419 {offsets = [0, 0, 14], sizes = [4, 8, 1], strides = [1, 1, 1]} : vector<4x8x16xf32> to vector<4x8x1xf32>
    %442 = vector.extract_strided_slice %419 {offsets = [0, 0, 15], sizes = [4, 8, 1], strides = [1, 1, 1]} : vector<4x8x16xf32> to vector<4x8x1xf32>
    %443 = arith.addf %441, %442 : vector<4x8x1xf32>
    %444 = tpu.concatenate %422, %425, %428, %431, %434, %437, %440, %443 in 2 : vector<4x8x1xf32>, vector<4x8x1xf32>, vector<4x8x1xf32>, vector<4x8x1xf32>, vector<4x8x1xf32>, vector<4x8x1xf32>, vector<4x8x1xf32>, vector<4x8x1xf32> -> vector<4x8x8xf32>
    %cst_464 = arith.constant 2.500000e-01 : f32
    %445 = vector.broadcast %cst_464 : f32 to vector<4x8x8xf32>
    %446 = arith.mulf %445, %444 : vector<4x8x8xf32>
    %c0_465 = arith.constant 0 : index
    %c0_466 = arith.constant 0 : index
    %c0_467 = arith.constant 0 : index
    %c0_468 = arith.constant 0 : index
    %447 = vector.load %arg4[%c0_465, %c0_466, %c0_467, %c0_468] : memref<1x4x8x8xf32, #tpu.memory_space<vmem>>, vector<1x4x8x8xf32>
    %448 = vector.shape_cast %447 : vector<1x4x8x8xf32> to vector<4x8x8xf32>
    %449 = vector.shape_cast %446 : vector<4x8x8xf32> to vector<1x4x8x8xf32>
    tpu.vector_store %arg4[%c0_465, %c0_466, %c0_467, %c0_468], %449 {strides = array<i32>} : memref<1x4x8x8xf32, #tpu.memory_space<vmem>>, vector<1x4x8x8xf32>,
    return
  }
  func.func @transform_0(%arg0: i32, %arg1: i32) -> (i32, i32, i32, i32) {
    %c0_i32 = arith.constant 0 : i32
    %c0_i32_0 = arith.constant 0 : i32
    %c0_i32_1 = arith.constant 0 : i32
    return %arg0, %arg1, %c0_i32, %c0_i32_0 : i32, i32, i32, i32
  }
  func.func @transform_1(%arg0: i32, %arg1: i32) -> (i32, i32, i32, i32, i32) {
    %c0_i32 = arith.constant 0 : i32
    %c0_i32_0 = arith.constant 0 : i32
    %c0_i32_1 = arith.constant 0 : i32
    %c0_i32_2 = arith.constant 0 : i32
    return %arg0, %c0_i32, %arg1, %c0_i32_0, %c0_i32_1 : i32, i32, i32, i32, i32
  }
  func.func @transform_2(%arg0: i32, %arg1: i32) -> (i32, i32, i32, i32) {
    %c0_i32 = arith.constant 0 : i32
    %c0_i32_0 = arith.constant 0 : i32
    %c0_i32_1 = arith.constant 0 : i32
    return %arg0, %arg1, %c0_i32, %c0_i32_0 : i32, i32, i32, i32
  }
}

</mosaic_0001>

<llo_original>
// kernel: tpu_custom_call.1
$region0: #{tpu_custom_call.1}
  #allocation0 [shape = 'u32[]', space=smem, size = 0x4, offset = 0x4, fixed_abs, tag = 'smem constant byte address 0x4 - core index']
  #allocation1 [shape = 'u32[144,128]{1,0:T(1,128)}', space=vmem, size = 0x12000, scoped, tag = 'internal scratch']
  #allocation2 [shape = 'f32[4,26,16]{2,1,0:T(8,128)}', space=vmem, size = 0x10000, scoped, tag = 'scratch operand']
  #allocation3 [shape = 'f32[4,16,26]{2,1,0:T(8,128)}', space=vmem, size = 0x8000, scoped, tag = 'scratch operand']
  %s0 = inlined_call_operand.hbm [shape: f32[2,4,16,16], index: 0, kind: input, shape index: {}]
  %s1 = inlined_call_operand.hbm [shape: f32[2,3,4,16,16], index: 1, kind: output, shape index: {0}]
  %s2 = inlined_call_operand.hbm [shape: f32[2,4,8,8], index: 2, kind: output, shape index: {1}]
  %3 = xla_tuple %s1, %s2
  %s4 = sld [smem:[#allocation0]]
  $region49: #{tpu_custom_call.1} parent=0
    _
  %s6 = ssub.s32 1, %s4
  %s7 = scalar_select 0, %s6, %s4
  $region1: #{tpu_custom_call.1} parent=0
    #allocation4 [shape = 'u8[65536]{0}', space=vmem, size = 0x10000, scoped, tag = 'input window, operand 0']
    #allocation5 [shape = 's32[2]{0}', space=sflag, size = 0x8, scoped, tag = 'scoped memory for tpu_custom_call.1']
    #allocation6 [shape = 's32[2]{0}', space=sflag, size = 0x8, scoped, tag = 'scoped memory for tpu_custom_call.1']
    #allocation7 [shape = 'u8[196608]{0}', space=vmem, size = 0x30000, scoped, tag = 'output window, operand 0']
    #allocation8 [shape = 'u8[32768]{0}', space=vmem, size = 0x8000, scoped, tag = 'output window, operand 1']
    #allocation9 [shape = 's32[2]{0}', space=sflag, size = 0x8, scoped, tag = 'scoped memory for tpu_custom_call.1']
    %8 = vsyncpa [#allocation5], 0
    %s9 = scalar_lea.sflag [#allocation5], 1
    %10 = vsyncpa %s9, 0
    %11 = vsyncpa [#allocation6], 0
    %s12 = scalar_lea.sflag [#allocation6], 1
    %13 = vsyncpa %s12, 0
    %14 = vsyncpa [#allocation9], 0
    %s15 = scalar_lea.sflag [#allocation9], 1
    %16 = vsyncpa %s15, 0
    loop: start=0, step=1, limit=4
    $region2: #{tpu_custom_call.1} parent=1 // loop_pre_header
      _
    $region3: #{tpu_custom_call.1} parent=1 // loop_header
      %s18 = sphi 0, %s22
      %p19 = scmp.ge.s32.totalorder %s18, 4
      %s25 = sphi 0, %s37
      %s26 = sphi 0, %s33
      %s27 = sphi 0, %s25
      %s28 = sphi 0, %s26
      %s29 = sphi 0, %s27
      %s30 = sphi 0, %s28
      %s42 = sphi 0, %s44
      %s45 = sphi 0, %s42
      %s46 = sphi 0, %s45
      %s62 = sphi 0, %s46
      %s70 = sphi 0, %s72
      %s73 = sphi 0, %s70
      %s74 = sphi 0, %s73
      %s90 = sphi 0, %s74
      %s98 = sphi 0, %s100
      %s101 = sphi 0, %s98
      %s102 = sphi 0, %s101
      %s118 = sphi 0, %s102
    $region4: #{tpu_custom_call.1} parent=1 // loop_header_branch
      %21 = sbr.rel (%p19) target = $region8
    $region5: #{tpu_custom_call.1} parent=1 // loop_body
      %s23 = ssub.s32 %s18, 1
      %s24 = ssub.s32 %s18, 2
      %s31 = sadd.s32 1, %s26
      %p32 = scmp.ge.s32.totalorder %s31, 1
      %s33 = scalar_select %p32, 0, %s31
      %s34 = sadd.s32 1, %s25
      %s35 = scalar_select %p32, %s34, %s25
      %p36 = scmp.ge.s32.totalorder %s35, 2
      %s37 = scalar_select %p36, 0, %s35
      %s38 = ssub.s32 %s25, %s37
      %s39 = ssub.s32 %s26, %s33
      %s40 = sor.u32 %s38, %s39
      %p41 = scmp.eq.s32.totalorder %s40, 0
      %s43 = sadd.s32 %s42, 1
      %s44 = scalar_select %p41, %s42, %s43
      %p47 = pneg %p41
      %p48 = scmp.eq.s32.totalorder %s18, 1
      %p49 = por %p47, %p48
      %p50 = scmp.ne.s32.totalorder %s42, %s45
      %p51 = scmp.eq.s32.totalorder %s18, 0
      %p52 = por %p50, %p51
      %p53 = scmp.ne.s32.totalorder %s42, %s45
      %p54 = scmp.eq.s32.totalorder %s23, 1
      %p55 = por %p53, %p54
      %p56 = scmp.ne.s32.totalorder %s45, %s46
      %p57 = scmp.eq.s32.totalorder %s23, 0
      %p58 = por %p56, %p57
      %p59 = scmp.ne.s32.totalorder %s45, %s46
      %p60 = scmp.eq.s32.totalorder %s24, 1
      %p61 = por %p59, %p60
      %p63 = scmp.ne.s32.totalorder %s46, %s62
      %p64 = scmp.eq.s32.totalorder %s24, 0
      %p65 = por %p63, %p64
      %s66 = ssub.s32 %s25, %s37
      %s67 = ssub.s32 %s26, %s33
      %s68 = sor.u32 %s66, %s67
      %p69 = scmp.eq.s32.totalorder %s68, 0
      %s71 = sadd.s32 %s70, 1
      %s72 = scalar_select %p69, %s70, %s71
      %p75 = pneg %p69
      %p76 = scmp.eq.s32.totalorder %s18, 1
      %p77 = por %p75, %p76
      %p78 = scmp.ne.s32.totalorder %s70, %s73
      %p79 = scmp.eq.s32.totalorder %s18, 0
      %p80 = por %p78, %p79
      %p81 = scmp.ne.s32.totalorder %s70, %s73
      %p82 = scmp.eq.s32.totalorder %s23, 1
      %p83 = por %p81, %p82
      %p84 = scmp.ne.s32.totalorder %s73, %s74
      %p85 = scmp.eq.s32.totalorder %s23, 0
      %p86 = por %p84, %p85
      %p87 = scmp.ne.s32.totalorder %s73, %s74
      %p88 = scmp.eq.s32.totalorder %s24, 1
      %p89 = por %p87, %p88
      %p91 = scmp.ne.s32.totalorder %s74, %s90
      %p92 = scmp.eq.s32.totalorder %s24, 0
      %p93 = por %p91, %p92
      %s94 = ssub.s32 %s25, %s37
      %s95 = ssub.s32 %s26, %s33
      %s96 = sor.u32 %s94, %s95
      %p97 = scmp.eq.s32.totalorder %s96, 0
      %s99 = sadd.s32 %s98, 1
      %s100 = scalar_select %p97, %s98, %s99
      %p103 = pneg %p97
      %p104 = scmp.eq.s32.totalorder %s18, 1
      %p105 = por %p103, %p104
      %p106 = scmp.ne.s32.totalorder %s98, %s101
      %p107 = scmp.eq.s32.totalorder %s18, 0
      %p108 = por %p106, %p107
      %p109 = scmp.ne.s32.totalorder %s98, %s101
      %p110 = scmp.eq.s32.totalorder %s23, 1
      %p111 = por %p109, %p110
      %p112 = scmp.ne.s32.totalorder %s101, %s102
      %p113 = scmp.eq.s32.totalorder %s23, 0
      %p114 = por %p112, %p113
      %p115 = scmp.ne.s32.totalorder %s101, %s102
      %p116 = scmp.eq.s32.totalorder %s24, 1
      %p117 = por %p115, %p116
      %p119 = scmp.ne.s32.totalorder %s102, %s118
      %p120 = scmp.eq.s32.totalorder %s24, 0
      %p121 = por %p119, %p120
      %p122 = scmp.le.s32.totalorder 1, %s18
      %p123 = scmp.lt.s32.totalorder %s18, 3
      %p124 = pnand %p122, %p123
      %p125 = pneg %p124
      // Predicated region
      $region9: #{tpu_custom_call.1} parent=5 // pred_check
        _
      $region10: #{tpu_custom_call.1} parent=5 // pred_check_branch
        %127 = sbr.rel (%p124) target = $region12
      $region11: #{tpu_custom_call.1} parent=5 // pred_region
        %s128 = ssub.s32 %s18, 1
      $region12: #{tpu_custom_call.1} parent=5 // pred_fallthru
        _
      %p129 = scmp.lt.s32.totalorder %s18, 2
      // Predicated region
      $region13: #{tpu_custom_call.1} parent=5 // pred_check
        %p130 = pneg %p129
      $region14: #{tpu_custom_call.1} parent=5 // pred_check_branch
        %132 = sbr.rel (%p130) target = $region16
      $region15: #{tpu_custom_call.1} parent=5 // pred_region
        // Predicated region
        $region17: #{tpu_custom_call.1} parent=15 // pred_check
          %p133 = pneg %p52
        $region18: #{tpu_custom_call.1} parent=15 // pred_check_branch
          %135 = sbr.rel (%p133) target = $region20
        $region19: #{tpu_custom_call.1} parent=15 // pred_region
          %s136 = sand.u32 %s42, 1
          %s137 = scalar_lea.sflag [#allocation5], %s136
          %s138 = sand.u32 %s42, 1
          %s139 = smul.addr %s138, 64
          %s140 = scalar_lea.vmem [#allocation4], %s139
          %s141 = smul.u32 4, %s26
          %s143 = ssub.s32 1024, 1024
          %144 = vsyncadd %s137, %s143
          %s145 = smul.addr %s141, 2
          %s146 = smul.addr %s25, 8
          %s147 = sadd.s32 %s145, %s146
          %s148 = smul.addr %s147, 128
          %s149 = scalar_lea.hbm %s0, %s148
          %s150 = sshll.u32 %s140, 4
          %s151 = int_to_ptr.vmem [resolvable:$true] %s150
          %156 = dma.hbm_to_vmem [thread:$0]  %s149, 1024, %s151, %s137, 128, 128, 8
        $region20: #{tpu_custom_call.1} parent=15 // pred_fallthru
          _
      $region16: #{tpu_custom_call.1} parent=5 // pred_fallthru
        _
      %p157 = scmp.le.s32.totalorder 1, %s18
      %p158 = scmp.lt.s32.totalorder %s18, 3
      %p159 = pnand %p157, %p158
      %p160 = pneg %p159
      // Predicated region
      $region21: #{tpu_custom_call.1} parent=5 // pred_check
        _
      $region22: #{tpu_custom_call.1} parent=5 // pred_check_branch
        %162 = sbr.rel (%p159) target = $region24
      $region23: #{tpu_custom_call.1} parent=5 // pred_region
        %s163 = ssub.s32 %s18, 1
        %s164 = sand.u32 %s45, 1
        %s165 = scalar_lea.sflag [#allocation5], %s164
        %s166 = sand.u32 %s45, 1
        %s167 = smul.addr %s166, 64
        %s168 = scalar_lea.vmem [#allocation4], %s167
        // Predicated region
        $region25: #{tpu_custom_call.1} parent=23 // pred_check
          %p169 = pneg %p58
        $region26: #{tpu_custom_call.1} parent=23 // pred_check_branch
          %171 = sbr.rel (%p169) target = $region28
        $region27: #{tpu_custom_call.1} parent=23 // pred_region
          %172 = dma.done %s165, 1024
        $region28: #{tpu_custom_call.1} parent=23 // pred_fallthru
          _
        %s173 = sand.u32 %s45, 1
        %s174 = scalar_lea.sflag [#allocation5], %s173
        %s175 = sand.u32 %s45, 1
        %s176 = smul.addr %s175, 64
        %s177 = scalar_lea.vmem [#allocation4], %s176
        %p178 = pneg %p58
        %p179 = pneg %p55
        %p180 = pneg %p86
        %p181 = pneg %p83
        %s182 = sand.u32 %s73, 1
        %s183 = scalar_lea.sflag [#allocation6], %s182
        %s184 = sand.u32 %s73, 1
        %s185 = smul.addr %s184, 192
        %s186 = scalar_lea.vmem [#allocation7], %s185
        %p187 = pneg %p114
        %p188 = pneg %p111
        %s189 = sand.u32 %s101, 1
        %s190 = scalar_lea.sflag [#allocation9], %s189
        %s191 = sand.u32 %s101, 1
        %s192 = smul.addr %s191, 32
        %s193 = scalar_lea.vmem [#allocation8], %s192
        %s194 = smul.u32 4, %s28
        %s195 = smul.u32 4, %s28
        %s196 = smul.u32 4, %s28
        %v197 = vld [vmem:[%s168] sm:$0xff]
        %v198 = vld [vmem:[%s168 + $0x8] sm:$0xff]
        %v199 = vld [vmem:[%s168 + $0x10] sm:$0xff]
        %v200 = vld [vmem:[%s168 + $0x18] sm:$0xff]
        %v201 = vld [vmem:[%s168 + $0x20] sm:$0xff]
        %v202 = vld [vmem:[%s168 + $0x28] sm:$0xff]
        %v203 = vld [vmem:[%s168 + $0x30] sm:$0xff]
        %v204 = vld [vmem:[%s168 + $0x38] sm:$0xff]
        %vm205 = vcmask 130048
        %206 = vst.msk [vmem:[#allocation2 + $0x5] sm:$0xff] %vm205, %v197
        %207 = vst.msk [vmem:[#allocation2 + $0xd] sm:$0xff] %vm205, %v198
        %208 = vst.msk [vmem:[#allocation2 + $0x25] sm:$0xff] %vm205, %v199
        %209 = vst.msk [vmem:[#allocation2 + $0x2d] sm:$0xff] %vm205, %v200
        %210 = vst.msk [vmem:[#allocation2 + $0x45] sm:$0xff] %vm205, %v201
        %211 = vst.msk [vmem:[#allocation2 + $0x4d] sm:$0xff] %vm205, %v202
        %212 = vst.msk [vmem:[#allocation2 + $0x65] sm:$0xff] %vm205, %v203
        %213 = vst.msk [vmem:[#allocation2 + $0x6d] sm:$0xff] %vm205, %v204
        %vm214 = vcmask 123905
        %215 = vst.msk [vmem:[#allocation2 + $0x3] sm:$0x2] %vm214, %v197
        %216 = vst.msk [vmem:[#allocation2 + $0x23] sm:$0x2] %vm214, %v199
        %217 = vst.msk [vmem:[#allocation2 + $0x43] sm:$0x2] %vm214, %v201
        %218 = vst.msk [vmem:[#allocation2 + $0x63] sm:$0x2] %vm214, %v203
        %vm219 = vcmask 129030
        %220 = vst.msk [vmem:[#allocation2 + $0xf] sm:$0x40] %vm219, %v198
        %221 = vst.msk [vmem:[#allocation2 + $0x2f] sm:$0x40] %vm219, %v200
        %222 = vst.msk [vmem:[#allocation2 + $0x4f] sm:$0x40] %vm219, %v202
        %223 = vst.msk [vmem:[#allocation2 + $0x6f] sm:$0x40] %vm219, %v204
        %vm224 = vcmask 124930
        %225 = vst.msk [vmem:[#allocation2 + $0x1] sm:$0x4] %vm224, %v197
        %226 = vst.msk [vmem:[#allocation2 + $0x21] sm:$0x4] %vm224, %v199
        %227 = vst.msk [vmem:[#allocation2 + $0x41] sm:$0x4] %vm224, %v201
        %228 = vst.msk [vmem:[#allocation2 + $0x61] sm:$0x4] %vm224, %v203
        %vm229 = vcmask 128005
        %230 = vst.msk [vmem:[#allocation2 + $0x11] sm:$0x20] %vm229, %v198
        %231 = vst.msk [vmem:[#allocation2 + $0x31] sm:$0x20] %vm229, %v200
        %232 = vst.msk [vmem:[#allocation2 + $0x51] sm:$0x20] %vm229, %v202
        %233 = vst.msk [vmem:[#allocation2 + $0x71] sm:$0x20] %vm229, %v204
        %vm234 = vcmask 125955
        %235 = vst.msk [vmem:[#allocation2 - $0x1] sm:$0x8] %vm234, %v197
        %236 = vst.msk [vmem:[#allocation2 + $0x1f] sm:$0x8] %vm234, %v199
        %237 = vst.msk [vmem:[#allocation2 + $0x3f] sm:$0x8] %vm234, %v201
        %238 = vst.msk [vmem:[#allocation2 + $0x5f] sm:$0x8] %vm234, %v203
        %vm239 = vcmask 126980
        %240 = vst.msk [vmem:[#allocation2 + $0x13] sm:$0x10] %vm239, %v198
        %241 = vst.msk [vmem:[#allocation2 + $0x33] sm:$0x10] %vm239, %v200
        %242 = vst.msk [vmem:[#allocation2 + $0x53] sm:$0x10] %vm239, %v202
        %243 = vst.msk [vmem:[#allocation2 + $0x73] sm:$0x10] %vm239, %v204
        %244 = vst.msk [vmem:[#allocation2 - $0x3] sm:$0x10] %vm239, %v197
        %245 = vst.msk [vmem:[#allocation2 + $0x1d] sm:$0x10] %vm239, %v199
        %246 = vst.msk [vmem:[#allocation2 + $0x3d] sm:$0x10] %vm239, %v201
        %247 = vst.msk [vmem:[#allocation2 + $0x5d] sm:$0x10] %vm239, %v203
        %248 = vst.msk [vmem:[#allocation2 + $0x15] sm:$0x8] %vm234, %v198
        %249 = vst.msk [vmem:[#allocation2 + $0x35] sm:$0x8] %vm234, %v200
        %250 = vst.msk [vmem:[#allocation2 + $0x55] sm:$0x8] %vm234, %v202
        %251 = vst.msk [vmem:[#allocation2 + $0x75] sm:$0x8] %vm234, %v204
        %252 = vst.msk [vmem:[#allocation2 - $0x5] sm:$0x20] %vm229, %v197
        %253 = vst.msk [vmem:[#allocation2 + $0x1b] sm:$0x20] %vm229, %v199
        %254 = vst.msk [vmem:[#allocation2 + $0x3b] sm:$0x20] %vm229, %v201
        %255 = vst.msk [vmem:[#allocation2 + $0x5b] sm:$0x20] %vm229, %v203
        %256 = vst.msk [vmem:[#allocation2 + $0x17] sm:$0x4] %vm224, %v198
        %257 = vst.msk [vmem:[#allocation2 + $0x37] sm:$0x4] %vm224, %v200
        %258 = vst.msk [vmem:[#allocation2 + $0x57] sm:$0x4] %vm224, %v202
        %259 = vst.msk [vmem:[#allocation2 + $0x77] sm:$0x4] %vm224, %v204
        %v260 = vld [vmem:[#allocation2] sm:$0xff]
        %v261 = vld [vmem:[#allocation2 + $0x8] sm:$0xff]
        %v262 = vld [vmem:[#allocation2 + $0x20] sm:$0xff]
        %v263 = vld [vmem:[#allocation2 + $0x28] sm:$0xff]
        %v264 = vld [vmem:[#allocation2 + $0x40] sm:$0xff]
        %v265 = vld [vmem:[#allocation2 + $0x48] sm:$0xff]
        %v266 = vld [vmem:[#allocation2 + $0x60] sm:$0xff]
        %v267 = vld [vmem:[#allocation2 + $0x68] sm:$0xff]
        %v268 = vmul.f32 %v260, 0.0011725348
        %v269 = vmul.f32 %v261, 0.0011725348
        %v270 = vmul.f32 %v262, 0.0011725348
        %v271 = vmul.f32 %v263, 0.0011725348
        %v272 = vmul.f32 %v264, 0.0011725348
        %v273 = vmul.f32 %v265, 0.0011725348
        %v274 = vmul.f32 %v266, 0.0011725348
        %v275 = vmul.f32 %v267, 0.0011725348
        %v276 = vld [vmem:[#allocation2 + $0x1] sm:$0xff]
        %v277 = vld [vmem:[#allocation2 + $0x9] sm:$0xff]
        %v278 = vld [vmem:[#allocation2 + $0x21] sm:$0xff]
        %v279 = vld [vmem:[#allocation2 + $0x29] sm:$0xff]
        %v280 = vld [vmem:[#allocation2 + $0x41] sm:$0xff]
        %v281 = vld [vmem:[#allocation2 + $0x49] sm:$0xff]
        %v282 = vld [vmem:[#allocation2 + $0x61] sm:$0xff]
        %v283 = vld [vmem:[#allocation2 + $0x69] sm:$0xff]
        %v284 = vmul.f32 %v276, 0.008225341
        %v285 = vmul.f32 %v277, 0.008225341
        %v286 = vmul.f32 %v278, 0.008225341
        %v287 = vmul.f32 %v279, 0.008225341
        %v288 = vmul.f32 %v280, 0.008225341
        %v289 = vmul.f32 %v281, 0.008225341
        %v290 = vmul.f32 %v282, 0.008225341
        %v291 = vmul.f32 %v283, 0.008225341
        %v292 = vadd.f32 %v268, %v284
        %v293 = vadd.f32 %v269, %v285
        %v294 = vadd.f32 %v270, %v286
        %v295 = vadd.f32 %v271, %v287
        %v296 = vadd.f32 %v272, %v288
        %v297 = vadd.f32 %v273, %v289
        %v298 = vadd.f32 %v274, %v290
        %v299 = vadd.f32 %v275, %v291
        %v300 = vld [vmem:[#allocation2 + $0x2] sm:$0xff]
        %v301 = vld [vmem:[#allocation2 + $0xa] sm:$0xff]
        %v302 = vld [vmem:[#allocation2 + $0x22] sm:$0xff]
        %v303 = vld [vmem:[#allocation2 + $0x2a] sm:$0xff]
        %v304 = vld [vmem:[#allocation2 + $0x42] sm:$0xff]
        %v305 = vld [vmem:[#allocation2 + $0x4a] sm:$0xff]
        %v306 = vld [vmem:[#allocation2 + $0x62] sm:$0xff]
        %v307 = vld [vmem:[#allocation2 + $0x6a] sm:$0xff]
        %v308 = vmul.f32 %v300, 0.037426215
        %v309 = vmul.f32 %v301, 0.037426215
        %v310 = vmul.f32 %v302, 0.037426215
        %v311 = vmul.f32 %v303, 0.037426215
        %v312 = vmul.f32 %v304, 0.037426215
        %v313 = vmul.f32 %v305, 0.037426215
        %v314 = vmul.f32 %v306, 0.037426215
        %v315 = vmul.f32 %v307, 0.037426215
        %v316 = vadd.f32 %v292, %v308
        %v317 = vadd.f32 %v293, %v309
        %v318 = vadd.f32 %v294, %v310
        %v319 = vadd.f32 %v295, %v311
        %v320 = vadd.f32 %v296, %v312
        %v321 = vadd.f32 %v297, %v313
        %v322 = vadd.f32 %v298, %v314
        %v323 = vadd.f32 %v299, %v315
        %v324 = vld [vmem:[#allocation2 + $0x3] sm:$0xff]
        %v325 = vld [vmem:[#allocation2 + $0xb] sm:$0xff]
        %v326 = vld [vmem:[#allocation2 + $0x23] sm:$0xff]
        %v327 = vld [vmem:[#allocation2 + $0x2b] sm:$0xff]
        %v328 = vld [vmem:[#allocation2 + $0x43] sm:$0xff]
        %v329 = vld [vmem:[#allocation2 + $0x4b] sm:$0xff]
        %v330 = vld [vmem:[#allocation2 + $0x63] sm:$0xff]
        %v331 = vld [vmem:[#allocation2 + $0x6b] sm:$0xff]
        %v332 = vmul.f32 %v324, 0.11045657
        %v333 = vmul.f32 %v325, 0.11045657
        %v334 = vmul.f32 %v326, 0.11045657
        %v335 = vmul.f32 %v327, 0.11045657
        %v336 = vmul.f32 %v328, 0.11045657
        %v337 = vmul.f32 %v329, 0.11045657
        %v338 = vmul.f32 %v330, 0.11045657
        %v339 = vmul.f32 %v331, 0.11045657
        %v340 = vadd.f32 %v316, %v332
        %v341 = vadd.f32 %v317, %v333
        %v342 = vadd.f32 %v318, %v334
        %v343 = vadd.f32 %v319, %v335
        %v344 = vadd.f32 %v320, %v336
        %v345 = vadd.f32 %v321, %v337
        %v346 = vadd.f32 %v322, %v338
        %v347 = vadd.f32 %v323, %v339
        %v348 = vld [vmem:[#allocation2 + $0x4] sm:$0xff]
        %v349 = vld [vmem:[#allocation2 + $0xc] sm:$0xff]
        %v350 = vld [vmem:[#allocation2 + $0x24] sm:$0xff]
        %v351 = vld [vmem:[#allocation2 + $0x2c] sm:$0xff]
        %v352 = vld [vmem:[#allocation2 + $0x44] sm:$0xff]
        %v353 = vld [vmem:[#allocation2 + $0x4c] sm:$0xff]
        %v354 = vld [vmem:[#allocation2 + $0x64] sm:$0xff]
        %v355 = vld [vmem:[#allocation2 + $0x6c] sm:$0xff]
        %v356 = vmul.f32 %v348, 0.21144673
        %v357 = vmul.f32 %v349, 0.21144673
        %v358 = vmul.f32 %v350, 0.21144673
        %v359 = vmul.f32 %v351, 0.21144673
        %v360 = vmul.f32 %v352, 0.21144673
        %v361 = vmul.f32 %v353, 0.21144673
        %v362 = vmul.f32 %v354, 0.21144673
        %v363 = vmul.f32 %v355, 0.21144673
        %v364 = vadd.f32 %v340, %v356
        %v365 = vadd.f32 %v341, %v357
        %v366 = vadd.f32 %v342, %v358
        %v367 = vadd.f32 %v343, %v359
        %v368 = vadd.f32 %v344, %v360
        %v369 = vadd.f32 %v345, %v361
        %v370 = vadd.f32 %v346, %v362
        %v371 = vadd.f32 %v347, %v363
        %v372 = vld [vmem:[#allocation2 + $0x5] sm:$0xff]
        %v373 = vld [vmem:[#allocation2 + $0xd] sm:$0xff]
        %v374 = vld [vmem:[#allocation2 + $0x25] sm:$0xff]
        %v375 = vld [vmem:[#allocation2 + $0x2d] sm:$0xff]
        %v376 = vld [vmem:[#allocation2 + $0x45] sm:$0xff]
        %v377 = vld [vmem:[#allocation2 + $0x4d] sm:$0xff]
        %v378 = vld [vmem:[#allocation2 + $0x65] sm:$0xff]
        %v379 = vld [vmem:[#allocation2 + $0x6d] sm:$0xff]
        %v380 = vmul.f32 %v372, 0.26254523
        %v381 = vmul.f32 %v373, 0.26254523
        %v382 = vmul.f32 %v374, 0.26254523
        %v383 = vmul.f32 %v375, 0.26254523
        %v384 = vmul.f32 %v376, 0.26254523
        %v385 = vmul.f32 %v377, 0.26254523
        %v386 = vmul.f32 %v378, 0.26254523
        %v387 = vmul.f32 %v379, 0.26254523
        %v388 = vadd.f32 %v364, %v380
        %v389 = vadd.f32 %v365, %v381
        %v390 = vadd.f32 %v366, %v382
        %v391 = vadd.f32 %v367, %v383
        %v392 = vadd.f32 %v368, %v384
        %v393 = vadd.f32 %v369, %v385
        %v394 = vadd.f32 %v370, %v386
        %v395 = vadd.f32 %v371, %v387
        %v396 = vld [vmem:[#allocation2 + $0x6] sm:$0xff]
        %v397 = vld [vmem:[#allocation2 + $0xe] sm:$0xff]
        %v398 = vld [vmem:[#allocation2 + $0x26] sm:$0xff]
        %v399 = vld [vmem:[#allocation2 + $0x2e] sm:$0xff]
        %v400 = vld [vmem:[#allocation2 + $0x46] sm:$0xff]
        %v401 = vld [vmem:[#allocation2 + $0x4e] sm:$0xff]
        %v402 = vld [vmem:[#allocation2 + $0x66] sm:$0xff]
        %v403 = vld [vmem:[#allocation2 + $0x6e] sm:$0xff]
        %v404 = vmul.f32 %v396, 0.21144673
        %v405 = vmul.f32 %v397, 0.21144673
        %v406 = vmul.f32 %v398, 0.21144673
        %v407 = vmul.f32 %v399, 0.21144673
        %v408 = vmul.f32 %v400, 0.21144673
        %v409 = vmul.f32 %v401, 0.21144673
        %v410 = vmul.f32 %v402, 0.21144673
        %v411 = vmul.f32 %v403, 0.21144673
        %v412 = vadd.f32 %v388, %v404
        %v413 = vadd.f32 %v389, %v405
        %v414 = vadd.f32 %v390, %v406
        %v415 = vadd.f32 %v391, %v407
        %v416 = vadd.f32 %v392, %v408
        %v417 = vadd.f32 %v393, %v409
        %v418 = vadd.f32 %v394, %v410
        %v419 = vadd.f32 %v395, %v411
        %v420 = vld [vmem:[#allocation2 + $0x7] sm:$0xff]
        %v421 = vld [vmem:[#allocation2 + $0xf] sm:$0xff]
        %v422 = vld [vmem:[#allocation2 + $0x27] sm:$0xff]
        %v423 = vld [vmem:[#allocation2 + $0x2f] sm:$0xff]
        %v424 = vld [vmem:[#allocation2 + $0x47] sm:$0xff]
        %v425 = vld [vmem:[#allocation2 + $0x4f] sm:$0xff]
        %v426 = vld [vmem:[#allocation2 + $0x67] sm:$0xff]
        %v427 = vld [vmem:[#allocation2 + $0x6f] sm:$0xff]
        %v428 = vmul.f32 %v420, 0.11045657
        %v429 = vmul.f32 %v421, 0.11045657
        %v430 = vmul.f32 %v422, 0.11045657
        %v431 = vmul.f32 %v423, 0.11045657
        %v432 = vmul.f32 %v424, 0.11045657
        %v433 = vmul.f32 %v425, 0.11045657
        %v434 = vmul.f32 %v426, 0.11045657
        %v435 = vmul.f32 %v427, 0.11045657
        %v436 = vadd.f32 %v412, %v428
        %v437 = vadd.f32 %v413, %v429
        %v438 = vadd.f32 %v414, %v430
        %v439 = vadd.f32 %v415, %v431
        %v440 = vadd.f32 %v416, %v432
        %v441 = vadd.f32 %v417, %v433
        %v442 = vadd.f32 %v418, %v434
        %v443 = vadd.f32 %v419, %v435
        %v444 = vld [vmem:[#allocation2 + $0x10] sm:$0xff]
        %v445 = vld [vmem:[#allocation2 + $0x30] sm:$0xff]
        %v446 = vld [vmem:[#allocation2 + $0x50] sm:$0xff]
        %v447 = vld [vmem:[#allocation2 + $0x70] sm:$0xff]
        %v448 = vmul.f32 %v261, 0.037426215
        %v449 = vmul.f32 %v444, 0.037426215
        %v450 = vmul.f32 %v263, 0.037426215
        %v451 = vmul.f32 %v445, 0.037426215
        %v452 = vmul.f32 %v265, 0.037426215
        %v453 = vmul.f32 %v446, 0.037426215
        %v454 = vmul.f32 %v267, 0.037426215
        %v455 = vmul.f32 %v447, 0.037426215
        %v456 = vadd.f32 %v436, %v448
        %v457 = vadd.f32 %v437, %v449
        %v458 = vadd.f32 %v438, %v450
        %v459 = vadd.f32 %v439, %v451
        %v460 = vadd.f32 %v440, %v452
        %v461 = vadd.f32 %v441, %v453
        %v462 = vadd.f32 %v442, %v454
        %v463 = vadd.f32 %v443, %v455
        %v464 = vld [vmem:[#allocation2 + $0x11] sm:$0xff]
        %v465 = vld [vmem:[#allocation2 + $0x31] sm:$0xff]
        %v466 = vld [vmem:[#allocation2 + $0x51] sm:$0xff]
        %v467 = vld [vmem:[#allocation2 + $0x71] sm:$0xff]
        %v468 = vmul.f32 %v464, 0.008225341
        %v469 = vmul.f32 %v465, 0.008225341
        %v470 = vmul.f32 %v466, 0.008225341
        %v471 = vmul.f32 %v467, 0.008225341
        %v472 = vadd.f32 %v456, %v285
        %v473 = vadd.f32 %v457, %v468
        %v474 = vadd.f32 %v458, %v287
        %v475 = vadd.f32 %v459, %v469
        %v476 = vadd.f32 %v460, %v289
        %v477 = vadd.f32 %v461, %v470
        %v478 = vadd.f32 %v462, %v291
        %v479 = vadd.f32 %v463, %v471
        %v480 = vld [vmem:[#allocation2 + $0x12] sm:$0xff]
        %v481 = vld [vmem:[#allocation2 + $0x32] sm:$0xff]
        %v482 = vld [vmem:[#allocation2 + $0x52] sm:$0xff]
        %v483 = vld [vmem:[#allocation2 + $0x72] sm:$0xff]
        %v484 = vmul.f32 %v301, 0.0011725348
        %v485 = vmul.f32 %v480, 0.0011725348
        %v486 = vmul.f32 %v303, 0.0011725348
        %v487 = vmul.f32 %v481, 0.0011725348
        %v488 = vmul.f32 %v305, 0.0011725348
        %v489 = vmul.f32 %v482, 0.0011725348
        %v490 = vmul.f32 %v307, 0.0011725348
        %v491 = vmul.f32 %v483, 0.0011725348
        %v492 = vadd.f32 %v472, %v484
        %v493 = vadd.f32 %v473, %v485
        %v494 = vadd.f32 %v474, %v486
        %v495 = vadd.f32 %v475, %v487
        %v496 = vadd.f32 %v476, %v488
        %v497 = vadd.f32 %v477, %v489
        %v498 = vadd.f32 %v478, %v490
        %v499 = vadd.f32 %v479, %v491
        %508 = vrot.lane.b32.xlu0 %v492, 5
        %v509 = vpop.permute.xlu0 %508
        %510 = vrot.lane.b32.xlu0 %v493, 5
        %v511 = vpop.permute.xlu0 %510
        %512 = vrot.lane.b32.xlu0 %v494, 5
        %v513 = vpop.permute.xlu0 %512
        %514 = vrot.lane.b32.xlu0 %v495, 5
        %v515 = vpop.permute.xlu0 %514
        %516 = vrot.lane.b32.xlu0 %v496, 5
        %v517 = vpop.permute.xlu0 %516
        %518 = vrot.lane.b32.xlu0 %v497, 5
        %v519 = vpop.permute.xlu0 %518
        %520 = vrot.lane.b32.xlu0 %v498, 5
        %v521 = vpop.permute.xlu0 %520
        %522 = vrot.lane.b32.xlu0 %v499, 5
        %v523 = vpop.permute.xlu0 %522
        %vm532 = vcmask 171048
        %533 = vst.msk [vmem:[#allocation3] sm:$0xff] %vm532, %v509
        %534 = vst.msk [vmem:[#allocation3 + $0x8] sm:$0xff] %vm532, %v511
        %535 = vst.msk [vmem:[#allocation3 + $0x10] sm:$0xff] %vm532, %v513
        %536 = vst.msk [vmem:[#allocation3 + $0x18] sm:$0xff] %vm532, %v515
        %537 = vst.msk [vmem:[#allocation3 + $0x20] sm:$0xff] %vm532, %v517
        %538 = vst.msk [vmem:[#allocation3 + $0x28] sm:$0xff] %vm532, %v519
        %539 = vst.msk [vmem:[#allocation3 + $0x30] sm:$0xff] %vm532, %v521
        %540 = vst.msk [vmem:[#allocation3 + $0x38] sm:$0xff] %vm532, %v523
        %541 = vrot.lane.b32.xlu0 %v492, 3
        %v542 = vpop.permute.xlu0 %541
        %543 = vrot.lane.b32.xlu0 %v493, 3
        %v544 = vpop.permute.xlu0 %543
        %545 = vrot.lane.b32.xlu0 %v494, 3
        %v546 = vpop.permute.xlu0 %545
        %547 = vrot.lane.b32.xlu0 %v495, 3
        %v548 = vpop.permute.xlu0 %547
        %549 = vrot.lane.b32.xlu0 %v496, 3
        %v550 = vpop.permute.xlu0 %549
        %551 = vrot.lane.b32.xlu0 %v497, 3
        %v552 = vpop.permute.xlu0 %551
        %553 = vrot.lane.b32.xlu0 %v498, 3
        %v554 = vpop.permute.xlu0 %553
        %555 = vrot.lane.b32.xlu0 %v499, 3
        %v556 = vpop.permute.xlu0 %555
        %vm565 = vcmask 39968
        %566 = vst.msk [vmem:[#allocation3] sm:$0xff] %vm565, %v542
        %567 = vst.msk [vmem:[#allocation3 + $0x8] sm:$0xff] %vm565, %v544
        %568 = vst.msk [vmem:[#allocation3 + $0x10] sm:$0xff] %vm565, %v546
        %569 = vst.msk [vmem:[#allocation3 + $0x18] sm:$0xff] %vm565, %v548
        %570 = vst.msk [vmem:[#allocation3 + $0x20] sm:$0xff] %vm565, %v550
        %571 = vst.msk [vmem:[#allocation3 + $0x28] sm:$0xff] %vm565, %v552
        %572 = vst.msk [vmem:[#allocation3 + $0x30] sm:$0xff] %vm565, %v554
        %573 = vst.msk [vmem:[#allocation3 + $0x38] sm:$0xff] %vm565, %v556
        %574 = vrot.lane.b32.xlu0 %v492, 7
        %v575 = vpop.permute.xlu0 %574
        %576 = vrot.lane.b32.xlu0 %v493, 7
        %v577 = vpop.permute.xlu0 %576
        %578 = vrot.lane.b32.xlu0 %v494, 7
        %v579 = vpop.permute.xlu0 %578
        %580 = vrot.lane.b32.xlu0 %v495, 7
        %v581 = vpop.permute.xlu0 %580
        %582 = vrot.lane.b32.xlu0 %v496, 7
        %v583 = vpop.permute.xlu0 %582
        %584 = vrot.lane.b32.xlu0 %v497, 7
        %v585 = vpop.permute.xlu0 %584
        %586 = vrot.lane.b32.xlu0 %v498, 7
        %v587 = vpop.permute.xlu0 %586
        %588 = vrot.lane.b32.xlu0 %v499, 7
        %v589 = vpop.permute.xlu0 %588
        %vm598 = vcmask 179368
        %599 = vst.msk [vmem:[#allocation3] sm:$0xff] %vm598, %v575
        %600 = vst.msk [vmem:[#allocation3 + $0x8] sm:$0xff] %vm598, %v577
        %601 = vst.msk [vmem:[#allocation3 + $0x10] sm:$0xff] %vm598, %v579
        %602 = vst.msk [vmem:[#allocation3 + $0x18] sm:$0xff] %vm598, %v581
        %603 = vst.msk [vmem:[#allocation3 + $0x20] sm:$0xff] %vm598, %v583
        %604 = vst.msk [vmem:[#allocation3 + $0x28] sm:$0xff] %vm598, %v585
        %605 = vst.msk [vmem:[#allocation3 + $0x30] sm:$0xff] %vm598, %v587
        %606 = vst.msk [vmem:[#allocation3 + $0x38] sm:$0xff] %vm598, %v589
        %607 = vrot.lane.b32.xlu0 %v492, 1
        %v608 = vpop.permute.xlu0 %607
        %609 = vrot.lane.b32.xlu0 %v493, 1
        %v610 = vpop.permute.xlu0 %609
        %611 = vrot.lane.b32.xlu0 %v494, 1
        %v612 = vpop.permute.xlu0 %611
        %613 = vrot.lane.b32.xlu0 %v495, 1
        %v614 = vpop.permute.xlu0 %613
        %615 = vrot.lane.b32.xlu0 %v496, 1
        %v616 = vpop.permute.xlu0 %615
        %617 = vrot.lane.b32.xlu0 %v497, 1
        %v618 = vpop.permute.xlu0 %617
        %619 = vrot.lane.b32.xlu0 %v498, 1
        %v620 = vpop.permute.xlu0 %619
        %621 = vrot.lane.b32.xlu0 %v499, 1
        %v622 = vpop.permute.xlu0 %621
        %vm631 = vcmask 31768
        %632 = vst.msk [vmem:[#allocation3] sm:$0xff] %vm631, %v608
        %633 = vst.msk [vmem:[#allocation3 + $0x8] sm:$0xff] %vm631, %v610
        %634 = vst.msk [vmem:[#allocation3 + $0x10] sm:$0xff] %vm631, %v612
        %635 = vst.msk [vmem:[#allocation3 + $0x18] sm:$0xff] %vm631, %v614
        %636 = vst.msk [vmem:[#allocation3 + $0x20] sm:$0xff] %vm631, %v616
        %637 = vst.msk [vmem:[#allocation3 + $0x28] sm:$0xff] %vm631, %v618
        %638 = vst.msk [vmem:[#allocation3 + $0x30] sm:$0xff] %vm631, %v620
        %639 = vst.msk [vmem:[#allocation3 + $0x38] sm:$0xff] %vm631, %v622
        %640 = vrot.lane.b32.xlu0 %v492, 9
        %v641 = vpop.permute.xlu0 %640
        %642 = vrot.lane.b32.xlu0 %v493, 9
        %v643 = vpop.permute.xlu0 %642
        %644 = vrot.lane.b32.xlu0 %v494, 9
        %v645 = vpop.permute.xlu0 %644
        %646 = vrot.lane.b32.xlu0 %v495, 9
        %v647 = vpop.permute.xlu0 %646
        %648 = vrot.lane.b32.xlu0 %v496, 9
        %v649 = vpop.permute.xlu0 %648
        %650 = vrot.lane.b32.xlu0 %v497, 9
        %v651 = vpop.permute.xlu0 %650
        %652 = vrot.lane.b32.xlu0 %v498, 9
        %v653 = vpop.permute.xlu0 %652
        %654 = vrot.lane.b32.xlu0 %v499, 9
        %v655 = vpop.permute.xlu0 %654
        %vm664 = vcmask 187568
        %665 = vst.msk [vmem:[#allocation3] sm:$0xff] %vm664, %v641
        %666 = vst.msk [vmem:[#allocation3 + $0x8] sm:$0xff] %vm664, %v643
        %667 = vst.msk [vmem:[#allocation3 + $0x10] sm:$0xff] %vm664, %v645
        %668 = vst.msk [vmem:[#allocation3 + $0x18] sm:$0xff] %vm664, %v647
        %669 = vst.msk [vmem:[#allocation3 + $0x20] sm:$0xff] %vm664, %v649
        %670 = vst.msk [vmem:[#allocation3 + $0x28] sm:$0xff] %vm664, %v651
        %671 = vst.msk [vmem:[#allocation3 + $0x30] sm:$0xff] %vm664, %v653
        %672 = vst.msk [vmem:[#allocation3 + $0x38] sm:$0xff] %vm664, %v655
        %673 = vrot.lane.b32.xlu0 %v492, 127
        %v674 = vpop.permute.xlu0 %673
        %675 = vrot.lane.b32.xlu0 %v493, 127
        %v676 = vpop.permute.xlu0 %675
        %677 = vrot.lane.b32.xlu0 %v494, 127
        %v678 = vpop.permute.xlu0 %677
        %679 = vrot.lane.b32.xlu0 %v495, 127
        %v680 = vpop.permute.xlu0 %679
        %681 = vrot.lane.b32.xlu0 %v496, 127
        %v682 = vpop.permute.xlu0 %681
        %683 = vrot.lane.b32.xlu0 %v497, 127
        %v684 = vpop.permute.xlu0 %683
        %685 = vrot.lane.b32.xlu0 %v498, 127
        %v686 = vpop.permute.xlu0 %685
        %687 = vrot.lane.b32.xlu0 %v499, 127
        %v688 = vpop.permute.xlu0 %687
        %vm697 = vcmask 23568
        %698 = vst.msk [vmem:[#allocation3] sm:$0xff] %vm697, %v674
        %699 = vst.msk [vmem:[#allocation3 + $0x8] sm:$0xff] %vm697, %v676
        %700 = vst.msk [vmem:[#allocation3 + $0x10] sm:$0xff] %vm697, %v678
        %701 = vst.msk [vmem:[#allocation3 + $0x18] sm:$0xff] %vm697, %v680
        %702 = vst.msk [vmem:[#allocation3 + $0x20] sm:$0xff] %vm697, %v682
        %703 = vst.msk [vmem:[#allocation3 + $0x28] sm:$0xff] %vm697, %v684
        %704 = vst.msk [vmem:[#allocation3 + $0x30] sm:$0xff] %vm697, %v686
        %705 = vst.msk [vmem:[#allocation3 + $0x38] sm:$0xff] %vm697, %v688
        %706 = vrot.lane.b32.xlu0 %v492, 11
        %v707 = vpop.permute.xlu0 %706
        %708 = vrot.lane.b32.xlu0 %v493, 11
        %v709 = vpop.permute.xlu0 %708
        %710 = vrot.lane.b32.xlu0 %v494, 11
        %v711 = vpop.permute.xlu0 %710
        %712 = vrot.lane.b32.xlu0 %v495, 11
        %v713 = vpop.permute.xlu0 %712
        %714 = vrot.lane.b32.xlu0 %v496, 11
        %v715 = vpop.permute.xlu0 %714
        %716 = vrot.lane.b32.xlu0 %v497, 11
        %v717 = vpop.permute.xlu0 %716
        %718 = vrot.lane.b32.xlu0 %v498, 11
        %v719 = vpop.permute.xlu0 %718
        %720 = vrot.lane.b32.xlu0 %v499, 11
        %v721 = vpop.permute.xlu0 %720
        %vm730 = vcmask 195768
        %731 = vst.msk [vmem:[#allocation3] sm:$0xff] %vm730, %v707
        %732 = vst.msk [vmem:[#allocation3 + $0x8] sm:$0xff] %vm730, %v709
        %733 = vst.msk [vmem:[#allocation3 + $0x10] sm:$0xff] %vm730, %v711
        %734 = vst.msk [vmem:[#allocation3 + $0x18] sm:$0xff] %vm730, %v713
        %735 = vst.msk [vmem:[#allocation3 + $0x20] sm:$0xff] %vm730, %v715
        %736 = vst.msk [vmem:[#allocation3 + $0x28] sm:$0xff] %vm730, %v717
        %737 = vst.msk [vmem:[#allocation3 + $0x30] sm:$0xff] %vm730, %v719
        %738 = vst.msk [vmem:[#allocation3 + $0x38] sm:$0xff] %vm730, %v721
        %739 = vrot.lane.b32.xlu0 %v492, 125
        %v740 = vpop.permute.xlu0 %739
        %741 = vrot.lane.b32.xlu0 %v493, 125
        %v742 = vpop.permute.xlu0 %741
        %743 = vrot.lane.b32.xlu0 %v494, 125
        %v744 = vpop.permute.xlu0 %743
        %745 = vrot.lane.b32.xlu0 %v495, 125
        %v746 = vpop.permute.xlu0 %745
        %747 = vrot.lane.b32.xlu0 %v496, 125
        %v748 = vpop.permute.xlu0 %747
        %749 = vrot.lane.b32.xlu0 %v497, 125
        %v750 = vpop.permute.xlu0 %749
        %751 = vrot.lane.b32.xlu0 %v498, 125
        %v752 = vpop.permute.xlu0 %751
        %753 = vrot.lane.b32.xlu0 %v499, 125
        %v754 = vpop.permute.xlu0 %753
        %vm763 = vcmask 15368
        %764 = vst.msk [vmem:[#allocation3] sm:$0xff] %vm763, %v740
        %765 = vst.msk [vmem:[#allocation3 + $0x8] sm:$0xff] %vm763, %v742
        %766 = vst.msk [vmem:[#allocation3 + $0x10] sm:$0xff] %vm763, %v744
        %767 = vst.msk [vmem:[#allocation3 + $0x18] sm:$0xff] %vm763, %v746
        %768 = vst.msk [vmem:[#allocation3 + $0x20] sm:$0xff] %vm763, %v748
        %769 = vst.msk [vmem:[#allocation3 + $0x28] sm:$0xff] %vm763, %v750
        %770 = vst.msk [vmem:[#allocation3 + $0x30] sm:$0xff] %vm763, %v752
        %771 = vst.msk [vmem:[#allocation3 + $0x38] sm:$0xff] %vm763, %v754
        %772 = vrot.lane.b32.xlu0 %v492, 13
        %v773 = vpop.permute.xlu0 %772
        %774 = vrot.lane.b32.xlu0 %v493, 13
        %v775 = vpop.permute.xlu0 %774
        %776 = vrot.lane.b32.xlu0 %v494, 13
        %v777 = vpop.permute.xlu0 %776
        %778 = vrot.lane.b32.xlu0 %v495, 13
        %v779 = vpop.permute.xlu0 %778
        %780 = vrot.lane.b32.xlu0 %v496, 13
        %v781 = vpop.permute.xlu0 %780
        %782 = vrot.lane.b32.xlu0 %v497, 13
        %v783 = vpop.permute.xlu0 %782
        %784 = vrot.lane.b32.xlu0 %v498, 13
        %v785 = vpop.permute.xlu0 %784
        %786 = vrot.lane.b32.xlu0 %v499, 13
        %v787 = vpop.permute.xlu0 %786
        %vm796 = vcmask 203968
        %797 = vst.msk [vmem:[#allocation3] sm:$0xff] %vm796, %v773
        %798 = vst.msk [vmem:[#allocation3 + $0x8] sm:$0xff] %vm796, %v775
        %799 = vst.msk [vmem:[#allocation3 + $0x10] sm:$0xff] %vm796, %v777
        %800 = vst.msk [vmem:[#allocation3 + $0x18] sm:$0xff] %vm796, %v779
        %801 = vst.msk [vmem:[#allocation3 + $0x20] sm:$0xff] %vm796, %v781
        %802 = vst.msk [vmem:[#allocation3 + $0x28] sm:$0xff] %vm796, %v783
        %803 = vst.msk [vmem:[#allocation3 + $0x30] sm:$0xff] %vm796, %v785
        %804 = vst.msk [vmem:[#allocation3 + $0x38] sm:$0xff] %vm796, %v787
        %805 = vrot.lane.b32.xlu0 %v492, 123
        %v806 = vpop.permute.xlu0 %805
        %807 = vrot.lane.b32.xlu0 %v493, 123
        %v808 = vpop.permute.xlu0 %807
        %809 = vrot.lane.b32.xlu0 %v494, 123
        %v810 = vpop.permute.xlu0 %809
        %811 = vrot.lane.b32.xlu0 %v495, 123
        %v812 = vpop.permute.xlu0 %811
        %813 = vrot.lane.b32.xlu0 %v496, 123
        %v814 = vpop.permute.xlu0 %813
        %815 = vrot.lane.b32.xlu0 %v497, 123
        %v816 = vpop.permute.xlu0 %815
        %817 = vrot.lane.b32.xlu0 %v498, 123
        %v818 = vpop.permute.xlu0 %817
        %819 = vrot.lane.b32.xlu0 %v499, 123
        %v820 = vpop.permute.xlu0 %819
        %vm829 = vcmask 7168
        %830 = vst.msk [vmem:[#allocation3] sm:$0xff] %vm829, %v806
        %831 = vst.msk [vmem:[#allocation3 + $0x8] sm:$0xff] %vm829, %v808
        %832 = vst.msk [vmem:[#allocation3 + $0x10] sm:$0xff] %vm829, %v810
        %833 = vst.msk [vmem:[#allocation3 + $0x18] sm:$0xff] %vm829, %v812
        %834 = vst.msk [vmem:[#allocation3 + $0x20] sm:$0xff] %vm829, %v814
        %835 = vst.msk [vmem:[#allocation3 + $0x28] sm:$0xff] %vm829, %v816
        %836 = vst.msk [vmem:[#allocation3 + $0x30] sm:$0xff] %vm829, %v818
        %837 = vst.msk [vmem:[#allocation3 + $0x38] sm:$0xff] %vm829, %v820
        %838 = vrot.lane.b32.xlu0 %v492, 15
        %v839 = vpop.permute.xlu0 %838
        %840 = vrot.lane.b32.xlu0 %v493, 15
        %v841 = vpop.permute.xlu0 %840
        %842 = vrot.lane.b32.xlu0 %v494, 15
        %v843 = vpop.permute.xlu0 %842
        %844 = vrot.lane.b32.xlu0 %v495, 15
        %v845 = vpop.permute.xlu0 %844
        %846 = vrot.lane.b32.xlu0 %v496, 15
        %v847 = vpop.permute.xlu0 %846
        %848 = vrot.lane.b32.xlu0 %v497, 15
        %v849 = vpop.permute.xlu0 %848
        %850 = vrot.lane.b32.xlu0 %v498, 15
        %v851 = vpop.permute.xlu0 %850
        %852 = vrot.lane.b32.xlu0 %v499, 15
        %v853 = vpop.permute.xlu0 %852
        %vm862 = vcmask 212168
        %863 = vst.msk [vmem:[#allocation3] sm:$0xff] %vm862, %v839
        %864 = vst.msk [vmem:[#allocation3 + $0x8] sm:$0xff] %vm862, %v841
        %865 = vst.msk [vmem:[#allocation3 + $0x10] sm:$0xff] %vm862, %v843
        %866 = vst.msk [vmem:[#allocation3 + $0x18] sm:$0xff] %vm862, %v845
        %867 = vst.msk [vmem:[#allocation3 + $0x20] sm:$0xff] %vm862, %v847
        %868 = vst.msk [vmem:[#allocation3 + $0x28] sm:$0xff] %vm862, %v849
        %869 = vst.msk [vmem:[#allocation3 + $0x30] sm:$0xff] %vm862, %v851
        %870 = vst.msk [vmem:[#allocation3 + $0x38] sm:$0xff] %vm862, %v853
        %v871 = vld [vmem:[#allocation3] sm:$0xff]
        %v872 = vld [vmem:[#allocation3 + $0x8] sm:$0xff]
        %v873 = vld [vmem:[#allocation3 + $0x10] sm:$0xff]
        %v874 = vld [vmem:[#allocation3 + $0x18] sm:$0xff]
        %v875 = vld [vmem:[#allocation3 + $0x20] sm:$0xff]
        %v876 = vld [vmem:[#allocation3 + $0x28] sm:$0xff]
        %v877 = vld [vmem:[#allocation3 + $0x30] sm:$0xff]
        %v878 = vld [vmem:[#allocation3 + $0x38] sm:$0xff]
        %v879 = vmul.f32 %v871, 0.0011725348
        %v880 = vmul.f32 %v872, 0.0011725348
        %v881 = vmul.f32 %v873, 0.0011725348
        %v882 = vmul.f32 %v874, 0.0011725348
        %v883 = vmul.f32 %v875, 0.0011725348
        %v884 = vmul.f32 %v876, 0.0011725348
        %v885 = vmul.f32 %v877, 0.0011725348
        %v886 = vmul.f32 %v878, 0.0011725348
        %v887 = vmul.f32 %v871, 0.008225341
        %v888 = vmul.f32 %v872, 0.008225341
        %v889 = vmul.f32 %v873, 0.008225341
        %v890 = vmul.f32 %v874, 0.008225341
        %v891 = vmul.f32 %v875, 0.008225341
        %v892 = vmul.f32 %v876, 0.008225341
        %v893 = vmul.f32 %v877, 0.008225341
        %v894 = vmul.f32 %v878, 0.008225341
        %903 = vrot.lane.b32.xlu0 %v887, 127
        %v904 = vpop.permute.xlu0 %903
        %905 = vrot.lane.b32.xlu0 %v888, 127
        %v906 = vpop.permute.xlu0 %905
        %907 = vrot.lane.b32.xlu0 %v889, 127
        %v908 = vpop.permute.xlu0 %907
        %909 = vrot.lane.b32.xlu0 %v890, 127
        %v910 = vpop.permute.xlu0 %909
        %911 = vrot.lane.b32.xlu0 %v891, 127
        %v912 = vpop.permute.xlu0 %911
        %913 = vrot.lane.b32.xlu0 %v892, 127
        %v914 = vpop.permute.xlu0 %913
        %915 = vrot.lane.b32.xlu0 %v893, 127
        %v916 = vpop.permute.xlu0 %915
        %917 = vrot.lane.b32.xlu0 %v894, 127
        %v918 = vpop.permute.xlu0 %917
        %v927 = vadd.f32 %v879, %v904
        %v928 = vadd.f32 %v880, %v906
        %v929 = vadd.f32 %v881, %v908
        %v930 = vadd.f32 %v882, %v910
        %v931 = vadd.f32 %v883, %v912
        %v932 = vadd.f32 %v884, %v914
        %v933 = vadd.f32 %v885, %v916
        %v934 = vadd.f32 %v886, %v918
        %v935 = vmul.f32 %v871, 0.037426215
        %v936 = vmul.f32 %v872, 0.037426215
        %v937 = vmul.f32 %v873, 0.037426215
        %v938 = vmul.f32 %v874, 0.037426215
        %v939 = vmul.f32 %v875, 0.037426215
        %v940 = vmul.f32 %v876, 0.037426215
        %v941 = vmul.f32 %v877, 0.037426215
        %v942 = vmul.f32 %v878, 0.037426215
        %951 = vrot.lane.b32.xlu0 %v935, 126
        %v952 = vpop.permute.xlu0 %951
        %953 = vrot.lane.b32.xlu0 %v936, 126
        %v954 = vpop.permute.xlu0 %953
        %955 = vrot.lane.b32.xlu0 %v937, 126
        %v956 = vpop.permute.xlu0 %955
        %957 = vrot.lane.b32.xlu0 %v938, 126
        %v958 = vpop.permute.xlu0 %957
        %959 = vrot.lane.b32.xlu0 %v939, 126
        %v960 = vpop.permute.xlu0 %959
        %961 = vrot.lane.b32.xlu0 %v940, 126
        %v962 = vpop.permute.xlu0 %961
        %963 = vrot.lane.b32.xlu0 %v941, 126
        %v964 = vpop.permute.xlu0 %963
        %965 = vrot.lane.b32.xlu0 %v942, 126
        %v966 = vpop.permute.xlu0 %965
        %v975 = vadd.f32 %v927, %v952
        %v976 = vadd.f32 %v928, %v954
        %v977 = vadd.f32 %v929, %v956
        %v978 = vadd.f32 %v930, %v958
        %v979 = vadd.f32 %v931, %v960
        %v980 = vadd.f32 %v932, %v962
        %v981 = vadd.f32 %v933, %v964
        %v982 = vadd.f32 %v934, %v966
        %v983 = vmul.f32 %v871, 0.11045657
        %v984 = vmul.f32 %v872, 0.11045657
        %v985 = vmul.f32 %v873, 0.11045657
        %v986 = vmul.f32 %v874, 0.11045657
        %v987 = vmul.f32 %v875, 0.11045657
        %v988 = vmul.f32 %v876, 0.11045657
        %v989 = vmul.f32 %v877, 0.11045657
        %v990 = vmul.f32 %v878, 0.11045657
        %999 = vrot.lane.b32.xlu0 %v983, 125
        %v1000 = vpop.permute.xlu0 %999
        %1001 = vrot.lane.b32.xlu0 %v984, 125
        %v1002 = vpop.permute.xlu0 %1001
        %1003 = vrot.lane.b32.xlu0 %v985, 125
        %v1004 = vpop.permute.xlu0 %1003
        %1005 = vrot.lane.b32.xlu0 %v986, 125
        %v1006 = vpop.permute.xlu0 %1005
        %1007 = vrot.lane.b32.xlu0 %v987, 125
        %v1008 = vpop.permute.xlu0 %1007
        %1009 = vrot.lane.b32.xlu0 %v988, 125
        %v1010 = vpop.permute.xlu0 %1009
        %1011 = vrot.lane.b32.xlu0 %v989, 125
        %v1012 = vpop.permute.xlu0 %1011
        %1013 = vrot.lane.b32.xlu0 %v990, 125
        %v1014 = vpop.permute.xlu0 %1013
        %v1023 = vadd.f32 %v975, %v1000
        %v1024 = vadd.f32 %v976, %v1002
        %v1025 = vadd.f32 %v977, %v1004
        %v1026 = vadd.f32 %v978, %v1006
        %v1027 = vadd.f32 %v979, %v1008
        %v1028 = vadd.f32 %v980, %v1010
        %v1029 = vadd.f32 %v981, %v1012
        %v1030 = vadd.f32 %v982, %v1014
        %v1031 = vmul.f32 %v871, 0.21144673
        %v1032 = vmul.f32 %v872, 0.21144673
        %v1033 = vmul.f32 %v873, 0.21144673
        %v1034 = vmul.f32 %v874, 0.21144673
        %v1035 = vmul.f32 %v875, 0.21144673
        %v1036 = vmul.f32 %v876, 0.21144673
        %v1037 = vmul.f32 %v877, 0.21144673
        %v1038 = vmul.f32 %v878, 0.21144673
        %1047 = vrot.lane.b32.xlu0 %v1031, 124
        %v1048 = vpop.permute.xlu0 %1047
        %1049 = vrot.lane.b32.xlu0 %v1032, 124
        %v1050 = vpop.permute.xlu0 %1049
        %1051 = vrot.lane.b32.xlu0 %v1033, 124
        %v1052 = vpop.permute.xlu0 %1051
        %1053 = vrot.lane.b32.xlu0 %v1034, 124
        %v1054 = vpop.permute.xlu0 %1053
        %1055 = vrot.lane.b32.xlu0 %v1035, 124
        %v1056 = vpop.permute.xlu0 %1055
        %1057 = vrot.lane.b32.xlu0 %v1036, 124
        %v1058 = vpop.permute.xlu0 %1057
        %1059 = vrot.lane.b32.xlu0 %v1037, 124
        %v1060 = vpop.permute.xlu0 %1059
        %1061 = vrot.lane.b32.xlu0 %v1038, 124
        %v1062 = vpop.permute.xlu0 %1061
        %v1071 = vadd.f32 %v1023, %v1048
        %v1072 = vadd.f32 %v1024, %v1050
        %v1073 = vadd.f32 %v1025, %v1052
        %v1074 = vadd.f32 %v1026, %v1054
        %v1075 = vadd.f32 %v1027, %v1056
        %v1076 = vadd.f32 %v1028, %v1058
        %v1077 = vadd.f32 %v1029, %v1060
        %v1078 = vadd.f32 %v1030, %v1062
        %v1079 = vmul.f32 %v871, 0.26254523
        %v1080 = vmul.f32 %v872, 0.26254523
        %v1081 = vmul.f32 %v873, 0.26254523
        %v1082 = vmul.f32 %v874, 0.26254523
        %v1083 = vmul.f32 %v875, 0.26254523
        %v1084 = vmul.f32 %v876, 0.26254523
        %v1085 = vmul.f32 %v877, 0.26254523
        %v1086 = vmul.f32 %v878, 0.26254523
        %1095 = vrot.lane.b32.xlu0 %v1079, 123
        %v1096 = vpop.permute.xlu0 %1095
        %1097 = vrot.lane.b32.xlu0 %v1080, 123
        %v1098 = vpop.permute.xlu0 %1097
        %1099 = vrot.lane.b32.xlu0 %v1081, 123
        %v1100 = vpop.permute.xlu0 %1099
        %1101 = vrot.lane.b32.xlu0 %v1082, 123
        %v1102 = vpop.permute.xlu0 %1101
        %1103 = vrot.lane.b32.xlu0 %v1083, 123
        %v1104 = vpop.permute.xlu0 %1103
        %1105 = vrot.lane.b32.xlu0 %v1084, 123
        %v1106 = vpop.permute.xlu0 %1105
        %1107 = vrot.lane.b32.xlu0 %v1085, 123
        %v1108 = vpop.permute.xlu0 %1107
        %1109 = vrot.lane.b32.xlu0 %v1086, 123
        %v1110 = vpop.permute.xlu0 %1109
        %v1119 = vadd.f32 %v1071, %v1096
        %v1120 = vadd.f32 %v1072, %v1098
        %v1121 = vadd.f32 %v1073, %v1100
        %v1122 = vadd.f32 %v1074, %v1102
        %v1123 = vadd.f32 %v1075, %v1104
        %v1124 = vadd.f32 %v1076, %v1106
        %v1125 = vadd.f32 %v1077, %v1108
        %v1126 = vadd.f32 %v1078, %v1110
        %1127 = vrot.lane.b32.xlu0 %v1031, 122
        %v1128 = vpop.permute.xlu0 %1127
        %1129 = vrot.lane.b32.xlu0 %v1032, 122
        %v1130 = vpop.permute.xlu0 %1129
        %1131 = vrot.lane.b32.xlu0 %v1033, 122
        %v1132 = vpop.permute.xlu0 %1131
        %1133 = vrot.lane.b32.xlu0 %v1034, 122
        %v1134 = vpop.permute.xlu0 %1133
        %1135 = vrot.lane.b32.xlu0 %v1035, 122
        %v1136 = vpop.permute.xlu0 %1135
        %1137 = vrot.lane.b32.xlu0 %v1036, 122
        %v1138 = vpop.permute.xlu0 %1137
        %1139 = vrot.lane.b32.xlu0 %v1037, 122
        %v1140 = vpop.permute.xlu0 %1139
        %1141 = vrot.lane.b32.xlu0 %v1038, 122
        %v1142 = vpop.permute.xlu0 %1141
        %v1151 = vadd.f32 %v1119, %v1128
        %v1152 = vadd.f32 %v1120, %v1130
        %v1153 = vadd.f32 %v1121, %v1132
        %v1154 = vadd.f32 %v1122, %v1134
        %v1155 = vadd.f32 %v1123, %v1136
        %v1156 = vadd.f32 %v1124, %v1138
        %v1157 = vadd.f32 %v1125, %v1140
        %v1158 = vadd.f32 %v1126, %v1142
        %1159 = vrot.lane.b32.xlu0 %v983, 121
        %v1160 = vpop.permute.xlu0 %1159
        %1161 = vrot.lane.b32.xlu0 %v984, 121
        %v1162 = vpop.permute.xlu0 %1161
        %1163 = vrot.lane.b32.xlu0 %v985, 121
        %v1164 = vpop.permute.xlu0 %1163
        %1165 = vrot.lane.b32.xlu0 %v986, 121
        %v1166 = vpop.permute.xlu0 %1165
        %1167 = vrot.lane.b32.xlu0 %v987, 121
        %v1168 = vpop.permute.xlu0 %1167
        %1169 = vrot.lane.b32.xlu0 %v988, 121
        %v1170 = vpop.permute.xlu0 %1169
        %1171 = vrot.lane.b32.xlu0 %v989, 121
        %v1172 = vpop.permute.xlu0 %1171
        %1173 = vrot.lane.b32.xlu0 %v990, 121
        %v1174 = vpop.permute.xlu0 %1173
        %v1183 = vadd.f32 %v1151, %v1160
        %v1184 = vadd.f32 %v1152, %v1162
        %v1185 = vadd.f32 %v1153, %v1164
        %v1186 = vadd.f32 %v1154, %v1166
        %v1187 = vadd.f32 %v1155, %v1168
        %v1188 = vadd.f32 %v1156, %v1170
        %v1189 = vadd.f32 %v1157, %v1172
        %v1190 = vadd.f32 %v1158, %v1174
        %1191 = vrot.lane.b32.xlu0 %v935, 120
        %v1192 = vpop.permute.xlu0 %1191
        %1193 = vrot.lane.b32.xlu0 %v936, 120
        %v1194 = vpop.permute.xlu0 %1193
        %1195 = vrot.lane.b32.xlu0 %v937, 120
        %v1196 = vpop.permute.xlu0 %1195
        %1197 = vrot.lane.b32.xlu0 %v938, 120
        %v1198 = vpop.permute.xlu0 %1197
        %1199 = vrot.lane.b32.xlu0 %v939, 120
        %v1200 = vpop.permute.xlu0 %1199
        %1201 = vrot.lane.b32.xlu0 %v940, 120
        %v1202 = vpop.permute.xlu0 %1201
        %1203 = vrot.lane.b32.xlu0 %v941, 120
        %v1204 = vpop.permute.xlu0 %1203
        %1205 = vrot.lane.b32.xlu0 %v942, 120
        %v1206 = vpop.permute.xlu0 %1205
        %v1215 = vadd.f32 %v1183, %v1192
        %v1216 = vadd.f32 %v1184, %v1194
        %v1217 = vadd.f32 %v1185, %v1196
        %v1218 = vadd.f32 %v1186, %v1198
        %v1219 = vadd.f32 %v1187, %v1200
        %v1220 = vadd.f32 %v1188, %v1202
        %v1221 = vadd.f32 %v1189, %v1204
        %v1222 = vadd.f32 %v1190, %v1206
        %1223 = vrot.lane.b32.xlu0 %v887, 119
        %v1224 = vpop.permute.xlu0 %1223
        %1225 = vrot.lane.b32.xlu0 %v888, 119
        %v1226 = vpop.permute.xlu0 %1225
        %1227 = vrot.lane.b32.xlu0 %v889, 119
        %v1228 = vpop.permute.xlu0 %1227
        %1229 = vrot.lane.b32.xlu0 %v890, 119
        %v1230 = vpop.permute.xlu0 %1229
        %1231 = vrot.lane.b32.xlu0 %v891, 119
        %v1232 = vpop.permute.xlu0 %1231
        %1233 = vrot.lane.b32.xlu0 %v892, 119
        %v1234 = vpop.permute.xlu0 %1233
        %1235 = vrot.lane.b32.xlu0 %v893, 119
        %v1236 = vpop.permute.xlu0 %1235
        %1237 = vrot.lane.b32.xlu0 %v894, 119
        %v1238 = vpop.permute.xlu0 %1237
        %v1247 = vadd.f32 %v1215, %v1224
        %v1248 = vadd.f32 %v1216, %v1226
        %v1249 = vadd.f32 %v1217, %v1228
        %v1250 = vadd.f32 %v1218, %v1230
        %v1251 = vadd.f32 %v1219, %v1232
        %v1252 = vadd.f32 %v1220, %v1234
        %v1253 = vadd.f32 %v1221, %v1236
        %v1254 = vadd.f32 %v1222, %v1238
        %1263 = vrot.lane.b32.xlu0 %v879, 118
        %v1264 = vpop.permute.xlu0 %1263
        %1265 = vrot.lane.b32.xlu0 %v880, 118
        %v1266 = vpop.permute.xlu0 %1265
        %1267 = vrot.lane.b32.xlu0 %v881, 118
        %v1268 = vpop.permute.xlu0 %1267
        %1269 = vrot.lane.b32.xlu0 %v882, 118
        %v1270 = vpop.permute.xlu0 %1269
        %1271 = vrot.lane.b32.xlu0 %v883, 118
        %v1272 = vpop.permute.xlu0 %1271
        %1273 = vrot.lane.b32.xlu0 %v884, 118
        %v1274 = vpop.permute.xlu0 %1273
        %1275 = vrot.lane.b32.xlu0 %v885, 118
        %v1276 = vpop.permute.xlu0 %1275
        %1277 = vrot.lane.b32.xlu0 %v886, 118
        %v1278 = vpop.permute.xlu0 %1277
        %v1287 = vadd.f32 %v1247, %v1264
        %v1288 = vadd.f32 %v1248, %v1266
        %v1289 = vadd.f32 %v1249, %v1268
        %v1290 = vadd.f32 %v1250, %v1270
        %v1291 = vadd.f32 %v1251, %v1272
        %v1292 = vadd.f32 %v1252, %v1274
        %v1293 = vadd.f32 %v1253, %v1276
        %v1294 = vadd.f32 %v1254, %v1278
        %1295 = vst.msk [vmem:[%s186] sm:$0xff] %vm205, %v1287
        %1296 = vst.msk [vmem:[%s186 + $0x8] sm:$0xff] %vm205, %v1288
        %1297 = vst.msk [vmem:[%s186 + $0x10] sm:$0xff] %vm205, %v1289
        %1298 = vst.msk [vmem:[%s186 + $0x18] sm:$0xff] %vm205, %v1290
        %1299 = vst.msk [vmem:[%s186 + $0x20] sm:$0xff] %vm205, %v1291
        %1300 = vst.msk [vmem:[%s186 + $0x28] sm:$0xff] %vm205, %v1292
        %1301 = vst.msk [vmem:[%s186 + $0x30] sm:$0xff] %vm205, %v1293
        %1302 = vst.msk [vmem:[%s186 + $0x38] sm:$0xff] %vm205, %v1294
        %1303 = vst.msk [vmem:[#allocation2 + $0x5] sm:$0xff] %vm205, %v1287
        %1304 = vst.msk [vmem:[#allocation2 + $0xd] sm:$0xff] %vm205, %v1288
        %1305 = vst.msk [vmem:[#allocation2 + $0x25] sm:$0xff] %vm205, %v1289
        %1306 = vst.msk [vmem:[#allocation2 + $0x2d] sm:$0xff] %vm205, %v1290
        %1307 = vst.msk [vmem:[#allocation2 + $0x45] sm:$0xff] %vm205, %v1291
        %1308 = vst.msk [vmem:[#allocation2 + $0x4d] sm:$0xff] %vm205, %v1292
        %1309 = vst.msk [vmem:[#allocation2 + $0x65] sm:$0xff] %vm205, %v1293
        %1310 = vst.msk [vmem:[#allocation2 + $0x6d] sm:$0xff] %vm205, %v1294
        %1311 = vst.msk [vmem:[#allocation2 + $0x3] sm:$0x2] %vm214, %v1287
        %1312 = vst.msk [vmem:[#allocation2 + $0x23] sm:$0x2] %vm214, %v1289
        %1313 = vst.msk [vmem:[#allocation2 + $0x43] sm:$0x2] %vm214, %v1291
        %1314 = vst.msk [vmem:[#allocation2 + $0x63] sm:$0x2] %vm214, %v1293
        %1315 = vst.msk [vmem:[#allocation2 + $0xf] sm:$0x40] %vm219, %v1288
        %1316 = vst.msk [vmem:[#allocation2 + $0x2f] sm:$0x40] %vm219, %v1290
        %1317 = vst.msk [vmem:[#allocation2 + $0x4f] sm:$0x40] %vm219, %v1292
        %1318 = vst.msk [vmem:[#allocation2 + $0x6f] sm:$0x40] %vm219, %v1294
        %1319 = vst.msk [vmem:[#allocation2 + $0x1] sm:$0x4] %vm224, %v1287
        %1320 = vst.msk [vmem:[#allocation2 + $0x21] sm:$0x4] %vm224, %v1289
        %1321 = vst.msk [vmem:[#allocation2 + $0x41] sm:$0x4] %vm224, %v1291
        %1322 = vst.msk [vmem:[#allocation2 + $0x61] sm:$0x4] %vm224, %v1293
        %1323 = vst.msk [vmem:[#allocation2 + $0x11] sm:$0x20] %vm229, %v1288
        %1324 = vst.msk [vmem:[#allocation2 + $0x31] sm:$0x20] %vm229, %v1290
        %1325 = vst.msk [vmem:[#allocation2 + $0x51] sm:$0x20] %vm229, %v1292
        %1326 = vst.msk [vmem:[#allocation2 + $0x71] sm:$0x20] %vm229, %v1294
        %1327 = vst.msk [vmem:[#allocation2 - $0x1] sm:$0x8] %vm234, %v1287
        %1328 = vst.msk [vmem:[#allocation2 + $0x1f] sm:$0x8] %vm234, %v1289
        %1329 = vst.msk [vmem:[#allocation2 + $0x3f] sm:$0x8] %vm234, %v1291
        %1330 = vst.msk [vmem:[#allocation2 + $0x5f] sm:$0x8] %vm234, %v1293
        %1331 = vst.msk [vmem:[#allocation2 + $0x13] sm:$0x10] %vm239, %v1288
        %1332 = vst.msk [vmem:[#allocation2 + $0x33] sm:$0x10] %vm239, %v1290
        %1333 = vst.msk [vmem:[#allocation2 + $0x53] sm:$0x10] %vm239, %v1292
        %1334 = vst.msk [vmem:[#allocation2 + $0x73] sm:$0x10] %vm239, %v1294
        %1335 = vst.msk [vmem:[#allocation2 - $0x3] sm:$0x10] %vm239, %v1287
        %1336 = vst.msk [vmem:[#allocation2 + $0x1d] sm:$0x10] %vm239, %v1289
        %1337 = vst.msk [vmem:[#allocation2 + $0x3d] sm:$0x10] %vm239, %v1291
        %1338 = vst.msk [vmem:[#allocation2 + $0x5d] sm:$0x10] %vm239, %v1293
        %1339 = vst.msk [vmem:[#allocation2 + $0x15] sm:$0x8] %vm234, %v1288
        %1340 = vst.msk [vmem:[#allocation2 + $0x35] sm:$0x8] %vm234, %v1290
        %1341 = vst.msk [vmem:[#allocation2 + $0x55] sm:$0x8] %vm234, %v1292
        %1342 = vst.msk [vmem:[#allocation2 + $0x75] sm:$0x8] %vm234, %v1294
        %1343 = vst.msk [vmem:[#allocation2 - $0x5] sm:$0x20] %vm229, %v1287
        %1344 = vst.msk [vmem:[#allocation2 + $0x1b] sm:$0x20] %vm229, %v1289
        %1345 = vst.msk [vmem:[#allocation2 + $0x3b] sm:$0x20] %vm229, %v1291
        %1346 = vst.msk [vmem:[#allocation2 + $0x5b] sm:$0x20] %vm229, %v1293
        %1347 = vst.msk [vmem:[#allocation2 + $0x17] sm:$0x4] %vm224, %v1288
        %1348 = vst.msk [vmem:[#allocation2 + $0x37] sm:$0x4] %vm224, %v1290
        %1349 = vst.msk [vmem:[#allocation2 + $0x57] sm:$0x4] %vm224, %v1292
        %1350 = vst.msk [vmem:[#allocation2 + $0x77] sm:$0x4] %vm224, %v1294
        %v1351 = vld [vmem:[#allocation2] sm:$0xff]
        %v1352 = vld [vmem:[#allocation2 + $0x8] sm:$0xff]
        %v1353 = vld [vmem:[#allocation2 + $0x20] sm:$0xff]
        %v1354 = vld [vmem:[#allocation2 + $0x28] sm:$0xff]
        %v1355 = vld [vmem:[#allocation2 + $0x40] sm:$0xff]
        %v1356 = vld [vmem:[#allocation2 + $0x48] sm:$0xff]
        %v1357 = vld [vmem:[#allocation2 + $0x60] sm:$0xff]
        %v1358 = vld [vmem:[#allocation2 + $0x68] sm:$0xff]
        %v1359 = vmul.f32 %v1351, 7.9840116e-05
        %v1360 = vmul.f32 %v1352, 7.9840116e-05
        %v1361 = vmul.f32 %v1353, 7.9840116e-05
        %v1362 = vmul.f32 %v1354, 7.9840116e-05
        %v1363 = vmul.f32 %v1355, 7.9840116e-05
        %v1364 = vmul.f32 %v1356, 7.9840116e-05
        %v1365 = vmul.f32 %v1357, 7.9840116e-05
        %v1366 = vmul.f32 %v1358, 7.9840116e-05
        %v1367 = vld [vmem:[#allocation2 + $0x1] sm:$0xff]
        %v1368 = vld [vmem:[#allocation2 + $0x9] sm:$0xff]
        %v1369 = vld [vmem:[#allocation2 + $0x21] sm:$0xff]
        %v1370 = vld [vmem:[#allocation2 + $0x29] sm:$0xff]
        %v1371 = vld [vmem:[#allocation2 + $0x41] sm:$0xff]
        %v1372 = vld [vmem:[#allocation2 + $0x49] sm:$0xff]
        %v1373 = vld [vmem:[#allocation2 + $0x61] sm:$0xff]
        %v1374 = vld [vmem:[#allocation2 + $0x69] sm:$0xff]
        %v1375 = vmul.f32 %v1367, 0.0015916895
        %v1376 = vmul.f32 %v1368, 0.0015916895
        %v1377 = vmul.f32 %v1369, 0.0015916895
        %v1378 = vmul.f32 %v1370, 0.0015916895
        %v1379 = vmul.f32 %v1371, 0.0015916895
        %v1380 = vmul.f32 %v1372, 0.0015916895
        %v1381 = vmul.f32 %v1373, 0.0015916895
        %v1382 = vmul.f32 %v1374, 0.0015916895
        %v1383 = vadd.f32 %v1359, %v1375
        %v1384 = vadd.f32 %v1360, %v1376
        %v1385 = vadd.f32 %v1361, %v1377
        %v1386 = vadd.f32 %v1362, %v1378
        %v1387 = vadd.f32 %v1363, %v1379
        %v1388 = vadd.f32 %v1364, %v1380
        %v1389 = vadd.f32 %v1365, %v1381
        %v1390 = vadd.f32 %v1366, %v1382
        %v1391 = vld [vmem:[#allocation2 + $0x2] sm:$0xff]
        %v1392 = vld [vmem:[#allocation2 + $0xa] sm:$0xff]
        %v1393 = vld [vmem:[#allocation2 + $0x22] sm:$0xff]
        %v1394 = vld [vmem:[#allocation2 + $0x2a] sm:$0xff]
        %v1395 = vld [vmem:[#allocation2 + $0x42] sm:$0xff]
        %v1396 = vld [vmem:[#allocation2 + $0x4a] sm:$0xff]
        %v1397 = vld [vmem:[#allocation2 + $0x62] sm:$0xff]
        %v1398 = vld [vmem:[#allocation2 + $0x6a] sm:$0xff]
        %v1399 = vmul.f32 %v1391, 0.016318766
        %v1400 = vmul.f32 %v1392, 0.016318766
        %v1401 = vmul.f32 %v1393, 0.016318766
        %v1402 = vmul.f32 %v1394, 0.016318766
        %v1403 = vmul.f32 %v1395, 0.016318766
        %v1404 = vmul.f32 %v1396, 0.016318766
        %v1405 = vmul.f32 %v1397, 0.016318766
        %v1406 = vmul.f32 %v1398, 0.016318766
        %v1407 = vadd.f32 %v1383, %v1399
        %v1408 = vadd.f32 %v1384, %v1400
        %v1409 = vadd.f32 %v1385, %v1401
        %v1410 = vadd.f32 %v1386, %v1402
        %v1411 = vadd.f32 %v1387, %v1403
        %v1412 = vadd.f32 %v1388, %v1404
        %v1413 = vadd.f32 %v1389, %v1405
        %v1414 = vadd.f32 %v1390, %v1406
        %v1415 = vld [vmem:[#allocation2 + $0x3] sm:$0xff]
        %v1416 = vld [vmem:[#allocation2 + $0xb] sm:$0xff]
        %v1417 = vld [vmem:[#allocation2 + $0x23] sm:$0xff]
        %v1418 = vld [vmem:[#allocation2 + $0x2b] sm:$0xff]
        %v1419 = vld [vmem:[#allocation2 + $0x43] sm:$0xff]
        %v1420 = vld [vmem:[#allocation2 + $0x4b] sm:$0xff]
        %v1421 = vld [vmem:[#allocation2 + $0x63] sm:$0xff]
        %v1422 = vld [vmem:[#allocation2 + $0x6b] sm:$0xff]
        %v1423 = vmul.f32 %v1415, 0.0860415
        %v1424 = vmul.f32 %v1416, 0.0860415
        %v1425 = vmul.f32 %v1417, 0.0860415
        %v1426 = vmul.f32 %v1418, 0.0860415
        %v1427 = vmul.f32 %v1419, 0.0860415
        %v1428 = vmul.f32 %v1420, 0.0860415
        %v1429 = vmul.f32 %v1421, 0.0860415
        %v1430 = vmul.f32 %v1422, 0.0860415
        %v1431 = vadd.f32 %v1407, %v1423
        %v1432 = vadd.f32 %v1408, %v1424
        %v1433 = vadd.f32 %v1409, %v1425
        %v1434 = vadd.f32 %v1410, %v1426
        %v1435 = vadd.f32 %v1411, %v1427
        %v1436 = vadd.f32 %v1412, %v1428
        %v1437 = vadd.f32 %v1413, %v1429
        %v1438 = vadd.f32 %v1414, %v1430
        %v1439 = vld [vmem:[#allocation2 + $0x4] sm:$0xff]
        %v1440 = vld [vmem:[#allocation2 + $0xc] sm:$0xff]
        %v1441 = vld [vmem:[#allocation2 + $0x24] sm:$0xff]
        %v1442 = vld [vmem:[#allocation2 + $0x2c] sm:$0xff]
        %v1443 = vld [vmem:[#allocation2 + $0x44] sm:$0xff]
        %v1444 = vld [vmem:[#allocation2 + $0x4c] sm:$0xff]
        %v1445 = vld [vmem:[#allocation2 + $0x64] sm:$0xff]
        %v1446 = vld [vmem:[#allocation2 + $0x6c] sm:$0xff]
        %v1447 = vmul.f32 %v1439, 0.23330304
        %v1448 = vmul.f32 %v1440, 0.23330304
        %v1449 = vmul.f32 %v1441, 0.23330304
        %v1450 = vmul.f32 %v1442, 0.23330304
        %v1451 = vmul.f32 %v1443, 0.23330304
        %v1452 = vmul.f32 %v1444, 0.23330304
        %v1453 = vmul.f32 %v1445, 0.23330304
        %v1454 = vmul.f32 %v1446, 0.23330304
        %v1455 = vadd.f32 %v1431, %v1447
        %v1456 = vadd.f32 %v1432, %v1448
        %v1457 = vadd.f32 %v1433, %v1449
        %v1458 = vadd.f32 %v1434, %v1450
        %v1459 = vadd.f32 %v1435, %v1451
        %v1460 = vadd.f32 %v1436, %v1452
        %v1461 = vadd.f32 %v1437, %v1453
        %v1462 = vadd.f32 %v1438, %v1454
        %v1463 = vld [vmem:[#allocation2 + $0x5] sm:$0xff]
        %v1464 = vld [vmem:[#allocation2 + $0xd] sm:$0xff]
        %v1465 = vld [vmem:[#allocation2 + $0x25] sm:$0xff]
        %v1466 = vld [vmem:[#allocation2 + $0x2d] sm:$0xff]
        %v1467 = vld [vmem:[#allocation2 + $0x45] sm:$0xff]
        %v1468 = vld [vmem:[#allocation2 + $0x4d] sm:$0xff]
        %v1469 = vld [vmem:[#allocation2 + $0x65] sm:$0xff]
        %v1470 = vld [vmem:[#allocation2 + $0x6d] sm:$0xff]
        %v1471 = vmul.f32 %v1463, 0.32533032
        %v1472 = vmul.f32 %v1464, 0.32533032
        %v1473 = vmul.f32 %v1465, 0.32533032
        %v1474 = vmul.f32 %v1466, 0.32533032
        %v1475 = vmul.f32 %v1467, 0.32533032
        %v1476 = vmul.f32 %v1468, 0.32533032
        %v1477 = vmul.f32 %v1469, 0.32533032
        %v1478 = vmul.f32 %v1470, 0.32533032
        %v1479 = vadd.f32 %v1455, %v1471
        %v1480 = vadd.f32 %v1456, %v1472
        %v1481 = vadd.f32 %v1457, %v1473
        %v1482 = vadd.f32 %v1458, %v1474
        %v1483 = vadd.f32 %v1459, %v1475
        %v1484 = vadd.f32 %v1460, %v1476
        %v1485 = vadd.f32 %v1461, %v1477
        %v1486 = vadd.f32 %v1462, %v1478
        %v1487 = vld [vmem:[#allocation2 + $0x6] sm:$0xff]
        %v1488 = vld [vmem:[#allocation2 + $0xe] sm:$0xff]
        %v1489 = vld [vmem:[#allocation2 + $0x26] sm:$0xff]
        %v1490 = vld [vmem:[#allocation2 + $0x2e] sm:$0xff]
        %v1491 = vld [vmem:[#allocation2 + $0x46] sm:$0xff]
        %v1492 = vld [vmem:[#allocation2 + $0x4e] sm:$0xff]
        %v1493 = vld [vmem:[#allocation2 + $0x66] sm:$0xff]
        %v1494 = vld [vmem:[#allocation2 + $0x6e] sm:$0xff]
        %v1495 = vmul.f32 %v1487, 0.23330304
        %v1496 = vmul.f32 %v1488, 0.23330304
        %v1497 = vmul.f32 %v1489, 0.23330304
        %v1498 = vmul.f32 %v1490, 0.23330304
        %v1499 = vmul.f32 %v1491, 0.23330304
        %v1500 = vmul.f32 %v1492, 0.23330304
        %v1501 = vmul.f32 %v1493, 0.23330304
        %v1502 = vmul.f32 %v1494, 0.23330304
        %v1503 = vadd.f32 %v1479, %v1495
        %v1504 = vadd.f32 %v1480, %v1496
        %v1505 = vadd.f32 %v1481, %v1497
        %v1506 = vadd.f32 %v1482, %v1498
        %v1507 = vadd.f32 %v1483, %v1499
        %v1508 = vadd.f32 %v1484, %v1500
        %v1509 = vadd.f32 %v1485, %v1501
        %v1510 = vadd.f32 %v1486, %v1502
        %v1511 = vld [vmem:[#allocation2 + $0x7] sm:$0xff]
        %v1512 = vld [vmem:[#allocation2 + $0xf] sm:$0xff]
        %v1513 = vld [vmem:[#allocation2 + $0x27] sm:$0xff]
        %v1514 = vld [vmem:[#allocation2 + $0x2f] sm:$0xff]
        %v1515 = vld [vmem:[#allocation2 + $0x47] sm:$0xff]
        %v1516 = vld [vmem:[#allocation2 + $0x4f] sm:$0xff]
        %v1517 = vld [vmem:[#allocation2 + $0x67] sm:$0xff]
        %v1518 = vld [vmem:[#allocation2 + $0x6f] sm:$0xff]
        %v1519 = vmul.f32 %v1511, 0.0860415
        %v1520 = vmul.f32 %v1512, 0.0860415
        %v1521 = vmul.f32 %v1513, 0.0860415
        %v1522 = vmul.f32 %v1514, 0.0860415
        %v1523 = vmul.f32 %v1515, 0.0860415
        %v1524 = vmul.f32 %v1516, 0.0860415
        %v1525 = vmul.f32 %v1517, 0.0860415
        %v1526 = vmul.f32 %v1518, 0.0860415
        %v1527 = vadd.f32 %v1503, %v1519
        %v1528 = vadd.f32 %v1504, %v1520
        %v1529 = vadd.f32 %v1505, %v1521
        %v1530 = vadd.f32 %v1506, %v1522
        %v1531 = vadd.f32 %v1507, %v1523
        %v1532 = vadd.f32 %v1508, %v1524
        %v1533 = vadd.f32 %v1509, %v1525
        %v1534 = vadd.f32 %v1510, %v1526
        %v1535 = vld [vmem:[#allocation2 + $0x10] sm:$0xff]
        %v1536 = vld [vmem:[#allocation2 + $0x30] sm:$0xff]
        %v1537 = vld [vmem:[#allocation2 + $0x50] sm:$0xff]
        %v1538 = vld [vmem:[#allocation2 + $0x70] sm:$0xff]
        %v1539 = vmul.f32 %v1352, 0.016318766
        %v1540 = vmul.f32 %v1535, 0.016318766
        %v1541 = vmul.f32 %v1354, 0.016318766
        %v1542 = vmul.f32 %v1536, 0.016318766
        %v1543 = vmul.f32 %v1356, 0.016318766
        %v1544 = vmul.f32 %v1537, 0.016318766
        %v1545 = vmul.f32 %v1358, 0.016318766
        %v1546 = vmul.f32 %v1538, 0.016318766
        %v1547 = vadd.f32 %v1527, %v1539
        %v1548 = vadd.f32 %v1528, %v1540
        %v1549 = vadd.f32 %v1529, %v1541
        %v1550 = vadd.f32 %v1530, %v1542
        %v1551 = vadd.f32 %v1531, %v1543
        %v1552 = vadd.f32 %v1532, %v1544
        %v1553 = vadd.f32 %v1533, %v1545
        %v1554 = vadd.f32 %v1534, %v1546
        %v1555 = vld [vmem:[#allocation2 + $0x11] sm:$0xff]
        %v1556 = vld [vmem:[#allocation2 + $0x31] sm:$0xff]
        %v1557 = vld [vmem:[#allocation2 + $0x51] sm:$0xff]
        %v1558 = vld [vmem:[#allocation2 + $0x71] sm:$0xff]
        %v1559 = vmul.f32 %v1555, 0.0015916895
        %v1560 = vmul.f32 %v1556, 0.0015916895
        %v1561 = vmul.f32 %v1557, 0.0015916895
        %v1562 = vmul.f32 %v1558, 0.0015916895
        %v1563 = vadd.f32 %v1547, %v1376
        %v1564 = vadd.f32 %v1548, %v1559
        %v1565 = vadd.f32 %v1549, %v1378
        %v1566 = vadd.f32 %v1550, %v1560
        %v1567 = vadd.f32 %v1551, %v1380
        %v1568 = vadd.f32 %v1552, %v1561
        %v1569 = vadd.f32 %v1553, %v1382
        %v1570 = vadd.f32 %v1554, %v1562
        %v1571 = vld [vmem:[#allocation2 + $0x12] sm:$0xff]
        %v1572 = vld [vmem:[#allocation2 + $0x32] sm:$0xff]
        %v1573 = vld [vmem:[#allocation2 + $0x52] sm:$0xff]
        %v1574 = vld [vmem:[#allocation2 + $0x72] sm:$0xff]
        %v1575 = vmul.f32 %v1392, 7.9840116e-05
        %v1576 = vmul.f32 %v1571, 7.9840116e-05
        %v1577 = vmul.f32 %v1394, 7.9840116e-05
        %v1578 = vmul.f32 %v1572, 7.9840116e-05
        %v1579 = vmul.f32 %v1396, 7.9840116e-05
        %v1580 = vmul.f32 %v1573, 7.9840116e-05
        %v1581 = vmul.f32 %v1398, 7.9840116e-05
        %v1582 = vmul.f32 %v1574, 7.9840116e-05
        %v1583 = vadd.f32 %v1563, %v1575
        %v1584 = vadd.f32 %v1564, %v1576
        %v1585 = vadd.f32 %v1565, %v1577
        %v1586 = vadd.f32 %v1566, %v1578
        %v1587 = vadd.f32 %v1567, %v1579
        %v1588 = vadd.f32 %v1568, %v1580
        %v1589 = vadd.f32 %v1569, %v1581
        %v1590 = vadd.f32 %v1570, %v1582
        %1599 = vrot.lane.b32.xlu0 %v1583, 5
        %v1600 = vpop.permute.xlu0 %1599
        %1601 = vrot.lane.b32.xlu0 %v1584, 5
        %v1602 = vpop.permute.xlu0 %1601
        %1603 = vrot.lane.b32.xlu0 %v1585, 5
        %v1604 = vpop.permute.xlu0 %1603
        %1605 = vrot.lane.b32.xlu0 %v1586, 5
        %v1606 = vpop.permute.xlu0 %1605
        %1607 = vrot.lane.b32.xlu0 %v1587, 5
        %v1608 = vpop.permute.xlu0 %1607
        %1609 = vrot.lane.b32.xlu0 %v1588, 5
        %v1610 = vpop.permute.xlu0 %1609
        %1611 = vrot.lane.b32.xlu0 %v1589, 5
        %v1612 = vpop.permute.xlu0 %1611
        %1613 = vrot.lane.b32.xlu0 %v1590, 5
        %v1614 = vpop.permute.xlu0 %1613
        %1623 = vst.msk [vmem:[#allocation3] sm:$0xff] %vm532, %v1600
        %1624 = vst.msk [vmem:[#allocation3 + $0x8] sm:$0xff] %vm532, %v1602
        %1625 = vst.msk [vmem:[#allocation3 + $0x10] sm:$0xff] %vm532, %v1604
        %1626 = vst.msk [vmem:[#allocation3 + $0x18] sm:$0xff] %vm532, %v1606
        %1627 = vst.msk [vmem:[#allocation3 + $0x20] sm:$0xff] %vm532, %v1608
        %1628 = vst.msk [vmem:[#allocation3 + $0x28] sm:$0xff] %vm532, %v1610
        %1629 = vst.msk [vmem:[#allocation3 + $0x30] sm:$0xff] %vm532, %v1612
        %1630 = vst.msk [vmem:[#allocation3 + $0x38] sm:$0xff] %vm532, %v1614
        %1631 = vrot.lane.b32.xlu0 %v1583, 3
        %v1632 = vpop.permute.xlu0 %1631
        %1633 = vrot.lane.b32.xlu0 %v1584, 3
        %v1634 = vpop.permute.xlu0 %1633
        %1635 = vrot.lane.b32.xlu0 %v1585, 3
        %v1636 = vpop.permute.xlu0 %1635
        %1637 = vrot.lane.b32.xlu0 %v1586, 3
        %v1638 = vpop.permute.xlu0 %1637
        %1639 = vrot.lane.b32.xlu0 %v1587, 3
        %v1640 = vpop.permute.xlu0 %1639
        %1641 = vrot.lane.b32.xlu0 %v1588, 3
        %v1642 = vpop.permute.xlu0 %1641
        %1643 = vrot.lane.b32.xlu0 %v1589, 3
        %v1644 = vpop.permute.xlu0 %1643
        %1645 = vrot.lane.b32.xlu0 %v1590, 3
        %v1646 = vpop.permute.xlu0 %1645
        %1655 = vst.msk [vmem:[#allocation3] sm:$0xff] %vm565, %v1632
        %1656 = vst.msk [vmem:[#allocation3 + $0x8] sm:$0xff] %vm565, %v1634
        %1657 = vst.msk [vmem:[#allocation3 + $0x10] sm:$0xff] %vm565, %v1636
        %1658 = vst.msk [vmem:[#allocation3 + $0x18] sm:$0xff] %vm565, %v1638
        %1659 = vst.msk [vmem:[#allocation3 + $0x20] sm:$0xff] %vm565, %v1640
        %1660 = vst.msk [vmem:[#allocation3 + $0x28] sm:$0xff] %vm565, %v1642
        %1661 = vst.msk [vmem:[#allocation3 + $0x30] sm:$0xff] %vm565, %v1644
        %1662 = vst.msk [vmem:[#allocation3 + $0x38] sm:$0xff] %vm565, %v1646
        %1663 = vrot.lane.b32.xlu0 %v1583, 7
        %v1664 = vpop.permute.xlu0 %1663
        %1665 = vrot.lane.b32.xlu0 %v1584, 7
        %v1666 = vpop.permute.xlu0 %1665
        %1667 = vrot.lane.b32.xlu0 %v1585, 7
        %v1668 = vpop.permute.xlu0 %1667
        %1669 = vrot.lane.b32.xlu0 %v1586, 7
        %v1670 = vpop.permute.xlu0 %1669
        %1671 = vrot.lane.b32.xlu0 %v1587, 7
        %v1672 = vpop.permute.xlu0 %1671
        %1673 = vrot.lane.b32.xlu0 %v1588, 7
        %v1674 = vpop.permute.xlu0 %1673
        %1675 = vrot.lane.b32.xlu0 %v1589, 7
        %v1676 = vpop.permute.xlu0 %1675
        %1677 = vrot.lane.b32.xlu0 %v1590, 7
        %v1678 = vpop.permute.xlu0 %1677
        %1687 = vst.msk [vmem:[#allocation3] sm:$0xff] %vm598, %v1664
        %1688 = vst.msk [vmem:[#allocation3 + $0x8] sm:$0xff] %vm598, %v1666
        %1689 = vst.msk [vmem:[#allocation3 + $0x10] sm:$0xff] %vm598, %v1668
        %1690 = vst.msk [vmem:[#allocation3 + $0x18] sm:$0xff] %vm598, %v1670
        %1691 = vst.msk [vmem:[#allocation3 + $0x20] sm:$0xff] %vm598, %v1672
        %1692 = vst.msk [vmem:[#allocation3 + $0x28] sm:$0xff] %vm598, %v1674
        %1693 = vst.msk [vmem:[#allocation3 + $0x30] sm:$0xff] %vm598, %v1676
        %1694 = vst.msk [vmem:[#allocation3 + $0x38] sm:$0xff] %vm598, %v1678
        %1695 = vrot.lane.b32.xlu0 %v1583, 1
        %v1696 = vpop.permute.xlu0 %1695
        %1697 = vrot.lane.b32.xlu0 %v1584, 1
        %v1698 = vpop.permute.xlu0 %1697
        %1699 = vrot.lane.b32.xlu0 %v1585, 1
        %v1700 = vpop.permute.xlu0 %1699
        %1701 = vrot.lane.b32.xlu0 %v1586, 1
        %v1702 = vpop.permute.xlu0 %1701
        %1703 = vrot.lane.b32.xlu0 %v1587, 1
        %v1704 = vpop.permute.xlu0 %1703
        %1705 = vrot.lane.b32.xlu0 %v1588, 1
        %v1706 = vpop.permute.xlu0 %1705
        %1707 = vrot.lane.b32.xlu0 %v1589, 1
        %v1708 = vpop.permute.xlu0 %1707
        %1709 = vrot.lane.b32.xlu0 %v1590, 1
        %v1710 = vpop.permute.xlu0 %1709
        %1719 = vst.msk [vmem:[#allocation3] sm:$0xff] %vm631, %v1696
        %1720 = vst.msk [vmem:[#allocation3 + $0x8] sm:$0xff] %vm631, %v1698
        %1721 = vst.msk [vmem:[#allocation3 + $0x10] sm:$0xff] %vm631, %v1700
        %1722 = vst.msk [vmem:[#allocation3 + $0x18] sm:$0xff] %vm631, %v1702
        %1723 = vst.msk [vmem:[#allocation3 + $0x20] sm:$0xff] %vm631, %v1704
        %1724 = vst.msk [vmem:[#allocation3 + $0x28] sm:$0xff] %vm631, %v1706
        %1725 = vst.msk [vmem:[#allocation3 + $0x30] sm:$0xff] %vm631, %v1708
        %1726 = vst.msk [vmem:[#allocation3 + $0x38] sm:$0xff] %vm631, %v1710
        %1727 = vrot.lane.b32.xlu0 %v1583, 9
        %v1728 = vpop.permute.xlu0 %1727
        %1729 = vrot.lane.b32.xlu0 %v1584, 9
        %v1730 = vpop.permute.xlu0 %1729
        %1731 = vrot.lane.b32.xlu0 %v1585, 9
        %v1732 = vpop.permute.xlu0 %1731
        %1733 = vrot.lane.b32.xlu0 %v1586, 9
        %v1734 = vpop.permute.xlu0 %1733
        %1735 = vrot.lane.b32.xlu0 %v1587, 9
        %v1736 = vpop.permute.xlu0 %1735
        %1737 = vrot.lane.b32.xlu0 %v1588, 9
        %v1738 = vpop.permute.xlu0 %1737
        %1739 = vrot.lane.b32.xlu0 %v1589, 9
        %v1740 = vpop.permute.xlu0 %1739
        %1741 = vrot.lane.b32.xlu0 %v1590, 9
        %v1742 = vpop.permute.xlu0 %1741
        %1751 = vst.msk [vmem:[#allocation3] sm:$0xff] %vm664, %v1728
        %1752 = vst.msk [vmem:[#allocation3 + $0x8] sm:$0xff] %vm664, %v1730
        %1753 = vst.msk [vmem:[#allocation3 + $0x10] sm:$0xff] %vm664, %v1732
        %1754 = vst.msk [vmem:[#allocation3 + $0x18] sm:$0xff] %vm664, %v1734
        %1755 = vst.msk [vmem:[#allocation3 + $0x20] sm:$0xff] %vm664, %v1736
        %1756 = vst.msk [vmem:[#allocation3 + $0x28] sm:$0xff] %vm664, %v1738
        %1757 = vst.msk [vmem:[#allocation3 + $0x30] sm:$0xff] %vm664, %v1740
        %1758 = vst.msk [vmem:[#allocation3 + $0x38] sm:$0xff] %vm664, %v1742
        %1759 = vrot.lane.b32.xlu0 %v1583, 127
        %v1760 = vpop.permute.xlu0 %1759
        %1761 = vrot.lane.b32.xlu0 %v1584, 127
        %v1762 = vpop.permute.xlu0 %1761
        %1763 = vrot.lane.b32.xlu0 %v1585, 127
        %v1764 = vpop.permute.xlu0 %1763
        %1765 = vrot.lane.b32.xlu0 %v1586, 127
        %v1766 = vpop.permute.xlu0 %1765
        %1767 = vrot.lane.b32.xlu0 %v1587, 127
        %v1768 = vpop.permute.xlu0 %1767
        %1769 = vrot.lane.b32.xlu0 %v1588, 127
        %v1770 = vpop.permute.xlu0 %1769
        %1771 = vrot.lane.b32.xlu0 %v1589, 127
        %v1772 = vpop.permute.xlu0 %1771
        %1773 = vrot.lane.b32.xlu0 %v1590, 127
        %v1774 = vpop.permute.xlu0 %1773
        %1783 = vst.msk [vmem:[#allocation3] sm:$0xff] %vm697, %v1760
        %1784 = vst.msk [vmem:[#allocation3 + $0x8] sm:$0xff] %vm697, %v1762
        %1785 = vst.msk [vmem:[#allocation3 + $0x10] sm:$0xff] %vm697, %v1764
        %1786 = vst.msk [vmem:[#allocation3 + $0x18] sm:$0xff] %vm697, %v1766
        %1787 = vst.msk [vmem:[#allocation3 + $0x20] sm:$0xff] %vm697, %v1768
        %1788 = vst.msk [vmem:[#allocation3 + $0x28] sm:$0xff] %vm697, %v1770
        %1789 = vst.msk [vmem:[#allocation3 + $0x30] sm:$0xff] %vm697, %v1772
        %1790 = vst.msk [vmem:[#allocation3 + $0x38] sm:$0xff] %vm697, %v1774
        %1791 = vrot.lane.b32.xlu0 %v1583, 11
        %v1792 = vpop.permute.xlu0 %1791
        %1793 = vrot.lane.b32.xlu0 %v1584, 11
        %v1794 = vpop.permute.xlu0 %1793
        %1795 = vrot.lane.b32.xlu0 %v1585, 11
        %v1796 = vpop.permute.xlu0 %1795
        %1797 = vrot.lane.b32.xlu0 %v1586, 11
        %v1798 = vpop.permute.xlu0 %1797
        %1799 = vrot.lane.b32.xlu0 %v1587, 11
        %v1800 = vpop.permute.xlu0 %1799
        %1801 = vrot.lane.b32.xlu0 %v1588, 11
        %v1802 = vpop.permute.xlu0 %1801
        %1803 = vrot.lane.b32.xlu0 %v1589, 11
        %v1804 = vpop.permute.xlu0 %1803
        %1805 = vrot.lane.b32.xlu0 %v1590, 11
        %v1806 = vpop.permute.xlu0 %1805
        %1815 = vst.msk [vmem:[#allocation3] sm:$0xff] %vm730, %v1792
        %1816 = vst.msk [vmem:[#allocation3 + $0x8] sm:$0xff] %vm730, %v1794
        %1817 = vst.msk [vmem:[#allocation3 + $0x10] sm:$0xff] %vm730, %v1796
        %1818 = vst.msk [vmem:[#allocation3 + $0x18] sm:$0xff] %vm730, %v1798
        %1819 = vst.msk [vmem:[#allocation3 + $0x20] sm:$0xff] %vm730, %v1800
        %1820 = vst.msk [vmem:[#allocation3 + $0x28] sm:$0xff] %vm730, %v1802
        %1821 = vst.msk [vmem:[#allocation3 + $0x30] sm:$0xff] %vm730, %v1804
        %1822 = vst.msk [vmem:[#allocation3 + $0x38] sm:$0xff] %vm730, %v1806
        %1823 = vrot.lane.b32.xlu0 %v1583, 125
        %v1824 = vpop.permute.xlu0 %1823
        %1825 = vrot.lane.b32.xlu0 %v1584, 125
        %v1826 = vpop.permute.xlu0 %1825
        %1827 = vrot.lane.b32.xlu0 %v1585, 125
        %v1828 = vpop.permute.xlu0 %1827
        %1829 = vrot.lane.b32.xlu0 %v1586, 125
        %v1830 = vpop.permute.xlu0 %1829
        %1831 = vrot.lane.b32.xlu0 %v1587, 125
        %v1832 = vpop.permute.xlu0 %1831
        %1833 = vrot.lane.b32.xlu0 %v1588, 125
        %v1834 = vpop.permute.xlu0 %1833
        %1835 = vrot.lane.b32.xlu0 %v1589, 125
        %v1836 = vpop.permute.xlu0 %1835
        %1837 = vrot.lane.b32.xlu0 %v1590, 125
        %v1838 = vpop.permute.xlu0 %1837
        %1847 = vst.msk [vmem:[#allocation3] sm:$0xff] %vm763, %v1824
        %1848 = vst.msk [vmem:[#allocation3 + $0x8] sm:$0xff] %vm763, %v1826
        %1849 = vst.msk [vmem:[#allocation3 + $0x10] sm:$0xff] %vm763, %v1828
        %1850 = vst.msk [vmem:[#allocation3 + $0x18] sm:$0xff] %vm763, %v1830
        %1851 = vst.msk [vmem:[#allocation3 + $0x20] sm:$0xff] %vm763, %v1832
        %1852 = vst.msk [vmem:[#allocation3 + $0x28] sm:$0xff] %vm763, %v1834
        %1853 = vst.msk [vmem:[#allocation3 + $0x30] sm:$0xff] %vm763, %v1836
        %1854 = vst.msk [vmem:[#allocation3 + $0x38] sm:$0xff] %vm763, %v1838
        %1855 = vrot.lane.b32.xlu0 %v1583, 13
        %v1856 = vpop.permute.xlu0 %1855
        %1857 = vrot.lane.b32.xlu0 %v1584, 13
        %v1858 = vpop.permute.xlu0 %1857
        %1859 = vrot.lane.b32.xlu0 %v1585, 13
        %v1860 = vpop.permute.xlu0 %1859
        %1861 = vrot.lane.b32.xlu0 %v1586, 13
        %v1862 = vpop.permute.xlu0 %1861
        %1863 = vrot.lane.b32.xlu0 %v1587, 13
        %v1864 = vpop.permute.xlu0 %1863
        %1865 = vrot.lane.b32.xlu0 %v1588, 13
        %v1866 = vpop.permute.xlu0 %1865
        %1867 = vrot.lane.b32.xlu0 %v1589, 13
        %v1868 = vpop.permute.xlu0 %1867
        %1869 = vrot.lane.b32.xlu0 %v1590, 13
        %v1870 = vpop.permute.xlu0 %1869
        %1879 = vst.msk [vmem:[#allocation3] sm:$0xff] %vm796, %v1856
        %1880 = vst.msk [vmem:[#allocation3 + $0x8] sm:$0xff] %vm796, %v1858
        %1881 = vst.msk [vmem:[#allocation3 + $0x10] sm:$0xff] %vm796, %v1860
        %1882 = vst.msk [vmem:[#allocation3 + $0x18] sm:$0xff] %vm796, %v1862
        %1883 = vst.msk [vmem:[#allocation3 + $0x20] sm:$0xff] %vm796, %v1864
        %1884 = vst.msk [vmem:[#allocation3 + $0x28] sm:$0xff] %vm796, %v1866
        %1885 = vst.msk [vmem:[#allocation3 + $0x30] sm:$0xff] %vm796, %v1868
        %1886 = vst.msk [vmem:[#allocation3 + $0x38] sm:$0xff] %vm796, %v1870
        %1887 = vrot.lane.b32.xlu0 %v1583, 123
        %v1888 = vpop.permute.xlu0 %1887
        %1889 = vrot.lane.b32.xlu0 %v1584, 123
        %v1890 = vpop.permute.xlu0 %1889
        %1891 = vrot.lane.b32.xlu0 %v1585, 123
        %v1892 = vpop.permute.xlu0 %1891
        %1893 = vrot.lane.b32.xlu0 %v1586, 123
        %v1894 = vpop.permute.xlu0 %1893
        %1895 = vrot.lane.b32.xlu0 %v1587, 123
        %v1896 = vpop.permute.xlu0 %1895
        %1897 = vrot.lane.b32.xlu0 %v1588, 123
        %v1898 = vpop.permute.xlu0 %1897
        %1899 = vrot.lane.b32.xlu0 %v1589, 123
        %v1900 = vpop.permute.xlu0 %1899
        %1901 = vrot.lane.b32.xlu0 %v1590, 123
        %v1902 = vpop.permute.xlu0 %1901
        %1911 = vst.msk [vmem:[#allocation3] sm:$0xff] %vm829, %v1888
        %1912 = vst.msk [vmem:[#allocation3 + $0x8] sm:$0xff] %vm829, %v1890
        %1913 = vst.msk [vmem:[#allocation3 + $0x10] sm:$0xff] %vm829, %v1892
        %1914 = vst.msk [vmem:[#allocation3 + $0x18] sm:$0xff] %vm829, %v1894
        %1915 = vst.msk [vmem:[#allocation3 + $0x20] sm:$0xff] %vm829, %v1896
        %1916 = vst.msk [vmem:[#allocation3 + $0x28] sm:$0xff] %vm829, %v1898
        %1917 = vst.msk [vmem:[#allocation3 + $0x30] sm:$0xff] %vm829, %v1900
        %1918 = vst.msk [vmem:[#allocation3 + $0x38] sm:$0xff] %vm829, %v1902
        %1919 = vrot.lane.b32.xlu0 %v1583, 15
        %v1920 = vpop.permute.xlu0 %1919
        %1921 = vrot.lane.b32.xlu0 %v1584, 15
        %v1922 = vpop.permute.xlu0 %1921
        %1923 = vrot.lane.b32.xlu0 %v1585, 15
        %v1924 = vpop.permute.xlu0 %1923
        %1925 = vrot.lane.b32.xlu0 %v1586, 15
        %v1926 = vpop.permute.xlu0 %1925
        %1927 = vrot.lane.b32.xlu0 %v1587, 15
        %v1928 = vpop.permute.xlu0 %1927
        %1929 = vrot.lane.b32.xlu0 %v1588, 15
        %v1930 = vpop.permute.xlu0 %1929
        %1931 = vrot.lane.b32.xlu0 %v1589, 15
        %v1932 = vpop.permute.xlu0 %1931
        %1933 = vrot.lane.b32.xlu0 %v1590, 15
        %v1934 = vpop.permute.xlu0 %1933
        %1943 = vst.msk [vmem:[#allocation3] sm:$0xff] %vm862, %v1920
        %1944 = vst.msk [vmem:[#allocation3 + $0x8] sm:$0xff] %vm862, %v1922
        %1945 = vst.msk [vmem:[#allocation3 + $0x10] sm:$0xff] %vm862, %v1924
        %1946 = vst.msk [vmem:[#allocation3 + $0x18] sm:$0xff] %vm862, %v1926
        %1947 = vst.msk [vmem:[#allocation3 + $0x20] sm:$0xff] %vm862, %v1928
        %1948 = vst.msk [vmem:[#allocation3 + $0x28] sm:$0xff] %vm862, %v1930
        %1949 = vst.msk [vmem:[#allocation3 + $0x30] sm:$0xff] %vm862, %v1932
        %1950 = vst.msk [vmem:[#allocation3 + $0x38] sm:$0xff] %vm862, %v1934
        %v1951 = vld [vmem:[#allocation3] sm:$0xff]
        %v1952 = vld [vmem:[#allocation3 + $0x8] sm:$0xff]
        %v1953 = vld [vmem:[#allocation3 + $0x10] sm:$0xff]
        %v1954 = vld [vmem:[#allocation3 + $0x18] sm:$0xff]
        %v1955 = vld [vmem:[#allocation3 + $0x20] sm:$0xff]
        %v1956 = vld [vmem:[#allocation3 + $0x28] sm:$0xff]
        %v1957 = vld [vmem:[#allocation3 + $0x30] sm:$0xff]
        %v1958 = vld [vmem:[#allocation3 + $0x38] sm:$0xff]
        %v1959 = vmul.f32 %v1951, 7.9840116e-05
        %v1960 = vmul.f32 %v1952, 7.9840116e-05
        %v1961 = vmul.f32 %v1953, 7.9840116e-05
        %v1962 = vmul.f32 %v1954, 7.9840116e-05
        %v1963 = vmul.f32 %v1955, 7.9840116e-05
        %v1964 = vmul.f32 %v1956, 7.9840116e-05
        %v1965 = vmul.f32 %v1957, 7.9840116e-05
        %v1966 = vmul.f32 %v1958, 7.9840116e-05
        %v1967 = vmul.f32 %v1951, 0.0015916895
        %v1968 = vmul.f32 %v1952, 0.0015916895
        %v1969 = vmul.f32 %v1953, 0.0015916895
        %v1970 = vmul.f32 %v1954, 0.0015916895
        %v1971 = vmul.f32 %v1955, 0.0015916895
        %v1972 = vmul.f32 %v1956, 0.0015916895
        %v1973 = vmul.f32 %v1957, 0.0015916895
        %v1974 = vmul.f32 %v1958, 0.0015916895
        %1983 = vrot.lane.b32.xlu0 %v1967, 127
        %v1984 = vpop.permute.xlu0 %1983
        %1985 = vrot.lane.b32.xlu0 %v1968, 127
        %v1986 = vpop.permute.xlu0 %1985
        %1987 = vrot.lane.b32.xlu0 %v1969, 127
        %v1988 = vpop.permute.xlu0 %1987
        %1989 = vrot.lane.b32.xlu0 %v1970, 127
        %v1990 = vpop.permute.xlu0 %1989
        %1991 = vrot.lane.b32.xlu0 %v1971, 127
        %v1992 = vpop.permute.xlu0 %1991
        %1993 = vrot.lane.b32.xlu0 %v1972, 127
        %v1994 = vpop.permute.xlu0 %1993
        %1995 = vrot.lane.b32.xlu0 %v1973, 127
        %v1996 = vpop.permute.xlu0 %1995
        %1997 = vrot.lane.b32.xlu0 %v1974, 127
        %v1998 = vpop.permute.xlu0 %1997
        %v2007 = vadd.f32 %v1959, %v1984
        %v2008 = vadd.f32 %v1960, %v1986
        %v2009 = vadd.f32 %v1961, %v1988
        %v2010 = vadd.f32 %v1962, %v1990
        %v2011 = vadd.f32 %v1963, %v1992
        %v2012 = vadd.f32 %v1964, %v1994
        %v2013 = vadd.f32 %v1965, %v1996
        %v2014 = vadd.f32 %v1966, %v1998
        %v2015 = vmul.f32 %v1951, 0.016318766
        %v2016 = vmul.f32 %v1952, 0.016318766
        %v2017 = vmul.f32 %v1953, 0.016318766
        %v2018 = vmul.f32 %v1954, 0.016318766
        %v2019 = vmul.f32 %v1955, 0.016318766
        %v2020 = vmul.f32 %v1956, 0.016318766
        %v2021 = vmul.f32 %v1957, 0.016318766
        %v2022 = vmul.f32 %v1958, 0.016318766
        %2031 = vrot.lane.b32.xlu0 %v2015, 126
        %v2032 = vpop.permute.xlu0 %2031
        %2033 = vrot.lane.b32.xlu0 %v2016, 126
        %v2034 = vpop.permute.xlu0 %2033
        %2035 = vrot.lane.b32.xlu0 %v2017, 126
        %v2036 = vpop.permute.xlu0 %2035
        %2037 = vrot.lane.b32.xlu0 %v2018, 126
        %v2038 = vpop.permute.xlu0 %2037
        %2039 = vrot.lane.b32.xlu0 %v2019, 126
        %v2040 = vpop.permute.xlu0 %2039
        %2041 = vrot.lane.b32.xlu0 %v2020, 126
        %v2042 = vpop.permute.xlu0 %2041
        %2043 = vrot.lane.b32.xlu0 %v2021, 126
        %v2044 = vpop.permute.xlu0 %2043
        %2045 = vrot.lane.b32.xlu0 %v2022, 126
        %v2046 = vpop.permute.xlu0 %2045
        %v2055 = vadd.f32 %v2007, %v2032
        %v2056 = vadd.f32 %v2008, %v2034
        %v2057 = vadd.f32 %v2009, %v2036
        %v2058 = vadd.f32 %v2010, %v2038
        %v2059 = vadd.f32 %v2011, %v2040
        %v2060 = vadd.f32 %v2012, %v2042
        %v2061 = vadd.f32 %v2013, %v2044
        %v2062 = vadd.f32 %v2014, %v2046
        %v2063 = vmul.f32 %v1951, 0.0860415
        %v2064 = vmul.f32 %v1952, 0.0860415
        %v2065 = vmul.f32 %v1953, 0.0860415
        %v2066 = vmul.f32 %v1954, 0.0860415
        %v2067 = vmul.f32 %v1955, 0.0860415
        %v2068 = vmul.f32 %v1956, 0.0860415
        %v2069 = vmul.f32 %v1957, 0.0860415
        %v2070 = vmul.f32 %v1958, 0.0860415
        %2079 = vrot.lane.b32.xlu0 %v2063, 125
        %v2080 = vpop.permute.xlu0 %2079
        %2081 = vrot.lane.b32.xlu0 %v2064, 125
        %v2082 = vpop.permute.xlu0 %2081
        %2083 = vrot.lane.b32.xlu0 %v2065, 125
        %v2084 = vpop.permute.xlu0 %2083
        %2085 = vrot.lane.b32.xlu0 %v2066, 125
        %v2086 = vpop.permute.xlu0 %2085
        %2087 = vrot.lane.b32.xlu0 %v2067, 125
        %v2088 = vpop.permute.xlu0 %2087
        %2089 = vrot.lane.b32.xlu0 %v2068, 125
        %v2090 = vpop.permute.xlu0 %2089
        %2091 = vrot.lane.b32.xlu0 %v2069, 125
        %v2092 = vpop.permute.xlu0 %2091
        %2093 = vrot.lane.b32.xlu0 %v2070, 125
        %v2094 = vpop.permute.xlu0 %2093
        %v2103 = vadd.f32 %v2055, %v2080
        %v2104 = vadd.f32 %v2056, %v2082
        %v2105 = vadd.f32 %v2057, %v2084
        %v2106 = vadd.f32 %v2058, %v2086
        %v2107 = vadd.f32 %v2059, %v2088
        %v2108 = vadd.f32 %v2060, %v2090
        %v2109 = vadd.f32 %v2061, %v2092
        %v2110 = vadd.f32 %v2062, %v2094
        %v2111 = vmul.f32 %v1951, 0.23330304
        %v2112 = vmul.f32 %v1952, 0.23330304
        %v2113 = vmul.f32 %v1953, 0.23330304
        %v2114 = vmul.f32 %v1954, 0.23330304
        %v2115 = vmul.f32 %v1955, 0.23330304
        %v2116 = vmul.f32 %v1956, 0.23330304
        %v2117 = vmul.f32 %v1957, 0.23330304
        %v2118 = vmul.f32 %v1958, 0.23330304
        %2127 = vrot.lane.b32.xlu0 %v2111, 124
        %v2128 = vpop.permute.xlu0 %2127
        %2129 = vrot.lane.b32.xlu0 %v2112, 124
        %v2130 = vpop.permute.xlu0 %2129
        %2131 = vrot.lane.b32.xlu0 %v2113, 124
        %v2132 = vpop.permute.xlu0 %2131
        %2133 = vrot.lane.b32.xlu0 %v2114, 124
        %v2134 = vpop.permute.xlu0 %2133
        %2135 = vrot.lane.b32.xlu0 %v2115, 124
        %v2136 = vpop.permute.xlu0 %2135
        %2137 = vrot.lane.b32.xlu0 %v2116, 124
        %v2138 = vpop.permute.xlu0 %2137
        %2139 = vrot.lane.b32.xlu0 %v2117, 124
        %v2140 = vpop.permute.xlu0 %2139
        %2141 = vrot.lane.b32.xlu0 %v2118, 124
        %v2142 = vpop.permute.xlu0 %2141
        %v2151 = vadd.f32 %v2103, %v2128
        %v2152 = vadd.f32 %v2104, %v2130
        %v2153 = vadd.f32 %v2105, %v2132
        %v2154 = vadd.f32 %v2106, %v2134
        %v2155 = vadd.f32 %v2107, %v2136
        %v2156 = vadd.f32 %v2108, %v2138
        %v2157 = vadd.f32 %v2109, %v2140
        %v2158 = vadd.f32 %v2110, %v2142
        %v2159 = vmul.f32 %v1951, 0.32533032
        %v2160 = vmul.f32 %v1952, 0.32533032
        %v2161 = vmul.f32 %v1953, 0.32533032
        %v2162 = vmul.f32 %v1954, 0.32533032
        %v2163 = vmul.f32 %v1955, 0.32533032
        %v2164 = vmul.f32 %v1956, 0.32533032
        %v2165 = vmul.f32 %v1957, 0.32533032
        %v2166 = vmul.f32 %v1958, 0.32533032
        %2175 = vrot.lane.b32.xlu0 %v2159, 123
        %v2176 = vpop.permute.xlu0 %2175
        %2177 = vrot.lane.b32.xlu0 %v2160, 123
        %v2178 = vpop.permute.xlu0 %2177
        %2179 = vrot.lane.b32.xlu0 %v2161, 123
        %v2180 = vpop.permute.xlu0 %2179
        %2181 = vrot.lane.b32.xlu0 %v2162, 123
        %v2182 = vpop.permute.xlu0 %2181
        %2183 = vrot.lane.b32.xlu0 %v2163, 123
        %v2184 = vpop.permute.xlu0 %2183
        %2185 = vrot.lane.b32.xlu0 %v2164, 123
        %v2186 = vpop.permute.xlu0 %2185
        %2187 = vrot.lane.b32.xlu0 %v2165, 123
        %v2188 = vpop.permute.xlu0 %2187
        %2189 = vrot.lane.b32.xlu0 %v2166, 123
        %v2190 = vpop.permute.xlu0 %2189
        %v2199 = vadd.f32 %v2151, %v2176
        %v2200 = vadd.f32 %v2152, %v2178
        %v2201 = vadd.f32 %v2153, %v2180
        %v2202 = vadd.f32 %v2154, %v2182
        %v2203 = vadd.f32 %v2155, %v2184
        %v2204 = vadd.f32 %v2156, %v2186
        %v2205 = vadd.f32 %v2157, %v2188
        %v2206 = vadd.f32 %v2158, %v2190
        %2207 = vrot.lane.b32.xlu0 %v2111, 122
        %v2208 = vpop.permute.xlu0 %2207
        %2209 = vrot.lane.b32.xlu0 %v2112, 122
        %v2210 = vpop.permute.xlu0 %2209
        %2211 = vrot.lane.b32.xlu0 %v2113, 122
        %v2212 = vpop.permute.xlu0 %2211
        %2213 = vrot.lane.b32.xlu0 %v2114, 122
        %v2214 = vpop.permute.xlu0 %2213
        %2215 = vrot.lane.b32.xlu0 %v2115, 122
        %v2216 = vpop.permute.xlu0 %2215
        %2217 = vrot.lane.b32.xlu0 %v2116, 122
        %v2218 = vpop.permute.xlu0 %2217
        %2219 = vrot.lane.b32.xlu0 %v2117, 122
        %v2220 = vpop.permute.xlu0 %2219
        %2221 = vrot.lane.b32.xlu0 %v2118, 122
        %v2222 = vpop.permute.xlu0 %2221
        %v2231 = vadd.f32 %v2199, %v2208
        %v2232 = vadd.f32 %v2200, %v2210
        %v2233 = vadd.f32 %v2201, %v2212
        %v2234 = vadd.f32 %v2202, %v2214
        %v2235 = vadd.f32 %v2203, %v2216
        %v2236 = vadd.f32 %v2204, %v2218
        %v2237 = vadd.f32 %v2205, %v2220
        %v2238 = vadd.f32 %v2206, %v2222
        %2239 = vrot.lane.b32.xlu0 %v2063, 121
        %v2240 = vpop.permute.xlu0 %2239
        %2241 = vrot.lane.b32.xlu0 %v2064, 121
        %v2242 = vpop.permute.xlu0 %2241
        %2243 = vrot.lane.b32.xlu0 %v2065, 121
        %v2244 = vpop.permute.xlu0 %2243
        %2245 = vrot.lane.b32.xlu0 %v2066, 121
        %v2246 = vpop.permute.xlu0 %2245
        %2247 = vrot.lane.b32.xlu0 %v2067, 121
        %v2248 = vpop.permute.xlu0 %2247
        %2249 = vrot.lane.b32.xlu0 %v2068, 121
        %v2250 = vpop.permute.xlu0 %2249
        %2251 = vrot.lane.b32.xlu0 %v2069, 121
        %v2252 = vpop.permute.xlu0 %2251
        %2253 = vrot.lane.b32.xlu0 %v2070, 121
        %v2254 = vpop.permute.xlu0 %2253
        %v2263 = vadd.f32 %v2231, %v2240
        %v2264 = vadd.f32 %v2232, %v2242
        %v2265 = vadd.f32 %v2233, %v2244
        %v2266 = vadd.f32 %v2234, %v2246
        %v2267 = vadd.f32 %v2235, %v2248
        %v2268 = vadd.f32 %v2236, %v2250
        %v2269 = vadd.f32 %v2237, %v2252
        %v2270 = vadd.f32 %v2238, %v2254
        %2271 = vrot.lane.b32.xlu0 %v2015, 120
        %v2272 = vpop.permute.xlu0 %2271
        %2273 = vrot.lane.b32.xlu0 %v2016, 120
        %v2274 = vpop.permute.xlu0 %2273
        %2275 = vrot.lane.b32.xlu0 %v2017, 120
        %v2276 = vpop.permute.xlu0 %2275
        %2277 = vrot.lane.b32.xlu0 %v2018, 120
        %v2278 = vpop.permute.xlu0 %2277
        %2279 = vrot.lane.b32.xlu0 %v2019, 120
        %v2280 = vpop.permute.xlu0 %2279
        %2281 = vrot.lane.b32.xlu0 %v2020, 120
        %v2282 = vpop.permute.xlu0 %2281
        %2283 = vrot.lane.b32.xlu0 %v2021, 120
        %v2284 = vpop.permute.xlu0 %2283
        %2285 = vrot.lane.b32.xlu0 %v2022, 120
        %v2286 = vpop.permute.xlu0 %2285
        %v2295 = vadd.f32 %v2263, %v2272
        %v2296 = vadd.f32 %v2264, %v2274
        %v2297 = vadd.f32 %v2265, %v2276
        %v2298 = vadd.f32 %v2266, %v2278
        %v2299 = vadd.f32 %v2267, %v2280
        %v2300 = vadd.f32 %v2268, %v2282
        %v2301 = vadd.f32 %v2269, %v2284
        %v2302 = vadd.f32 %v2270, %v2286
        %2303 = vrot.lane.b32.xlu0 %v1967, 119
        %v2304 = vpop.permute.xlu0 %2303
        %2305 = vrot.lane.b32.xlu0 %v1968, 119
        %v2306 = vpop.permute.xlu0 %2305
        %2307 = vrot.lane.b32.xlu0 %v1969, 119
        %v2308 = vpop.permute.xlu0 %2307
        %2309 = vrot.lane.b32.xlu0 %v1970, 119
        %v2310 = vpop.permute.xlu0 %2309
        %2311 = vrot.lane.b32.xlu0 %v1971, 119
        %v2312 = vpop.permute.xlu0 %2311
        %2313 = vrot.lane.b32.xlu0 %v1972, 119
        %v2314 = vpop.permute.xlu0 %2313
        %2315 = vrot.lane.b32.xlu0 %v1973, 119
        %v2316 = vpop.permute.xlu0 %2315
        %2317 = vrot.lane.b32.xlu0 %v1974, 119
        %v2318 = vpop.permute.xlu0 %2317
        %v2327 = vadd.f32 %v2295, %v2304
        %v2328 = vadd.f32 %v2296, %v2306
        %v2329 = vadd.f32 %v2297, %v2308
        %v2330 = vadd.f32 %v2298, %v2310
        %v2331 = vadd.f32 %v2299, %v2312
        %v2332 = vadd.f32 %v2300, %v2314
        %v2333 = vadd.f32 %v2301, %v2316
        %v2334 = vadd.f32 %v2302, %v2318
        %2343 = vrot.lane.b32.xlu0 %v1959, 118
        %v2344 = vpop.permute.xlu0 %2343
        %2345 = vrot.lane.b32.xlu0 %v1960, 118
        %v2346 = vpop.permute.xlu0 %2345
        %2347 = vrot.lane.b32.xlu0 %v1961, 118
        %v2348 = vpop.permute.xlu0 %2347
        %2349 = vrot.lane.b32.xlu0 %v1962, 118
        %v2350 = vpop.permute.xlu0 %2349
        %2351 = vrot.lane.b32.xlu0 %v1963, 118
        %v2352 = vpop.permute.xlu0 %2351
        %2353 = vrot.lane.b32.xlu0 %v1964, 118
        %v2354 = vpop.permute.xlu0 %2353
        %2355 = vrot.lane.b32.xlu0 %v1965, 118
        %v2356 = vpop.permute.xlu0 %2355
        %2357 = vrot.lane.b32.xlu0 %v1966, 118
        %v2358 = vpop.permute.xlu0 %2357
        %v2367 = vadd.f32 %v2327, %v2344
        %v2368 = vadd.f32 %v2328, %v2346
        %v2369 = vadd.f32 %v2329, %v2348
        %v2370 = vadd.f32 %v2330, %v2350
        %v2371 = vadd.f32 %v2331, %v2352
        %v2372 = vadd.f32 %v2332, %v2354
        %v2373 = vadd.f32 %v2333, %v2356
        %v2374 = vadd.f32 %v2334, %v2358
        %s2375 = scalar_lea.vmem %s186, 64 [#allocation7]
        %2376 = vst.msk [vmem:[%s2375] sm:$0xff] %vm205, %v2367
        %2377 = vst.msk [vmem:[%s2375 + $0x8] sm:$0xff] %vm205, %v2368
        %2378 = vst.msk [vmem:[%s2375 + $0x10] sm:$0xff] %vm205, %v2369
        %2379 = vst.msk [vmem:[%s2375 + $0x18] sm:$0xff] %vm205, %v2370
        %2380 = vst.msk [vmem:[%s2375 + $0x20] sm:$0xff] %vm205, %v2371
        %2381 = vst.msk [vmem:[%s2375 + $0x28] sm:$0xff] %vm205, %v2372
        %2382 = vst.msk [vmem:[%s2375 + $0x30] sm:$0xff] %vm205, %v2373
        %2383 = vst.msk [vmem:[%s2375 + $0x38] sm:$0xff] %vm205, %v2374
        %2384 = vst.msk [vmem:[#allocation2 + $0x5] sm:$0xff] %vm205, %v2367
        %2385 = vst.msk [vmem:[#allocation2 + $0xd] sm:$0xff] %vm205, %v2368
        %2386 = vst.msk [vmem:[#allocation2 + $0x25] sm:$0xff] %vm205, %v2369
        %2387 = vst.msk [vmem:[#allocation2 + $0x2d] sm:$0xff] %vm205, %v2370
        %2388 = vst.msk [vmem:[#allocation2 + $0x45] sm:$0xff] %vm205, %v2371
        %2389 = vst.msk [vmem:[#allocation2 + $0x4d] sm:$0xff] %vm205, %v2372
        %2390 = vst.msk [vmem:[#allocation2 + $0x65] sm:$0xff] %vm205, %v2373
        %2391 = vst.msk [vmem:[#allocation2 + $0x6d] sm:$0xff] %vm205, %v2374
        %2392 = vst.msk [vmem:[#allocation2 + $0x3] sm:$0x2] %vm214, %v2367
        %2393 = vst.msk [vmem:[#allocation2 + $0x23] sm:$0x2] %vm214, %v2369
        %2394 = vst.msk [vmem:[#allocation2 + $0x43] sm:$0x2] %vm214, %v2371
        %2395 = vst.msk [vmem:[#allocation2 + $0x63] sm:$0x2] %vm214, %v2373
        %2396 = vst.msk [vmem:[#allocation2 + $0xf] sm:$0x40] %vm219, %v2368
        %2397 = vst.msk [vmem:[#allocation2 + $0x2f] sm:$0x40] %vm219, %v2370
        %2398 = vst.msk [vmem:[#allocation2 + $0x4f] sm:$0x40] %vm219, %v2372
        %2399 = vst.msk [vmem:[#allocation2 + $0x6f] sm:$0x40] %vm219, %v2374
        %2400 = vst.msk [vmem:[#allocation2 + $0x1] sm:$0x4] %vm224, %v2367
        %2401 = vst.msk [vmem:[#allocation2 + $0x21] sm:$0x4] %vm224, %v2369
        %2402 = vst.msk [vmem:[#allocation2 + $0x41] sm:$0x4] %vm224, %v2371
        %2403 = vst.msk [vmem:[#allocation2 + $0x61] sm:$0x4] %vm224, %v2373
        %2404 = vst.msk [vmem:[#allocation2 + $0x11] sm:$0x20] %vm229, %v2368
        %2405 = vst.msk [vmem:[#allocation2 + $0x31] sm:$0x20] %vm229, %v2370
        %2406 = vst.msk [vmem:[#allocation2 + $0x51] sm:$0x20] %vm229, %v2372
        %2407 = vst.msk [vmem:[#allocation2 + $0x71] sm:$0x20] %vm229, %v2374
        %2408 = vst.msk [vmem:[#allocation2 - $0x1] sm:$0x8] %vm234, %v2367
        %2409 = vst.msk [vmem:[#allocation2 + $0x1f] sm:$0x8] %vm234, %v2369
        %2410 = vst.msk [vmem:[#allocation2 + $0x3f] sm:$0x8] %vm234, %v2371
        %2411 = vst.msk [vmem:[#allocation2 + $0x5f] sm:$0x8] %vm234, %v2373
        %2412 = vst.msk [vmem:[#allocation2 + $0x13] sm:$0x10] %vm239, %v2368
        %2413 = vst.msk [vmem:[#allocation2 + $0x33] sm:$0x10] %vm239, %v2370
        %2414 = vst.msk [vmem:[#allocation2 + $0x53] sm:$0x10] %vm239, %v2372
        %2415 = vst.msk [vmem:[#allocation2 + $0x73] sm:$0x10] %vm239, %v2374
        %2416 = vst.msk [vmem:[#allocation2 - $0x3] sm:$0x10] %vm239, %v2367
        %2417 = vst.msk [vmem:[#allocation2 + $0x1d] sm:$0x10] %vm239, %v2369
        %2418 = vst.msk [vmem:[#allocation2 + $0x3d] sm:$0x10] %vm239, %v2371
        %2419 = vst.msk [vmem:[#allocation2 + $0x5d] sm:$0x10] %vm239, %v2373
        %2420 = vst.msk [vmem:[#allocation2 + $0x15] sm:$0x8] %vm234, %v2368
        %2421 = vst.msk [vmem:[#allocation2 + $0x35] sm:$0x8] %vm234, %v2370
        %2422 = vst.msk [vmem:[#allocation2 + $0x55] sm:$0x8] %vm234, %v2372
        %2423 = vst.msk [vmem:[#allocation2 + $0x75] sm:$0x8] %vm234, %v2374
        %2424 = vst.msk [vmem:[#allocation2 - $0x5] sm:$0x20] %vm229, %v2367
        %2425 = vst.msk [vmem:[#allocation2 + $0x1b] sm:$0x20] %vm229, %v2369
        %2426 = vst.msk [vmem:[#allocation2 + $0x3b] sm:$0x20] %vm229, %v2371
        %2427 = vst.msk [vmem:[#allocation2 + $0x5b] sm:$0x20] %vm229, %v2373
        %2428 = vst.msk [vmem:[#allocation2 + $0x17] sm:$0x4] %vm224, %v2368
        %2429 = vst.msk [vmem:[#allocation2 + $0x37] sm:$0x4] %vm224, %v2370
        %2430 = vst.msk [vmem:[#allocation2 + $0x57] sm:$0x4] %vm224, %v2372
        %2431 = vst.msk [vmem:[#allocation2 + $0x77] sm:$0x4] %vm224, %v2374
        %v2432 = vld [vmem:[#allocation2] sm:$0xff]
        %v2433 = vld [vmem:[#allocation2 + $0x8] sm:$0xff]
        %v2434 = vld [vmem:[#allocation2 + $0x20] sm:$0xff]
        %v2435 = vld [vmem:[#allocation2 + $0x28] sm:$0xff]
        %v2436 = vld [vmem:[#allocation2 + $0x40] sm:$0xff]
        %v2437 = vld [vmem:[#allocation2 + $0x48] sm:$0xff]
        %v2438 = vld [vmem:[#allocation2 + $0x60] sm:$0xff]
        %v2439 = vld [vmem:[#allocation2 + $0x68] sm:$0xff]
        %v2440 = vmul.f32 %v2432, 0.0013736752
        %v2441 = vmul.f32 %v2433, 0.0013736752
        %v2442 = vmul.f32 %v2434, 0.0013736752
        %v2443 = vmul.f32 %v2435, 0.0013736752
        %v2444 = vmul.f32 %v2436, 0.0013736752
        %v2445 = vmul.f32 %v2437, 0.0013736752
        %v2446 = vmul.f32 %v2438, 0.0013736752
        %v2447 = vmul.f32 %v2439, 0.0013736752
        %v2448 = vld [vmem:[#allocation2 + $0x1] sm:$0xff]
        %v2449 = vld [vmem:[#allocation2 + $0x9] sm:$0xff]
        %v2450 = vld [vmem:[#allocation2 + $0x21] sm:$0xff]
        %v2451 = vld [vmem:[#allocation2 + $0x29] sm:$0xff]
        %v2452 = vld [vmem:[#allocation2 + $0x41] sm:$0xff]
        %v2453 = vld [vmem:[#allocation2 + $0x49] sm:$0xff]
        %v2454 = vld [vmem:[#allocation2 + $0x61] sm:$0xff]
        %v2455 = vld [vmem:[#allocation2 + $0x69] sm:$0xff]
        %v2456 = vmul.f32 %v2448, 0.009049076
        %v2457 = vmul.f32 %v2449, 0.009049076
        %v2458 = vmul.f32 %v2450, 0.009049076
        %v2459 = vmul.f32 %v2451, 0.009049076
        %v2460 = vmul.f32 %v2452, 0.009049076
        %v2461 = vmul.f32 %v2453, 0.009049076
        %v2462 = vmul.f32 %v2454, 0.009049076
        %v2463 = vmul.f32 %v2455, 0.009049076
        %v2464 = vadd.f32 %v2440, %v2456
        %v2465 = vadd.f32 %v2441, %v2457
        %v2466 = vadd.f32 %v2442, %v2458
        %v2467 = vadd.f32 %v2443, %v2459
        %v2468 = vadd.f32 %v2444, %v2460
        %v2469 = vadd.f32 %v2445, %v2461
        %v2470 = vadd.f32 %v2446, %v2462
        %v2471 = vadd.f32 %v2447, %v2463
        %v2472 = vld [vmem:[#allocation2 + $0x2] sm:$0xff]
        %v2473 = vld [vmem:[#allocation2 + $0xa] sm:$0xff]
        %v2474 = vld [vmem:[#allocation2 + $0x22] sm:$0xff]
        %v2475 = vld [vmem:[#allocation2 + $0x2a] sm:$0xff]
        %v2476 = vld [vmem:[#allocation2 + $0x42] sm:$0xff]
        %v2477 = vld [vmem:[#allocation2 + $0x4a] sm:$0xff]
        %v2478 = vld [vmem:[#allocation2 + $0x62] sm:$0xff]
        %v2479 = vld [vmem:[#allocation2 + $0x6a] sm:$0xff]
        %v2480 = vmul.f32 %v2472, 0.039209068
        %v2481 = vmul.f32 %v2473, 0.039209068
        %v2482 = vmul.f32 %v2474, 0.039209068
        %v2483 = vmul.f32 %v2475, 0.039209068
        %v2484 = vmul.f32 %v2476, 0.039209068
        %v2485 = vmul.f32 %v2477, 0.039209068
        %v2486 = vmul.f32 %v2478, 0.039209068
        %v2487 = vmul.f32 %v2479, 0.039209068
        %v2488 = vadd.f32 %v2464, %v2480
        %v2489 = vadd.f32 %v2465, %v2481
        %v2490 = vadd.f32 %v2466, %v2482
        %v2491 = vadd.f32 %v2467, %v2483
        %v2492 = vadd.f32 %v2468, %v2484
        %v2493 = vadd.f32 %v2469, %v2485
        %v2494 = vadd.f32 %v2470, %v2486
        %v2495 = vadd.f32 %v2471, %v2487
        %v2496 = vld [vmem:[#allocation2 + $0x3] sm:$0xff]
        %v2497 = vld [vmem:[#allocation2 + $0xb] sm:$0xff]
        %v2498 = vld [vmem:[#allocation2 + $0x23] sm:$0xff]
        %v2499 = vld [vmem:[#allocation2 + $0x2b] sm:$0xff]
        %v2500 = vld [vmem:[#allocation2 + $0x43] sm:$0xff]
        %v2501 = vld [vmem:[#allocation2 + $0x4b] sm:$0xff]
        %v2502 = vld [vmem:[#allocation2 + $0x63] sm:$0xff]
        %v2503 = vld [vmem:[#allocation2 + $0x6b] sm:$0xff]
        %v2504 = vmul.f32 %v2496, 0.11174576
        %v2505 = vmul.f32 %v2497, 0.11174576
        %v2506 = vmul.f32 %v2498, 0.11174576
        %v2507 = vmul.f32 %v2499, 0.11174576
        %v2508 = vmul.f32 %v2500, 0.11174576
        %v2509 = vmul.f32 %v2501, 0.11174576
        %v2510 = vmul.f32 %v2502, 0.11174576
        %v2511 = vmul.f32 %v2503, 0.11174576
        %v2512 = vadd.f32 %v2488, %v2504
        %v2513 = vadd.f32 %v2489, %v2505
        %v2514 = vadd.f32 %v2490, %v2506
        %v2515 = vadd.f32 %v2491, %v2507
        %v2516 = vadd.f32 %v2492, %v2508
        %v2517 = vadd.f32 %v2493, %v2509
        %v2518 = vadd.f32 %v2494, %v2510
        %v2519 = vadd.f32 %v2495, %v2511
        %v2520 = vld [vmem:[#allocation2 + $0x4] sm:$0xff]
        %v2521 = vld [vmem:[#allocation2 + $0xc] sm:$0xff]
        %v2522 = vld [vmem:[#allocation2 + $0x24] sm:$0xff]
        %v2523 = vld [vmem:[#allocation2 + $0x2c] sm:$0xff]
        %v2524 = vld [vmem:[#allocation2 + $0x44] sm:$0xff]
        %v2525 = vld [vmem:[#allocation2 + $0x4c] sm:$0xff]
        %v2526 = vld [vmem:[#allocation2 + $0x64] sm:$0xff]
        %v2527 = vld [vmem:[#allocation2 + $0x6c] sm:$0xff]
        %v2528 = vmul.f32 %v2520, 0.2094777
        %v2529 = vmul.f32 %v2521, 0.2094777
        %v2530 = vmul.f32 %v2522, 0.2094777
        %v2531 = vmul.f32 %v2523, 0.2094777
        %v2532 = vmul.f32 %v2524, 0.2094777
        %v2533 = vmul.f32 %v2525, 0.2094777
        %v2534 = vmul.f32 %v2526, 0.2094777
        %v2535 = vmul.f32 %v2527, 0.2094777
        %v2536 = vadd.f32 %v2512, %v2528
        %v2537 = vadd.f32 %v2513, %v2529
        %v2538 = vadd.f32 %v2514, %v2530
        %v2539 = vadd.f32 %v2515, %v2531
        %v2540 = vadd.f32 %v2516, %v2532
        %v2541 = vadd.f32 %v2517, %v2533
        %v2542 = vadd.f32 %v2518, %v2534
        %v2543 = vadd.f32 %v2519, %v2535
        %v2544 = vld [vmem:[#allocation2 + $0x5] sm:$0xff]
        %v2545 = vld [vmem:[#allocation2 + $0xd] sm:$0xff]
        %v2546 = vld [vmem:[#allocation2 + $0x25] sm:$0xff]
        %v2547 = vld [vmem:[#allocation2 + $0x2d] sm:$0xff]
        %v2548 = vld [vmem:[#allocation2 + $0x45] sm:$0xff]
        %v2549 = vld [vmem:[#allocation2 + $0x4d] sm:$0xff]
        %v2550 = vld [vmem:[#allocation2 + $0x65] sm:$0xff]
        %v2551 = vld [vmem:[#allocation2 + $0x6d] sm:$0xff]
        %v2552 = vmul.f32 %v2544, 0.25828946
        %v2553 = vmul.f32 %v2545, 0.25828946
        %v2554 = vmul.f32 %v2546, 0.25828946
        %v2555 = vmul.f32 %v2547, 0.25828946
        %v2556 = vmul.f32 %v2548, 0.25828946
        %v2557 = vmul.f32 %v2549, 0.25828946
        %v2558 = vmul.f32 %v2550, 0.25828946
        %v2559 = vmul.f32 %v2551, 0.25828946
        %v2560 = vadd.f32 %v2536, %v2552
        %v2561 = vadd.f32 %v2537, %v2553
        %v2562 = vadd.f32 %v2538, %v2554
        %v2563 = vadd.f32 %v2539, %v2555
        %v2564 = vadd.f32 %v2540, %v2556
        %v2565 = vadd.f32 %v2541, %v2557
        %v2566 = vadd.f32 %v2542, %v2558
        %v2567 = vadd.f32 %v2543, %v2559
        %v2568 = vld [vmem:[#allocation2 + $0x6] sm:$0xff]
        %v2569 = vld [vmem:[#allocation2 + $0xe] sm:$0xff]
        %v2570 = vld [vmem:[#allocation2 + $0x26] sm:$0xff]
        %v2571 = vld [vmem:[#allocation2 + $0x2e] sm:$0xff]
        %v2572 = vld [vmem:[#allocation2 + $0x46] sm:$0xff]
        %v2573 = vld [vmem:[#allocation2 + $0x4e] sm:$0xff]
        %v2574 = vld [vmem:[#allocation2 + $0x66] sm:$0xff]
        %v2575 = vld [vmem:[#allocation2 + $0x6e] sm:$0xff]
        %v2576 = vmul.f32 %v2568, 0.2094777
        %v2577 = vmul.f32 %v2569, 0.2094777
        %v2578 = vmul.f32 %v2570, 0.2094777
        %v2579 = vmul.f32 %v2571, 0.2094777
        %v2580 = vmul.f32 %v2572, 0.2094777
        %v2581 = vmul.f32 %v2573, 0.2094777
        %v2582 = vmul.f32 %v2574, 0.2094777
        %v2583 = vmul.f32 %v2575, 0.2094777
        %v2584 = vadd.f32 %v2560, %v2576
        %v2585 = vadd.f32 %v2561, %v2577
        %v2586 = vadd.f32 %v2562, %v2578
        %v2587 = vadd.f32 %v2563, %v2579
        %v2588 = vadd.f32 %v2564, %v2580
        %v2589 = vadd.f32 %v2565, %v2581
        %v2590 = vadd.f32 %v2566, %v2582
        %v2591 = vadd.f32 %v2567, %v2583
        %v2592 = vld [vmem:[#allocation2 + $0x7] sm:$0xff]
        %v2593 = vld [vmem:[#allocation2 + $0xf] sm:$0xff]
        %v2594 = vld [vmem:[#allocation2 + $0x27] sm:$0xff]
        %v2595 = vld [vmem:[#allocation2 + $0x2f] sm:$0xff]
        %v2596 = vld [vmem:[#allocation2 + $0x47] sm:$0xff]
        %v2597 = vld [vmem:[#allocation2 + $0x4f] sm:$0xff]
        %v2598 = vld [vmem:[#allocation2 + $0x67] sm:$0xff]
        %v2599 = vld [vmem:[#allocation2 + $0x6f] sm:$0xff]
        %v2600 = vmul.f32 %v2592, 0.11174576
        %v2601 = vmul.f32 %v2593, 0.11174576
        %v2602 = vmul.f32 %v2594, 0.11174576
        %v2603 = vmul.f32 %v2595, 0.11174576
        %v2604 = vmul.f32 %v2596, 0.11174576
        %v2605 = vmul.f32 %v2597, 0.11174576
        %v2606 = vmul.f32 %v2598, 0.11174576
        %v2607 = vmul.f32 %v2599, 0.11174576
        %v2608 = vadd.f32 %v2584, %v2600
        %v2609 = vadd.f32 %v2585, %v2601
        %v2610 = vadd.f32 %v2586, %v2602
        %v2611 = vadd.f32 %v2587, %v2603
        %v2612 = vadd.f32 %v2588, %v2604
        %v2613 = vadd.f32 %v2589, %v2605
        %v2614 = vadd.f32 %v2590, %v2606
        %v2615 = vadd.f32 %v2591, %v2607
        %v2616 = vld [vmem:[#allocation2 + $0x10] sm:$0xff]
        %v2617 = vld [vmem:[#allocation2 + $0x30] sm:$0xff]
        %v2618 = vld [vmem:[#allocation2 + $0x50] sm:$0xff]
        %v2619 = vld [vmem:[#allocation2 + $0x70] sm:$0xff]
        %v2620 = vmul.f32 %v2433, 0.039209068
        %v2621 = vmul.f32 %v2616, 0.039209068
        %v2622 = vmul.f32 %v2435, 0.039209068
        %v2623 = vmul.f32 %v2617, 0.039209068
        %v2624 = vmul.f32 %v2437, 0.039209068
        %v2625 = vmul.f32 %v2618, 0.039209068
        %v2626 = vmul.f32 %v2439, 0.039209068
        %v2627 = vmul.f32 %v2619, 0.039209068
        %v2628 = vadd.f32 %v2608, %v2620
        %v2629 = vadd.f32 %v2609, %v2621
        %v2630 = vadd.f32 %v2610, %v2622
        %v2631 = vadd.f32 %v2611, %v2623
        %v2632 = vadd.f32 %v2612, %v2624
        %v2633 = vadd.f32 %v2613, %v2625
        %v2634 = vadd.f32 %v2614, %v2626
        %v2635 = vadd.f32 %v2615, %v2627
        %v2636 = vld [vmem:[#allocation2 + $0x11] sm:$0xff]
        %v2637 = vld [vmem:[#allocation2 + $0x31] sm:$0xff]
        %v2638 = vld [vmem:[#allocation2 + $0x51] sm:$0xff]
        %v2639 = vld [vmem:[#allocation2 + $0x71] sm:$0xff]
        %v2640 = vmul.f32 %v2636, 0.009049076
        %v2641 = vmul.f32 %v2637, 0.009049076
        %v2642 = vmul.f32 %v2638, 0.009049076
        %v2643 = vmul.f32 %v2639, 0.009049076
        %v2644 = vadd.f32 %v2628, %v2457
        %v2645 = vadd.f32 %v2629, %v2640
        %v2646 = vadd.f32 %v2630, %v2459
        %v2647 = vadd.f32 %v2631, %v2641
        %v2648 = vadd.f32 %v2632, %v2461
        %v2649 = vadd.f32 %v2633, %v2642
        %v2650 = vadd.f32 %v2634, %v2463
        %v2651 = vadd.f32 %v2635, %v2643
        %v2652 = vld [vmem:[#allocation2 + $0x12] sm:$0xff]
        %v2653 = vld [vmem:[#allocation2 + $0x32] sm:$0xff]
        %v2654 = vld [vmem:[#allocation2 + $0x52] sm:$0xff]
        %v2655 = vld [vmem:[#allocation2 + $0x72] sm:$0xff]
        %v2656 = vmul.f32 %v2473, 0.0013736752
        %v2657 = vmul.f32 %v2652, 0.0013736752
        %v2658 = vmul.f32 %v2475, 0.0013736752
        %v2659 = vmul.f32 %v2653, 0.0013736752
        %v2660 = vmul.f32 %v2477, 0.0013736752
        %v2661 = vmul.f32 %v2654, 0.0013736752
        %v2662 = vmul.f32 %v2479, 0.0013736752
        %v2663 = vmul.f32 %v2655, 0.0013736752
        %v2664 = vadd.f32 %v2644, %v2656
        %v2665 = vadd.f32 %v2645, %v2657
        %v2666 = vadd.f32 %v2646, %v2658
        %v2667 = vadd.f32 %v2647, %v2659
        %v2668 = vadd.f32 %v2648, %v2660
        %v2669 = vadd.f32 %v2649, %v2661
        %v2670 = vadd.f32 %v2650, %v2662
        %v2671 = vadd.f32 %v2651, %v2663
        %2680 = vrot.lane.b32.xlu0 %v2664, 5
        %v2681 = vpop.permute.xlu0 %2680
        %2682 = vrot.lane.b32.xlu0 %v2665, 5
        %v2683 = vpop.permute.xlu0 %2682
        %2684 = vrot.lane.b32.xlu0 %v2666, 5
        %v2685 = vpop.permute.xlu0 %2684
        %2686 = vrot.lane.b32.xlu0 %v2667, 5
        %v2687 = vpop.permute.xlu0 %2686
        %2688 = vrot.lane.b32.xlu0 %v2668, 5
        %v2689 = vpop.permute.xlu0 %2688
        %2690 = vrot.lane.b32.xlu0 %v2669, 5
        %v2691 = vpop.permute.xlu0 %2690
        %2692 = vrot.lane.b32.xlu0 %v2670, 5
        %v2693 = vpop.permute.xlu0 %2692
        %2694 = vrot.lane.b32.xlu0 %v2671, 5
        %v2695 = vpop.permute.xlu0 %2694
        %2704 = vst.msk [vmem:[#allocation3] sm:$0xff] %vm532, %v2681
        %2705 = vst.msk [vmem:[#allocation3 + $0x8] sm:$0xff] %vm532, %v2683
        %2706 = vst.msk [vmem:[#allocation3 + $0x10] sm:$0xff] %vm532, %v2685
        %2707 = vst.msk [vmem:[#allocation3 + $0x18] sm:$0xff] %vm532, %v2687
        %2708 = vst.msk [vmem:[#allocation3 + $0x20] sm:$0xff] %vm532, %v2689
        %2709 = vst.msk [vmem:[#allocation3 + $0x28] sm:$0xff] %vm532, %v2691
        %2710 = vst.msk [vmem:[#allocation3 + $0x30] sm:$0xff] %vm532, %v2693
        %2711 = vst.msk [vmem:[#allocation3 + $0x38] sm:$0xff] %vm532, %v2695
        %2712 = vrot.lane.b32.xlu0 %v2664, 3
        %v2713 = vpop.permute.xlu0 %2712
        %2714 = vrot.lane.b32.xlu0 %v2665, 3
        %v2715 = vpop.permute.xlu0 %2714
        %2716 = vrot.lane.b32.xlu0 %v2666, 3
        %v2717 = vpop.permute.xlu0 %2716
        %2718 = vrot.lane.b32.xlu0 %v2667, 3
        %v2719 = vpop.permute.xlu0 %2718
        %2720 = vrot.lane.b32.xlu0 %v2668, 3
        %v2721 = vpop.permute.xlu0 %2720
        %2722 = vrot.lane.b32.xlu0 %v2669, 3
        %v2723 = vpop.permute.xlu0 %2722
        %2724 = vrot.lane.b32.xlu0 %v2670, 3
        %v2725 = vpop.permute.xlu0 %2724
        %2726 = vrot.lane.b32.xlu0 %v2671, 3
        %v2727 = vpop.permute.xlu0 %2726
        %2736 = vst.msk [vmem:[#allocation3] sm:$0xff] %vm565, %v2713
        %2737 = vst.msk [vmem:[#allocation3 + $0x8] sm:$0xff] %vm565, %v2715
        %2738 = vst.msk [vmem:[#allocation3 + $0x10] sm:$0xff] %vm565, %v2717
        %2739 = vst.msk [vmem:[#allocation3 + $0x18] sm:$0xff] %vm565, %v2719
        %2740 = vst.msk [vmem:[#allocation3 + $0x20] sm:$0xff] %vm565, %v2721
        %2741 = vst.msk [vmem:[#allocation3 + $0x28] sm:$0xff] %vm565, %v2723
        %2742 = vst.msk [vmem:[#allocation3 + $0x30] sm:$0xff] %vm565, %v2725
        %2743 = vst.msk [vmem:[#allocation3 + $0x38] sm:$0xff] %vm565, %v2727
        %2744 = vrot.lane.b32.xlu0 %v2664, 7
        %v2745 = vpop.permute.xlu0 %2744
        %2746 = vrot.lane.b32.xlu0 %v2665, 7
        %v2747 = vpop.permute.xlu0 %2746
        %2748 = vrot.lane.b32.xlu0 %v2666, 7
        %v2749 = vpop.permute.xlu0 %2748
        %2750 = vrot.lane.b32.xlu0 %v2667, 7
        %v2751 = vpop.permute.xlu0 %2750
        %2752 = vrot.lane.b32.xlu0 %v2668, 7
        %v2753 = vpop.permute.xlu0 %2752
        %2754 = vrot.lane.b32.xlu0 %v2669, 7
        %v2755 = vpop.permute.xlu0 %2754
        %2756 = vrot.lane.b32.xlu0 %v2670, 7
        %v2757 = vpop.permute.xlu0 %2756
        %2758 = vrot.lane.b32.xlu0 %v2671, 7
        %v2759 = vpop.permute.xlu0 %2758
        %2768 = vst.msk [vmem:[#allocation3] sm:$0xff] %vm598, %v2745
        %2769 = vst.msk [vmem:[#allocation3 + $0x8] sm:$0xff] %vm598, %v2747
        %2770 = vst.msk [vmem:[#allocation3 + $0x10] sm:$0xff] %vm598, %v2749
        %2771 = vst.msk [vmem:[#allocation3 + $0x18] sm:$0xff] %vm598, %v2751
        %2772 = vst.msk [vmem:[#allocation3 + $0x20] sm:$0xff] %vm598, %v2753
        %2773 = vst.msk [vmem:[#allocation3 + $0x28] sm:$0xff] %vm598, %v2755
        %2774 = vst.msk [vmem:[#allocation3 + $0x30] sm:$0xff] %vm598, %v2757
        %2775 = vst.msk [vmem:[#allocation3 + $0x38] sm:$0xff] %vm598, %v2759
        %2776 = vrot.lane.b32.xlu0 %v2664, 1
        %v2777 = vpop.permute.xlu0 %2776
        %2778 = vrot.lane.b32.xlu0 %v2665, 1
        %v2779 = vpop.permute.xlu0 %2778
        %2780 = vrot.lane.b32.xlu0 %v2666, 1
        %v2781 = vpop.permute.xlu0 %2780
        %2782 = vrot.lane.b32.xlu0 %v2667, 1
        %v2783 = vpop.permute.xlu0 %2782
        %2784 = vrot.lane.b32.xlu0 %v2668, 1
        %v2785 = vpop.permute.xlu0 %2784
        %2786 = vrot.lane.b32.xlu0 %v2669, 1
        %v2787 = vpop.permute.xlu0 %2786
        %2788 = vrot.lane.b32.xlu0 %v2670, 1
        %v2789 = vpop.permute.xlu0 %2788
        %2790 = vrot.lane.b32.xlu0 %v2671, 1
        %v2791 = vpop.permute.xlu0 %2790
        %2800 = vst.msk [vmem:[#allocation3] sm:$0xff] %vm631, %v2777
        %2801 = vst.msk [vmem:[#allocation3 + $0x8] sm:$0xff] %vm631, %v2779
        %2802 = vst.msk [vmem:[#allocation3 + $0x10] sm:$0xff] %vm631, %v2781
        %2803 = vst.msk [vmem:[#allocation3 + $0x18] sm:$0xff] %vm631, %v2783
        %2804 = vst.msk [vmem:[#allocation3 + $0x20] sm:$0xff] %vm631, %v2785
        %2805 = vst.msk [vmem:[#allocation3 + $0x28] sm:$0xff] %vm631, %v2787
        %2806 = vst.msk [vmem:[#allocation3 + $0x30] sm:$0xff] %vm631, %v2789
        %2807 = vst.msk [vmem:[#allocation3 + $0x38] sm:$0xff] %vm631, %v2791
        %2808 = vrot.lane.b32.xlu0 %v2664, 9
        %v2809 = vpop.permute.xlu0 %2808
        %2810 = vrot.lane.b32.xlu0 %v2665, 9
        %v2811 = vpop.permute.xlu0 %2810
        %2812 = vrot.lane.b32.xlu0 %v2666, 9
        %v2813 = vpop.permute.xlu0 %2812
        %2814 = vrot.lane.b32.xlu0 %v2667, 9
        %v2815 = vpop.permute.xlu0 %2814
        %2816 = vrot.lane.b32.xlu0 %v2668, 9
        %v2817 = vpop.permute.xlu0 %2816
        %2818 = vrot.lane.b32.xlu0 %v2669, 9
        %v2819 = vpop.permute.xlu0 %2818
        %2820 = vrot.lane.b32.xlu0 %v2670, 9
        %v2821 = vpop.permute.xlu0 %2820
        %2822 = vrot.lane.b32.xlu0 %v2671, 9
        %v2823 = vpop.permute.xlu0 %2822
        %2832 = vst.msk [vmem:[#allocation3] sm:$0xff] %vm664, %v2809
        %2833 = vst.msk [vmem:[#allocation3 + $0x8] sm:$0xff] %vm664, %v2811
        %2834 = vst.msk [vmem:[#allocation3 + $0x10] sm:$0xff] %vm664, %v2813
        %2835 = vst.msk [vmem:[#allocation3 + $0x18] sm:$0xff] %vm664, %v2815
        %2836 = vst.msk [vmem:[#allocation3 + $0x20] sm:$0xff] %vm664, %v2817
        %2837 = vst.msk [vmem:[#allocation3 + $0x28] sm:$0xff] %vm664, %v2819
        %2838 = vst.msk [vmem:[#allocation3 + $0x30] sm:$0xff] %vm664, %v2821
        %2839 = vst.msk [vmem:[#allocation3 + $0x38] sm:$0xff] %vm664, %v2823
        %2840 = vrot.lane.b32.xlu0 %v2664, 127
        %v2841 = vpop.permute.xlu0 %2840
        %2842 = vrot.lane.b32.xlu0 %v2665, 127
        %v2843 = vpop.permute.xlu0 %2842
        %2844 = vrot.lane.b32.xlu0 %v2666, 127
        %v2845 = vpop.permute.xlu0 %2844
        %2846 = vrot.lane.b32.xlu0 %v2667, 127
        %v2847 = vpop.permute.xlu0 %2846
        %2848 = vrot.lane.b32.xlu0 %v2668, 127
        %v2849 = vpop.permute.xlu0 %2848
        %2850 = vrot.lane.b32.xlu0 %v2669, 127
        %v2851 = vpop.permute.xlu0 %2850
        %2852 = vrot.lane.b32.xlu0 %v2670, 127
        %v2853 = vpop.permute.xlu0 %2852
        %2854 = vrot.lane.b32.xlu0 %v2671, 127
        %v2855 = vpop.permute.xlu0 %2854
        %2864 = vst.msk [vmem:[#allocation3] sm:$0xff] %vm697, %v2841
        %2865 = vst.msk [vmem:[#allocation3 + $0x8] sm:$0xff] %vm697, %v2843
        %2866 = vst.msk [vmem:[#allocation3 + $0x10] sm:$0xff] %vm697, %v2845
        %2867 = vst.msk [vmem:[#allocation3 + $0x18] sm:$0xff] %vm697, %v2847
        %2868 = vst.msk [vmem:[#allocation3 + $0x20] sm:$0xff] %vm697, %v2849
        %2869 = vst.msk [vmem:[#allocation3 + $0x28] sm:$0xff] %vm697, %v2851
        %2870 = vst.msk [vmem:[#allocation3 + $0x30] sm:$0xff] %vm697, %v2853
        %2871 = vst.msk [vmem:[#allocation3 + $0x38] sm:$0xff] %vm697, %v2855
        %2872 = vrot.lane.b32.xlu0 %v2664, 11
        %v2873 = vpop.permute.xlu0 %2872
        %2874 = vrot.lane.b32.xlu0 %v2665, 11
        %v2875 = vpop.permute.xlu0 %2874
        %2876 = vrot.lane.b32.xlu0 %v2666, 11
        %v2877 = vpop.permute.xlu0 %2876
        %2878 = vrot.lane.b32.xlu0 %v2667, 11
        %v2879 = vpop.permute.xlu0 %2878
        %2880 = vrot.lane.b32.xlu0 %v2668, 11
        %v2881 = vpop.permute.xlu0 %2880
        %2882 = vrot.lane.b32.xlu0 %v2669, 11
        %v2883 = vpop.permute.xlu0 %2882
        %2884 = vrot.lane.b32.xlu0 %v2670, 11
        %v2885 = vpop.permute.xlu0 %2884
        %2886 = vrot.lane.b32.xlu0 %v2671, 11
        %v2887 = vpop.permute.xlu0 %2886
        %2896 = vst.msk [vmem:[#allocation3] sm:$0xff] %vm730, %v2873
        %2897 = vst.msk [vmem:[#allocation3 + $0x8] sm:$0xff] %vm730, %v2875
        %2898 = vst.msk [vmem:[#allocation3 + $0x10] sm:$0xff] %vm730, %v2877
        %2899 = vst.msk [vmem:[#allocation3 + $0x18] sm:$0xff] %vm730, %v2879
        %2900 = vst.msk [vmem:[#allocation3 + $0x20] sm:$0xff] %vm730, %v2881
        %2901 = vst.msk [vmem:[#allocation3 + $0x28] sm:$0xff] %vm730, %v2883
        %2902 = vst.msk [vmem:[#allocation3 + $0x30] sm:$0xff] %vm730, %v2885
        %2903 = vst.msk [vmem:[#allocation3 + $0x38] sm:$0xff] %vm730, %v2887
        %2904 = vrot.lane.b32.xlu0 %v2664, 125
        %v2905 = vpop.permute.xlu0 %2904
        %2906 = vrot.lane.b32.xlu0 %v2665, 125
        %v2907 = vpop.permute.xlu0 %2906
        %2908 = vrot.lane.b32.xlu0 %v2666, 125
        %v2909 = vpop.permute.xlu0 %2908
        %2910 = vrot.lane.b32.xlu0 %v2667, 125
        %v2911 = vpop.permute.xlu0 %2910
        %2912 = vrot.lane.b32.xlu0 %v2668, 125
        %v2913 = vpop.permute.xlu0 %2912
        %2914 = vrot.lane.b32.xlu0 %v2669, 125
        %v2915 = vpop.permute.xlu0 %2914
        %2916 = vrot.lane.b32.xlu0 %v2670, 125
        %v2917 = vpop.permute.xlu0 %2916
        %2918 = vrot.lane.b32.xlu0 %v2671, 125
        %v2919 = vpop.permute.xlu0 %2918
        %2928 = vst.msk [vmem:[#allocation3] sm:$0xff] %vm763, %v2905
        %2929 = vst.msk [vmem:[#allocation3 + $0x8] sm:$0xff] %vm763, %v2907
        %2930 = vst.msk [vmem:[#allocation3 + $0x10] sm:$0xff] %vm763, %v2909
        %2931 = vst.msk [vmem:[#allocation3 + $0x18] sm:$0xff] %vm763, %v2911
        %2932 = vst.msk [vmem:[#allocation3 + $0x20] sm:$0xff] %vm763, %v2913
        %2933 = vst.msk [vmem:[#allocation3 + $0x28] sm:$0xff] %vm763, %v2915
        %2934 = vst.msk [vmem:[#allocation3 + $0x30] sm:$0xff] %vm763, %v2917
        %2935 = vst.msk [vmem:[#allocation3 + $0x38] sm:$0xff] %vm763, %v2919
        %2936 = vrot.lane.b32.xlu0 %v2664, 13
        %v2937 = vpop.permute.xlu0 %2936
        %2938 = vrot.lane.b32.xlu0 %v2665, 13
        %v2939 = vpop.permute.xlu0 %2938
        %2940 = vrot.lane.b32.xlu0 %v2666, 13
        %v2941 = vpop.permute.xlu0 %2940
        %2942 = vrot.lane.b32.xlu0 %v2667, 13
        %v2943 = vpop.permute.xlu0 %2942
        %2944 = vrot.lane.b32.xlu0 %v2668, 13
        %v2945 = vpop.permute.xlu0 %2944
        %2946 = vrot.lane.b32.xlu0 %v2669, 13
        %v2947 = vpop.permute.xlu0 %2946
        %2948 = vrot.lane.b32.xlu0 %v2670, 13
        %v2949 = vpop.permute.xlu0 %2948
        %2950 = vrot.lane.b32.xlu0 %v2671, 13
        %v2951 = vpop.permute.xlu0 %2950
        %2960 = vst.msk [vmem:[#allocation3] sm:$0xff] %vm796, %v2937
        %2961 = vst.msk [vmem:[#allocation3 + $0x8] sm:$0xff] %vm796, %v2939
        %2962 = vst.msk [vmem:[#allocation3 + $0x10] sm:$0xff] %vm796, %v2941
        %2963 = vst.msk [vmem:[#allocation3 + $0x18] sm:$0xff] %vm796, %v2943
        %2964 = vst.msk [vmem:[#allocation3 + $0x20] sm:$0xff] %vm796, %v2945
        %2965 = vst.msk [vmem:[#allocation3 + $0x28] sm:$0xff] %vm796, %v2947
        %2966 = vst.msk [vmem:[#allocation3 + $0x30] sm:$0xff] %vm796, %v2949
        %2967 = vst.msk [vmem:[#allocation3 + $0x38] sm:$0xff] %vm796, %v2951
        %2968 = vrot.lane.b32.xlu0 %v2664, 123
        %v2969 = vpop.permute.xlu0 %2968
        %2970 = vrot.lane.b32.xlu0 %v2665, 123
        %v2971 = vpop.permute.xlu0 %2970
        %2972 = vrot.lane.b32.xlu0 %v2666, 123
        %v2973 = vpop.permute.xlu0 %2972
        %2974 = vrot.lane.b32.xlu0 %v2667, 123
        %v2975 = vpop.permute.xlu0 %2974
        %2976 = vrot.lane.b32.xlu0 %v2668, 123
        %v2977 = vpop.permute.xlu0 %2976
        %2978 = vrot.lane.b32.xlu0 %v2669, 123
        %v2979 = vpop.permute.xlu0 %2978
        %2980 = vrot.lane.b32.xlu0 %v2670, 123
        %v2981 = vpop.permute.xlu0 %2980
        %2982 = vrot.lane.b32.xlu0 %v2671, 123
        %v2983 = vpop.permute.xlu0 %2982
        %2992 = vst.msk [vmem:[#allocation3] sm:$0xff] %vm829, %v2969
        %2993 = vst.msk [vmem:[#allocation3 + $0x8] sm:$0xff] %vm829, %v2971
        %2994 = vst.msk [vmem:[#allocation3 + $0x10] sm:$0xff] %vm829, %v2973
        %2995 = vst.msk [vmem:[#allocation3 + $0x18] sm:$0xff] %vm829, %v2975
        %2996 = vst.msk [vmem:[#allocation3 + $0x20] sm:$0xff] %vm829, %v2977
        %2997 = vst.msk [vmem:[#allocation3 + $0x28] sm:$0xff] %vm829, %v2979
        %2998 = vst.msk [vmem:[#allocation3 + $0x30] sm:$0xff] %vm829, %v2981
        %2999 = vst.msk [vmem:[#allocation3 + $0x38] sm:$0xff] %vm829, %v2983
        %3000 = vrot.lane.b32.xlu0 %v2664, 15
        %v3001 = vpop.permute.xlu0 %3000
        %3002 = vrot.lane.b32.xlu0 %v2665, 15
        %v3003 = vpop.permute.xlu0 %3002
        %3004 = vrot.lane.b32.xlu0 %v2666, 15
        %v3005 = vpop.permute.xlu0 %3004
        %3006 = vrot.lane.b32.xlu0 %v2667, 15
        %v3007 = vpop.permute.xlu0 %3006
        %3008 = vrot.lane.b32.xlu0 %v2668, 15
        %v3009 = vpop.permute.xlu0 %3008
        %3010 = vrot.lane.b32.xlu0 %v2669, 15
        %v3011 = vpop.permute.xlu0 %3010
        %3012 = vrot.lane.b32.xlu0 %v2670, 15
        %v3013 = vpop.permute.xlu0 %3012
        %3014 = vrot.lane.b32.xlu0 %v2671, 15
        %v3015 = vpop.permute.xlu0 %3014
        %3024 = vst.msk [vmem:[#allocation3] sm:$0xff] %vm862, %v3001
        %3025 = vst.msk [vmem:[#allocation3 + $0x8] sm:$0xff] %vm862, %v3003
        %3026 = vst.msk [vmem:[#allocation3 + $0x10] sm:$0xff] %vm862, %v3005
        %3027 = vst.msk [vmem:[#allocation3 + $0x18] sm:$0xff] %vm862, %v3007
        %3028 = vst.msk [vmem:[#allocation3 + $0x20] sm:$0xff] %vm862, %v3009
        %3029 = vst.msk [vmem:[#allocation3 + $0x28] sm:$0xff] %vm862, %v3011
        %3030 = vst.msk [vmem:[#allocation3 + $0x30] sm:$0xff] %vm862, %v3013
        %3031 = vst.msk [vmem:[#allocation3 + $0x38] sm:$0xff] %vm862, %v3015
        %v3032 = vld [vmem:[#allocation3] sm:$0xff]
        %v3033 = vld [vmem:[#allocation3 + $0x8] sm:$0xff]
        %v3034 = vld [vmem:[#allocation3 + $0x10] sm:$0xff]
        %v3035 = vld [vmem:[#allocation3 + $0x18] sm:$0xff]
        %v3036 = vld [vmem:[#allocation3 + $0x20] sm:$0xff]
        %v3037 = vld [vmem:[#allocation3 + $0x28] sm:$0xff]
        %v3038 = vld [vmem:[#allocation3 + $0x30] sm:$0xff]
        %v3039 = vld [vmem:[#allocation3 + $0x38] sm:$0xff]
        %v3040 = vmul.f32 %v3032, 0.0013736752
        %v3041 = vmul.f32 %v3033, 0.0013736752
        %v3042 = vmul.f32 %v3034, 0.0013736752
        %v3043 = vmul.f32 %v3035, 0.0013736752
        %v3044 = vmul.f32 %v3036, 0.0013736752
        %v3045 = vmul.f32 %v3037, 0.0013736752
        %v3046 = vmul.f32 %v3038, 0.0013736752
        %v3047 = vmul.f32 %v3039, 0.0013736752
        %v3048 = vmul.f32 %v3032, 0.009049076
        %v3049 = vmul.f32 %v3033, 0.009049076
        %v3050 = vmul.f32 %v3034, 0.009049076
        %v3051 = vmul.f32 %v3035, 0.009049076
        %v3052 = vmul.f32 %v3036, 0.009049076
        %v3053 = vmul.f32 %v3037, 0.009049076
        %v3054 = vmul.f32 %v3038, 0.009049076
        %v3055 = vmul.f32 %v3039, 0.009049076
        %3064 = vrot.lane.b32.xlu0 %v3048, 127
        %v3065 = vpop.permute.xlu0 %3064
        %3066 = vrot.lane.b32.xlu0 %v3049, 127
        %v3067 = vpop.permute.xlu0 %3066
        %3068 = vrot.lane.b32.xlu0 %v3050, 127
        %v3069 = vpop.permute.xlu0 %3068
        %3070 = vrot.lane.b32.xlu0 %v3051, 127
        %v3071 = vpop.permute.xlu0 %3070
        %3072 = vrot.lane.b32.xlu0 %v3052, 127
        %v3073 = vpop.permute.xlu0 %3072
        %3074 = vrot.lane.b32.xlu0 %v3053, 127
        %v3075 = vpop.permute.xlu0 %3074
        %3076 = vrot.lane.b32.xlu0 %v3054, 127
        %v3077 = vpop.permute.xlu0 %3076
        %3078 = vrot.lane.b32.xlu0 %v3055, 127
        %v3079 = vpop.permute.xlu0 %3078
        %v3088 = vadd.f32 %v3040, %v3065
        %v3089 = vadd.f32 %v3041, %v3067
        %v3090 = vadd.f32 %v3042, %v3069
        %v3091 = vadd.f32 %v3043, %v3071
        %v3092 = vadd.f32 %v3044, %v3073
        %v3093 = vadd.f32 %v3045, %v3075
        %v3094 = vadd.f32 %v3046, %v3077
        %v3095 = vadd.f32 %v3047, %v3079
        %v3096 = vmul.f32 %v3032, 0.039209068
        %v3097 = vmul.f32 %v3033, 0.039209068
        %v3098 = vmul.f32 %v3034, 0.039209068
        %v3099 = vmul.f32 %v3035, 0.039209068
        %v3100 = vmul.f32 %v3036, 0.039209068
        %v3101 = vmul.f32 %v3037, 0.039209068
        %v3102 = vmul.f32 %v3038, 0.039209068
        %v3103 = vmul.f32 %v3039, 0.039209068
        %3112 = vrot.lane.b32.xlu0 %v3096, 126
        %v3113 = vpop.permute.xlu0 %3112
        %3114 = vrot.lane.b32.xlu0 %v3097, 126
        %v3115 = vpop.permute.xlu0 %3114
        %3116 = vrot.lane.b32.xlu0 %v3098, 126
        %v3117 = vpop.permute.xlu0 %3116
        %3118 = vrot.lane.b32.xlu0 %v3099, 126
        %v3119 = vpop.permute.xlu0 %3118
        %3120 = vrot.lane.b32.xlu0 %v3100, 126
        %v3121 = vpop.permute.xlu0 %3120
        %3122 = vrot.lane.b32.xlu0 %v3101, 126
        %v3123 = vpop.permute.xlu0 %3122
        %3124 = vrot.lane.b32.xlu0 %v3102, 126
        %v3125 = vpop.permute.xlu0 %3124
        %3126 = vrot.lane.b32.xlu0 %v3103, 126
        %v3127 = vpop.permute.xlu0 %3126
        %v3136 = vadd.f32 %v3088, %v3113
        %v3137 = vadd.f32 %v3089, %v3115
        %v3138 = vadd.f32 %v3090, %v3117
        %v3139 = vadd.f32 %v3091, %v3119
        %v3140 = vadd.f32 %v3092, %v3121
        %v3141 = vadd.f32 %v3093, %v3123
        %v3142 = vadd.f32 %v3094, %v3125
        %v3143 = vadd.f32 %v3095, %v3127
        %v3144 = vmul.f32 %v3032, 0.11174576
        %v3145 = vmul.f32 %v3033, 0.11174576
        %v3146 = vmul.f32 %v3034, 0.11174576
        %v3147 = vmul.f32 %v3035, 0.11174576
        %v3148 = vmul.f32 %v3036, 0.11174576
        %v3149 = vmul.f32 %v3037, 0.11174576
        %v3150 = vmul.f32 %v3038, 0.11174576
        %v3151 = vmul.f32 %v3039, 0.11174576
        %3160 = vrot.lane.b32.xlu0 %v3144, 125
        %v3161 = vpop.permute.xlu0 %3160
        %3162 = vrot.lane.b32.xlu0 %v3145, 125
        %v3163 = vpop.permute.xlu0 %3162
        %3164 = vrot.lane.b32.xlu0 %v3146, 125
        %v3165 = vpop.permute.xlu0 %3164
        %3166 = vrot.lane.b32.xlu0 %v3147, 125
        %v3167 = vpop.permute.xlu0 %3166
        %3168 = vrot.lane.b32.xlu0 %v3148, 125
        %v3169 = vpop.permute.xlu0 %3168
        %3170 = vrot.lane.b32.xlu0 %v3149, 125
        %v3171 = vpop.permute.xlu0 %3170
        %3172 = vrot.lane.b32.xlu0 %v3150, 125
        %v3173 = vpop.permute.xlu0 %3172
        %3174 = vrot.lane.b32.xlu0 %v3151, 125
        %v3175 = vpop.permute.xlu0 %3174
        %v3184 = vadd.f32 %v3136, %v3161
        %v3185 = vadd.f32 %v3137, %v3163
        %v3186 = vadd.f32 %v3138, %v3165
        %v3187 = vadd.f32 %v3139, %v3167
        %v3188 = vadd.f32 %v3140, %v3169
        %v3189 = vadd.f32 %v3141, %v3171
        %v3190 = vadd.f32 %v3142, %v3173
        %v3191 = vadd.f32 %v3143, %v3175
        %v3192 = vmul.f32 %v3032, 0.2094777
        %v3193 = vmul.f32 %v3033, 0.2094777
        %v3194 = vmul.f32 %v3034, 0.2094777
        %v3195 = vmul.f32 %v3035, 0.2094777
        %v3196 = vmul.f32 %v3036, 0.2094777
        %v3197 = vmul.f32 %v3037, 0.2094777
        %v3198 = vmul.f32 %v3038, 0.2094777
        %v3199 = vmul.f32 %v3039, 0.2094777
        %3208 = vrot.lane.b32.xlu0 %v3192, 124
        %v3209 = vpop.permute.xlu0 %3208
        %3210 = vrot.lane.b32.xlu0 %v3193, 124
        %v3211 = vpop.permute.xlu0 %3210
        %3212 = vrot.lane.b32.xlu0 %v3194, 124
        %v3213 = vpop.permute.xlu0 %3212
        %3214 = vrot.lane.b32.xlu0 %v3195, 124
        %v3215 = vpop.permute.xlu0 %3214
        %3216 = vrot.lane.b32.xlu0 %v3196, 124
        %v3217 = vpop.permute.xlu0 %3216
        %3218 = vrot.lane.b32.xlu0 %v3197, 124
        %v3219 = vpop.permute.xlu0 %3218
        %3220 = vrot.lane.b32.xlu0 %v3198, 124
        %v3221 = vpop.permute.xlu0 %3220
        %3222 = vrot.lane.b32.xlu0 %v3199, 124
        %v3223 = vpop.permute.xlu0 %3222
        %v3232 = vadd.f32 %v3184, %v3209
        %v3233 = vadd.f32 %v3185, %v3211
        %v3234 = vadd.f32 %v3186, %v3213
        %v3235 = vadd.f32 %v3187, %v3215
        %v3236 = vadd.f32 %v3188, %v3217
        %v3237 = vadd.f32 %v3189, %v3219
        %v3238 = vadd.f32 %v3190, %v3221
        %v3239 = vadd.f32 %v3191, %v3223
        %v3240 = vmul.f32 %v3032, 0.25828946
        %v3241 = vmul.f32 %v3033, 0.25828946
        %v3242 = vmul.f32 %v3034, 0.25828946
        %v3243 = vmul.f32 %v3035, 0.25828946
        %v3244 = vmul.f32 %v3036, 0.25828946
        %v3245 = vmul.f32 %v3037, 0.25828946
        %v3246 = vmul.f32 %v3038, 0.25828946
        %v3247 = vmul.f32 %v3039, 0.25828946
        %3256 = vrot.lane.b32.xlu0 %v3240, 123
        %v3257 = vpop.permute.xlu0 %3256
        %3258 = vrot.lane.b32.xlu0 %v3241, 123
        %v3259 = vpop.permute.xlu0 %3258
        %3260 = vrot.lane.b32.xlu0 %v3242, 123
        %v3261 = vpop.permute.xlu0 %3260
        %3262 = vrot.lane.b32.xlu0 %v3243, 123
        %v3263 = vpop.permute.xlu0 %3262
        %3264 = vrot.lane.b32.xlu0 %v3244, 123
        %v3265 = vpop.permute.xlu0 %3264
        %3266 = vrot.lane.b32.xlu0 %v3245, 123
        %v3267 = vpop.permute.xlu0 %3266
        %3268 = vrot.lane.b32.xlu0 %v3246, 123
        %v3269 = vpop.permute.xlu0 %3268
        %3270 = vrot.lane.b32.xlu0 %v3247, 123
        %v3271 = vpop.permute.xlu0 %3270
        %v3280 = vadd.f32 %v3232, %v3257
        %v3281 = vadd.f32 %v3233, %v3259
        %v3282 = vadd.f32 %v3234, %v3261
        %v3283 = vadd.f32 %v3235, %v3263
        %v3284 = vadd.f32 %v3236, %v3265
        %v3285 = vadd.f32 %v3237, %v3267
        %v3286 = vadd.f32 %v3238, %v3269
        %v3287 = vadd.f32 %v3239, %v3271
        %3288 = vrot.lane.b32.xlu0 %v3192, 122
        %v3289 = vpop.permute.xlu0 %3288
        %3290 = vrot.lane.b32.xlu0 %v3193, 122
        %v3291 = vpop.permute.xlu0 %3290
        %3292 = vrot.lane.b32.xlu0 %v3194, 122
        %v3293 = vpop.permute.xlu0 %3292
        %3294 = vrot.lane.b32.xlu0 %v3195, 122
        %v3295 = vpop.permute.xlu0 %3294
        %3296 = vrot.lane.b32.xlu0 %v3196, 122
        %v3297 = vpop.permute.xlu0 %3296
        %3298 = vrot.lane.b32.xlu0 %v3197, 122
        %v3299 = vpop.permute.xlu0 %3298
        %3300 = vrot.lane.b32.xlu0 %v3198, 122
        %v3301 = vpop.permute.xlu0 %3300
        %3302 = vrot.lane.b32.xlu0 %v3199, 122
        %v3303 = vpop.permute.xlu0 %3302
        %v3312 = vadd.f32 %v3280, %v3289
        %v3313 = vadd.f32 %v3281, %v3291
        %v3314 = vadd.f32 %v3282, %v3293
        %v3315 = vadd.f32 %v3283, %v3295
        %v3316 = vadd.f32 %v3284, %v3297
        %v3317 = vadd.f32 %v3285, %v3299
        %v3318 = vadd.f32 %v3286, %v3301
        %v3319 = vadd.f32 %v3287, %v3303
        %3320 = vrot.lane.b32.xlu0 %v3144, 121
        %v3321 = vpop.permute.xlu0 %3320
        %3322 = vrot.lane.b32.xlu0 %v3145, 121
        %v3323 = vpop.permute.xlu0 %3322
        %3324 = vrot.lane.b32.xlu0 %v3146, 121
        %v3325 = vpop.permute.xlu0 %3324
        %3326 = vrot.lane.b32.xlu0 %v3147, 121
        %v3327 = vpop.permute.xlu0 %3326
        %3328 = vrot.lane.b32.xlu0 %v3148, 121
        %v3329 = vpop.permute.xlu0 %3328
        %3330 = vrot.lane.b32.xlu0 %v3149, 121
        %v3331 = vpop.permute.xlu0 %3330
        %3332 = vrot.lane.b32.xlu0 %v3150, 121
        %v3333 = vpop.permute.xlu0 %3332
        %3334 = vrot.lane.b32.xlu0 %v3151, 121
        %v3335 = vpop.permute.xlu0 %3334
        %v3344 = vadd.f32 %v3312, %v3321
        %v3345 = vadd.f32 %v3313, %v3323
        %v3346 = vadd.f32 %v3314, %v3325
        %v3347 = vadd.f32 %v3315, %v3327
        %v3348 = vadd.f32 %v3316, %v3329
        %v3349 = vadd.f32 %v3317, %v3331
        %v3350 = vadd.f32 %v3318, %v3333
        %v3351 = vadd.f32 %v3319, %v3335
        %3352 = vrot.lane.b32.xlu0 %v3096, 120
        %v3353 = vpop.permute.xlu0 %3352
        %3354 = vrot.lane.b32.xlu0 %v3097, 120
        %v3355 = vpop.permute.xlu0 %3354
        %3356 = vrot.lane.b32.xlu0 %v3098, 120
        %v3357 = vpop.permute.xlu0 %3356
        %3358 = vrot.lane.b32.xlu0 %v3099, 120
        %v3359 = vpop.permute.xlu0 %3358
        %3360 = vrot.lane.b32.xlu0 %v3100, 120
        %v3361 = vpop.permute.xlu0 %3360
        %3362 = vrot.lane.b32.xlu0 %v3101, 120
        %v3363 = vpop.permute.xlu0 %3362
        %3364 = vrot.lane.b32.xlu0 %v3102, 120
        %v3365 = vpop.permute.xlu0 %3364
        %3366 = vrot.lane.b32.xlu0 %v3103, 120
        %v3367 = vpop.permute.xlu0 %3366
        %v3376 = vadd.f32 %v3344, %v3353
        %v3377 = vadd.f32 %v3345, %v3355
        %v3378 = vadd.f32 %v3346, %v3357
        %v3379 = vadd.f32 %v3347, %v3359
        %v3380 = vadd.f32 %v3348, %v3361
        %v3381 = vadd.f32 %v3349, %v3363
        %v3382 = vadd.f32 %v3350, %v3365
        %v3383 = vadd.f32 %v3351, %v3367
        %3384 = vrot.lane.b32.xlu0 %v3048, 119
        %v3385 = vpop.permute.xlu0 %3384
        %3386 = vrot.lane.b32.xlu0 %v3049, 119
        %v3387 = vpop.permute.xlu0 %3386
        %3388 = vrot.lane.b32.xlu0 %v3050, 119
        %v3389 = vpop.permute.xlu0 %3388
        %3390 = vrot.lane.b32.xlu0 %v3051, 119
        %v3391 = vpop.permute.xlu0 %3390
        %3392 = vrot.lane.b32.xlu0 %v3052, 119
        %v3393 = vpop.permute.xlu0 %3392
        %3394 = vrot.lane.b32.xlu0 %v3053, 119
        %v3395 = vpop.permute.xlu0 %3394
        %3396 = vrot.lane.b32.xlu0 %v3054, 119
        %v3397 = vpop.permute.xlu0 %3396
        %3398 = vrot.lane.b32.xlu0 %v3055, 119
        %v3399 = vpop.permute.xlu0 %3398
        %v3408 = vadd.f32 %v3376, %v3385
        %v3409 = vadd.f32 %v3377, %v3387
        %v3410 = vadd.f32 %v3378, %v3389
        %v3411 = vadd.f32 %v3379, %v3391
        %v3412 = vadd.f32 %v3380, %v3393
        %v3413 = vadd.f32 %v3381, %v3395
        %v3414 = vadd.f32 %v3382, %v3397
        %v3415 = vadd.f32 %v3383, %v3399
        %3424 = vrot.lane.b32.xlu0 %v3040, 118
        %v3425 = vpop.permute.xlu0 %3424
        %3426 = vrot.lane.b32.xlu0 %v3041, 118
        %v3427 = vpop.permute.xlu0 %3426
        %3428 = vrot.lane.b32.xlu0 %v3042, 118
        %v3429 = vpop.permute.xlu0 %3428
        %3430 = vrot.lane.b32.xlu0 %v3043, 118
        %v3431 = vpop.permute.xlu0 %3430
        %3432 = vrot.lane.b32.xlu0 %v3044, 118
        %v3433 = vpop.permute.xlu0 %3432
        %3434 = vrot.lane.b32.xlu0 %v3045, 118
        %v3435 = vpop.permute.xlu0 %3434
        %3436 = vrot.lane.b32.xlu0 %v3046, 118
        %v3437 = vpop.permute.xlu0 %3436
        %3438 = vrot.lane.b32.xlu0 %v3047, 118
        %v3439 = vpop.permute.xlu0 %3438
        %v3448 = vadd.f32 %v3408, %v3425
        %v3449 = vadd.f32 %v3409, %v3427
        %v3450 = vadd.f32 %v3410, %v3429
        %v3451 = vadd.f32 %v3411, %v3431
        %v3452 = vadd.f32 %v3412, %v3433
        %v3453 = vadd.f32 %v3413, %v3435
        %v3454 = vadd.f32 %v3414, %v3437
        %v3455 = vadd.f32 %v3415, %v3439
        %s3456 = scalar_lea.vmem %s186, 128 [#allocation7]
        %3457 = vst.msk [vmem:[%s3456] sm:$0xff] %vm205, %v3448
        %3458 = vst.msk [vmem:[%s3456 + $0x8] sm:$0xff] %vm205, %v3449
        %3459 = vst.msk [vmem:[%s3456 + $0x10] sm:$0xff] %vm205, %v3450
        %3460 = vst.msk [vmem:[%s3456 + $0x18] sm:$0xff] %vm205, %v3451
        %3461 = vst.msk [vmem:[%s3456 + $0x20] sm:$0xff] %vm205, %v3452
        %3462 = vst.msk [vmem:[%s3456 + $0x28] sm:$0xff] %vm205, %v3453
        %3463 = vst.msk [vmem:[%s3456 + $0x30] sm:$0xff] %vm205, %v3454
        %3464 = vst.msk [vmem:[%s3456 + $0x38] sm:$0xff] %vm205, %v3455
        %v3469 = vrot.slane %v3448, 1
        %v3470 = vrot.slane %v3450, 1
        %v3471 = vrot.slane %v3452, 1
        %v3472 = vrot.slane %v3454, 1
        %v3477 = vadd.f32 %v3448, %v3469
        %v3478 = vadd.f32 %v3450, %v3470
        %v3479 = vadd.f32 %v3452, %v3471
        %v3480 = vadd.f32 %v3454, %v3472
        %v3485 = vrot.slane %v3449, 1
        %v3486 = vrot.slane %v3451, 1
        %v3487 = vrot.slane %v3453, 1
        %v3488 = vrot.slane %v3455, 1
        %v3493 = vadd.f32 %v3449, %v3485
        %v3494 = vadd.f32 %v3451, %v3486
        %v3495 = vadd.f32 %v3453, %v3487
        %v3496 = vadd.f32 %v3455, %v3488
        %v3501 = vrot.slane %v3477, 1
        %v3502 = vrot.slane %v3478, 1
        %v3503 = vrot.slane %v3479, 1
        %v3504 = vrot.slane %v3480, 1
        %v3509 = vrot.slane %v3477, 2
        %v3510 = vrot.slane %v3478, 2
        %v3511 = vrot.slane %v3479, 2
        %v3512 = vrot.slane %v3480, 2
        %v3517 = vrot.slane %v3477, 3
        %v3518 = vrot.slane %v3478, 3
        %v3519 = vrot.slane %v3479, 3
        %v3520 = vrot.slane %v3480, 3
        %v3529 = vrot.slane %v3493, 4
        %v3530 = vrot.slane %v3494, 4
        %v3531 = vrot.slane %v3495, 4
        %v3532 = vrot.slane %v3496, 4
        %v3537 = vrot.slane %v3493, 5
        %v3538 = vrot.slane %v3494, 5
        %v3539 = vrot.slane %v3495, 5
        %v3540 = vrot.slane %v3496, 5
        %v3545 = vrot.slane %v3493, 6
        %v3546 = vrot.slane %v3494, 6
        %v3547 = vrot.slane %v3495, 6
        %v3548 = vrot.slane %v3496, 6
        %v3553 = vrot.slane %v3493, 7
        %v3554 = vrot.slane %v3494, 7
        %v3555 = vrot.slane %v3495, 7
        %v3556 = vrot.slane %v3496, 7
        %vm3561 = vcmask 1040384
        %v3562 = vsel %vm3561, %v3477, %v3501
        %v3563 = vsel %vm3561, %v3478, %v3502
        %v3564 = vsel %vm3561, %v3479, %v3503
        %v3565 = vsel %vm3561, %v3480, %v3504
        %vm3566 = vcmask 1041408
        %v3567 = vsel %vm3566, %v3562, %v3509
        %v3568 = vsel %vm3566, %v3563, %v3510
        %v3569 = vsel %vm3566, %v3564, %v3511
        %v3570 = vsel %vm3566, %v3565, %v3512
        %vm3571 = vcmask 1042432
        %v3572 = vsel %vm3571, %v3567, %v3517
        %v3573 = vsel %vm3571, %v3568, %v3518
        %v3574 = vsel %vm3571, %v3569, %v3519
        %v3575 = vsel %vm3571, %v3570, %v3520
        %vm3576 = vcmask 1043456
        %v3577 = vsel %vm3576, %v3572, %v3529
        %v3578 = vsel %vm3576, %v3573, %v3530
        %v3579 = vsel %vm3576, %v3574, %v3531
        %v3580 = vsel %vm3576, %v3575, %v3532
        %vm3581 = vcmask 1044480
        %v3582 = vsel %vm3581, %v3577, %v3537
        %v3583 = vsel %vm3581, %v3578, %v3538
        %v3584 = vsel %vm3581, %v3579, %v3539
        %v3585 = vsel %vm3581, %v3580, %v3540
        %vm3586 = vcmask 1045504
        %v3587 = vsel %vm3586, %v3582, %v3545
        %v3588 = vsel %vm3586, %v3583, %v3546
        %v3589 = vsel %vm3586, %v3584, %v3547
        %v3590 = vsel %vm3586, %v3585, %v3548
        %vm3591 = vcmask 1046528
        %v3592 = vsel %vm3591, %v3587, %v3553
        %v3593 = vsel %vm3591, %v3588, %v3554
        %v3594 = vsel %vm3591, %v3589, %v3555
        %v3595 = vsel %vm3591, %v3590, %v3556
        %3600 = vrot.lane.b32.xlu0 %v3592, 127
        %v3601 = vpop.permute.xlu0 %3600
        %3602 = vrot.lane.b32.xlu0 %v3593, 127
        %v3603 = vpop.permute.xlu0 %3602
        %3604 = vrot.lane.b32.xlu0 %v3594, 127
        %v3605 = vpop.permute.xlu0 %3604
        %3606 = vrot.lane.b32.xlu0 %v3595, 127
        %v3607 = vpop.permute.xlu0 %3606
        %v3612 = vadd.f32 %v3592, %v3601
        %v3613 = vadd.f32 %v3593, %v3603
        %v3614 = vadd.f32 %v3594, %v3605
        %v3615 = vadd.f32 %v3595, %v3607
        %3620 = vrot.lane.b32.xlu0 %v3612, 127
        %v3621 = vpop.permute.xlu0 %3620
        %3622 = vrot.lane.b32.xlu0 %v3613, 127
        %v3623 = vpop.permute.xlu0 %3622
        %3624 = vrot.lane.b32.xlu0 %v3614, 127
        %v3625 = vpop.permute.xlu0 %3624
        %3626 = vrot.lane.b32.xlu0 %v3615, 127
        %v3627 = vpop.permute.xlu0 %3626
        %3632 = vrot.lane.b32.xlu0 %v3612, 126
        %v3633 = vpop.permute.xlu0 %3632
        %3634 = vrot.lane.b32.xlu0 %v3613, 126
        %v3635 = vpop.permute.xlu0 %3634
        %3636 = vrot.lane.b32.xlu0 %v3614, 126
        %v3637 = vpop.permute.xlu0 %3636
        %3638 = vrot.lane.b32.xlu0 %v3615, 126
        %v3639 = vpop.permute.xlu0 %3638
        %3644 = vrot.lane.b32.xlu0 %v3612, 125
        %v3645 = vpop.permute.xlu0 %3644
        %3646 = vrot.lane.b32.xlu0 %v3613, 125
        %v3647 = vpop.permute.xlu0 %3646
        %3648 = vrot.lane.b32.xlu0 %v3614, 125
        %v3649 = vpop.permute.xlu0 %3648
        %3650 = vrot.lane.b32.xlu0 %v3615, 125
        %v3651 = vpop.permute.xlu0 %3650
        %3656 = vrot.lane.b32.xlu0 %v3612, 124
        %v3657 = vpop.permute.xlu0 %3656
        %3658 = vrot.lane.b32.xlu0 %v3613, 124
        %v3659 = vpop.permute.xlu0 %3658
        %3660 = vrot.lane.b32.xlu0 %v3614, 124
        %v3661 = vpop.permute.xlu0 %3660
        %3662 = vrot.lane.b32.xlu0 %v3615, 124
        %v3663 = vpop.permute.xlu0 %3662
        %3668 = vrot.lane.b32.xlu0 %v3612, 123
        %v3669 = vpop.permute.xlu0 %3668
        %3670 = vrot.lane.b32.xlu0 %v3613, 123
        %v3671 = vpop.permute.xlu0 %3670
        %3672 = vrot.lane.b32.xlu0 %v3614, 123
        %v3673 = vpop.permute.xlu0 %3672
        %3674 = vrot.lane.b32.xlu0 %v3615, 123
        %v3675 = vpop.permute.xlu0 %3674
        %3680 = vrot.lane.b32.xlu0 %v3612, 122
        %v3681 = vpop.permute.xlu0 %3680
        %3682 = vrot.lane.b32.xlu0 %v3613, 122
        %v3683 = vpop.permute.xlu0 %3682
        %3684 = vrot.lane.b32.xlu0 %v3614, 122
        %v3685 = vpop.permute.xlu0 %3684
        %3686 = vrot.lane.b32.xlu0 %v3615, 122
        %v3687 = vpop.permute.xlu0 %3686
        %3692 = vrot.lane.b32.xlu0 %v3612, 121
        %v3693 = vpop.permute.xlu0 %3692
        %3694 = vrot.lane.b32.xlu0 %v3613, 121
        %v3695 = vpop.permute.xlu0 %3694
        %3696 = vrot.lane.b32.xlu0 %v3614, 121
        %v3697 = vpop.permute.xlu0 %3696
        %3698 = vrot.lane.b32.xlu0 %v3615, 121
        %v3699 = vpop.permute.xlu0 %3698
        %v3704 = vsel %vm829, %v3612, %v3621
        %v3705 = vsel %vm829, %v3613, %v3623
        %v3706 = vsel %vm829, %v3614, %v3625
        %v3707 = vsel %vm829, %v3615, %v3627
        %vm3708 = vcmask 15360
        %v3709 = vsel %vm3708, %v3704, %v3633
        %v3710 = vsel %vm3708, %v3705, %v3635
        %v3711 = vsel %vm3708, %v3706, %v3637
        %v3712 = vsel %vm3708, %v3707, %v3639
        %vm3713 = vcmask 23552
        %v3714 = vsel %vm3713, %v3709, %v3645
        %v3715 = vsel %vm3713, %v3710, %v3647
        %v3716 = vsel %vm3713, %v3711, %v3649
        %v3717 = vsel %vm3713, %v3712, %v3651
        %vm3718 = vcmask 31744
        %v3719 = vsel %vm3718, %v3714, %v3657
        %v3720 = vsel %vm3718, %v3715, %v3659
        %v3721 = vsel %vm3718, %v3716, %v3661
        %v3722 = vsel %vm3718, %v3717, %v3663
        %vm3723 = vcmask 39936
        %v3724 = vsel %vm3723, %v3719, %v3669
        %v3725 = vsel %vm3723, %v3720, %v3671
        %v3726 = vsel %vm3723, %v3721, %v3673
        %v3727 = vsel %vm3723, %v3722, %v3675
        %vm3728 = vcmask 48128
        %v3729 = vsel %vm3728, %v3724, %v3681
        %v3730 = vsel %vm3728, %v3725, %v3683
        %v3731 = vsel %vm3728, %v3726, %v3685
        %v3732 = vsel %vm3728, %v3727, %v3687
        %vm3733 = vcmask 56320
        %v3734 = vsel %vm3733, %v3729, %v3693
        %v3735 = vsel %vm3733, %v3730, %v3695
        %v3736 = vsel %vm3733, %v3731, %v3697
        %v3737 = vsel %vm3733, %v3732, %v3699
        %v3738 = vmul.f32 %v3734, 0.25
        %v3739 = vmul.f32 %v3735, 0.25
        %v3740 = vmul.f32 %v3736, 0.25
        %v3741 = vmul.f32 %v3737, 0.25
        %vm3742 = vcmask 64512
        %3743 = vst.msk [vmem:[%s193] sm:$0xff] %vm3742, %v3738
        %3744 = vst.msk [vmem:[%s193 + $0x8] sm:$0xff] %vm3742, %v3739
        %3745 = vst.msk [vmem:[%s193 + $0x10] sm:$0xff] %vm3742, %v3740
        %3746 = vst.msk [vmem:[%s193 + $0x18] sm:$0xff] %vm3742, %v3741
        %s3747 = sand.u32 %s73, 1
        %s3748 = scalar_lea.sflag [#allocation6], %s3747
        %s3749 = sand.u32 %s73, 1
        %s3750 = smul.addr %s3749, 192
        %s3751 = scalar_lea.vmem [#allocation7], %s3750
        %s3752 = sand.u32 %s101, 1
        %s3753 = scalar_lea.sflag [#allocation9], %s3752
        %s3754 = sand.u32 %s101, 1
        %s3755 = smul.addr %s3754, 32
        %s3756 = scalar_lea.vmem [#allocation8], %s3755
        // Predicated region
        $region29: #{tpu_custom_call.1} parent=23 // pred_check
          %p3757 = pneg %p83
        $region30: #{tpu_custom_call.1} parent=23 // pred_check_branch
          %3759 = sbr.rel (%p3757) target = $region32
        $region31: #{tpu_custom_call.1} parent=23 // pred_region
          %s3760 = smul.u32 4, %s28
          %s3762 = ssub.s32 3072, 3072
          %3763 = vsyncadd %s3748, %s3762
          %s3764 = smul.addr %s3760, 2
          %s3765 = smul.addr %s27, 24
          %s3766 = sadd.s32 %s3764, %s3765
          %s3767 = smul.addr %s3766, 128
          %s3768 = scalar_lea.hbm %s1, %s3767
          %s3769 = sshll.u32 %s3751, 4
          %s3770 = int_to_ptr.vmem [resolvable:$true] %s3769
          %3775 = dma.vmem_to_hbm [thread:$0]  %s3770, 3072, %s3768, %s3748, 128, 128, 8
        $region32: #{tpu_custom_call.1} parent=23 // pred_fallthru
          _
        // Predicated region
        $region33: #{tpu_custom_call.1} parent=23 // pred_check
          %p3776 = pneg %p111
        $region34: #{tpu_custom_call.1} parent=23 // pred_check_branch
          %3778 = sbr.rel (%p3776) target = $region36
        $region35: #{tpu_custom_call.1} parent=23 // pred_region
          %s3779 = smul.u32 4, %s28
          %s3781 = ssub.s32 512, 512
          %3782 = vsyncadd %s3753, %s3781
          %s3783 = smul.addr %s27, 4
          %s3784 = sadd.s32 %s3779, %s3783
          %s3785 = smul.addr %s3784, 128
          %s3786 = scalar_lea.hbm %s2, %s3785
          %s3787 = sshll.u32 %s3756, 4
          %s3788 = int_to_ptr.vmem [resolvable:$true] %s3787
          %3793 = dma.vmem_to_hbm [thread:$0]  %s3788, 512, %s3786, %s3753, 128, 128, 8
        $region36: #{tpu_custom_call.1} parent=23 // pred_fallthru
          _
      $region24: #{tpu_custom_call.1} parent=5 // pred_fallthru
        _
      %p3794 = scmp.le.s32.totalorder 2, %s18
      // Predicated region
      $region37: #{tpu_custom_call.1} parent=5 // pred_check
        %p3795 = pneg %p3794
      $region38: #{tpu_custom_call.1} parent=5 // pred_check_branch
        %3797 = sbr.rel (%p3795) target = $region40
      $region39: #{tpu_custom_call.1} parent=5 // pred_region
        %s3798 = ssub.s32 %s18, 2
        // Predicated region
        $region41: #{tpu_custom_call.1} parent=39 // pred_check
          %p3799 = pneg %p89
        $region42: #{tpu_custom_call.1} parent=39 // pred_check_branch
          %3801 = sbr.rel (%p3799) target = $region44
        $region43: #{tpu_custom_call.1} parent=39 // pred_region
          %s3802 = sand.u32 %s74, 1
          %s3803 = scalar_lea.sflag [#allocation6], %s3802
          %s3804 = sand.u32 %s74, 1
          %s3805 = smul.addr %s3804, 192
          %s3806 = scalar_lea.vmem [#allocation7], %s3805
          %3807 = dma.done %s3803, 3072
        $region44: #{tpu_custom_call.1} parent=39 // pred_fallthru
          _
        // Predicated region
        $region45: #{tpu_custom_call.1} parent=39 // pred_check
          %p3808 = pneg %p117
        $region46: #{tpu_custom_call.1} parent=39 // pred_check_branch
          %3810 = sbr.rel (%p3808) target = $region48
        $region47: #{tpu_custom_call.1} parent=39 // pred_region
          %s3811 = sand.u32 %s102, 1
          %s3812 = scalar_lea.sflag [#allocation9], %s3811
          %s3813 = sand.u32 %s102, 1
          %s3814 = smul.addr %s3813, 32
          %s3815 = scalar_lea.vmem [#allocation8], %s3814
          %3816 = dma.done %s3812, 512
        $region48: #{tpu_custom_call.1} parent=39 // pred_fallthru
          _
      $region40: #{tpu_custom_call.1} parent=5 // pred_fallthru
        _
    $region6: #{tpu_custom_call.1} parent=1 // loop_footer
      %s22 = sadd.s32 1, %s18
    $region7: #{tpu_custom_call.1} parent=1 // loop_footer_branch
      %17 = sbr.rel target = $region3
    $region8: #{tpu_custom_call.1} parent=1 // loop_exit
      _
    %3817 = vsyncpa [#allocation5], 1
    %s3818 = scalar_lea.sflag [#allocation5], 1
    %3819 = vsyncpa %s3818, 1
    %3820 = vsyncpa [#allocation6], 1
    %s3821 = scalar_lea.sflag [#allocation6], 1
    %3822 = vsyncpa %s3821, 1
    %3823 = vsyncpa [#allocation9], 1
    %s3824 = scalar_lea.sflag [#allocation9], 1
    %3825 = vsyncpa %s3824, 1

</llo_original>
